<compile_context>
chip_gen: v7x
topology: tpu7x:2x2x1
jax: 0.10.0
libtpu: 0.0.40
codegen_flags: <defaults>
</compile_context>

<pallas_src>
import functools

import jax
import jax.numpy as jnp
from jax.experimental import pallas as pl
from jax.experimental.pallas import tpu as pltpu  # noqa: F401  (TPU backend)


# ---------------------------------------------------------------------------
# Fused kernel: SDF -> self-MHA -> add+LN -> lc_att -> DiffAttention chain ->
#               BatchNorm -> tanh -> cross-MHA -> add+LN
# ---------------------------------------------------------------------------
def _fused_kernel(x_ref, xk_ref, diff_ref, sdfw_ref, wblob_ref, bblob_ref, o_ref, *,
                  num_heads, hidden_size, wlay, blay, use_sdf):
    f32 = jnp.float32
    B, S, I = x_ref.shape
    H = hidden_size
    M = B * S

    # -- packed-parameter accessors (static slices of the two VMEM blobs) -----
    def wmat(name):
        r0, rows, cols = wlay[name]
        return wblob_ref[r0:r0 + rows, 0:cols]

    def bvec(name):
        row, width = blay[name]
        return bblob_ref[row:row + 1, 0:width]

    def layernorm(z, g, beta):
        mu = jnp.mean(z, axis=-1, keepdims=True)
        var = jnp.mean(jnp.square(z - mu), axis=-1, keepdims=True)
        return (z - mu) * jax.lax.rsqrt(var + 1e-5) * g + beta

    def softmax_last(s):
        s = s - jnp.max(s, axis=-1, keepdims=True)
        e = jnp.exp(s)
        return e * pl.reciprocal(jnp.sum(e, axis=-1, keepdims=True), approx=True)

    def mha(q2, kv2, E, w_in, b_in, w_out, b_out, self_attn):
        # q2, kv2: (M, E), rows ordered (b, s).  w_in: (E, 3E) = [Wq|Wk|Wv]^T with the
        # 1/sqrt(hd) query scale already folded into the Wq columns (and b_in[:E]).
        hd = E // num_heads
        if self_attn:                              # q2 is kv2: one packed QKV matmul
            qkv = jnp.dot(q2, w_in, preferred_element_type=f32) + b_in         # (M, 3E)
            q, k, v = qkv[:, 0:E], qkv[:, E:2 * E], qkv[:, 2 * E:3 * E]
        else:                                      # stack query & key/value rows
            proj = jnp.dot(jnp.concatenate([q2, kv2], axis=0), w_in,
                           preferred_element_type=f32) + b_in                  # (2M, 3E)
            q = proj[0:M, 0:E]
            k = proj[M:2 * M, E:2 * E]
            v = proj[M:2 * M, 2 * E:3 * E]
        q3 = q.reshape(B, S, E)
        k3 = k.reshape(B, S, E)
        v3 = v.reshape(B, S, E)
        # Fold the heads into the einsum batch dim (G = num_heads * B): one scores
        # einsum + one softmax + one context einsum instead of num_heads of each.
        qg = jnp.concatenate(
            [q3[:, :, h * hd:(h + 1) * hd] for h in range(num_heads)], axis=0)
        kg = jnp.concatenate(
            [k3[:, :, h * hd:(h + 1) * hd] for h in range(num_heads)], axis=0)
        vg = jnp.concatenate(
            [v3[:, :, h * hd:(h + 1) * hd] for h in range(num_heads)], axis=0)
        p = softmax_last(jnp.einsum('gqd,gkd->gqk', qg, kg,
                                    preferred_element_type=f32))               # (G, S, S)
        ctxg = jnp.einsum('gqk,gkd->gqd', p, vg, preferred_element_type=f32)   # (G, S, hd)
        ctx = jnp.concatenate(
            [ctxg[h * B:(h + 1) * B] for h in range(num_heads)], axis=-1)      # (B, S, E)
        return jnp.dot(ctx.reshape(M, E), w_out, preferred_element_type=f32) + b_out

    # -- Simi_Diff_Fusion (k != 1), fused in-kernel ----------------------------
    if use_sdf:
        xkv = xk_ref[...].astype(f32)                       # (B, N, F), F = S*I
        F = xkv.shape[2]
        w = sdfw_ref[...].astype(f32)                       # (1, F)
        # wc(x) logits; the scalar bias shifts every logit equally -> dropped.
        logits = jnp.sum(xkv * w, axis=-1, keepdims=True)                       # (B, N, 1)
        logits = logits - jnp.max(logits, axis=1, keepdims=True)
        e = jnp.exp(logits)
        a = e * pl.reciprocal(jnp.sum(e, axis=1, keepdims=True), approx=True)
        pooled = jnp.tanh(jnp.sum(a * xkv, axis=1, keepdims=True))              # (B, 1, F)
        # (B, 1, S*I) -> (B*S, I) via two constant 0/1 relayout operators on the MXU
        # (avoids an in-kernel lane->sublane reshape):
        #   sel_rows[s, f] = 1  iff  f // I == s
        #   sel_cols[f, i] = 1  iff  f %  I == i
        fi = jax.lax.broadcasted_iota(jnp.int32, (S, F), 1)
        si = jax.lax.broadcasted_iota(jnp.int32, (S, F), 0)
        sel_rows = jnp.where((fi >= si * I) & (fi < si * I + I), 1.0, 0.0).astype(f32)
        ii = jax.lax.broadcasted_iota(jnp.int32, (I, I), 0)
        jj = jax.lax.broadcasted_iota(jnp.int32, (I, I), 1)
        eye = jnp.where(ii == jj, 1.0, 0.0).astype(f32)
        sel_cols = jnp.concatenate([eye] * S, axis=0)                           # (F, I)
        xw2 = jnp.concatenate(
            [jnp.dot(sel_rows * pooled[b], sel_cols, preferred_element_type=f32)
             for b in range(B)], axis=0)                                        # (M, I)
    else:
        xw2 = xk_ref[...].astype(f32).reshape(M, I)

    # -- self-attention branch on x --------------------------------------------
    x2 = x_ref[...].astype(f32).reshape(M, I)
    att = mha(x2, x2, I, wmat("att_w_in"), bvec("att_b_in"),
              wmat("att_w_out"), bvec("att_b_out"), self_attn=True)
    x_att = layernorm(x2 + att, bvec("ln_att_g"), bvec("ln_att_b"))
    x_att = jnp.dot(x_att, wmat("lc_att_w"),
                    preferred_element_type=f32) + bvec("lc_att_b")              # (M, H)

    # -- DiffAttention branch: wo -> bmm(diff) -> wc -> BatchNorm -> tanh ------
    y = jnp.dot(xw2, wmat("q_wo_w"), preferred_element_type=f32) + bvec("q_wo_b")   # (M, S)
    m3 = jnp.einsum('bst,bti->bsi', y.reshape(B, S, S), diff_ref[...].astype(f32),
                    preferred_element_type=f32)                                     # (B, S, I)
    pre = jnp.dot(m3.reshape(M, I), wmat("q_wc_w"),
                  preferred_element_type=f32) + bvec("q_wc_b")                      # (M, H)
    mu = jnp.mean(pre, axis=0, keepdims=True)             # BatchNorm1d batch statistics
    var = jnp.mean(jnp.square(pre - mu), axis=0, keepdims=True)
    x_q = jnp.tanh((pre - mu) * jax.lax.rsqrt(var + 1e-5) * bvec("bn_g") + bvec("bn_b"))

    # -- cross attention: query = x_q, key = value = x_att ---------------------
    out = mha(x_q, x_att, H, wmat("cr_w_in"), bvec("cr_b_in"),
              wmat("cr_w_out"), bvec("cr_b_out"), self_attn=False)
    out = layernorm(x_q + out, bvec("ln_cr_g"), bvec("ln_cr_b"))
    o_ref[...] = out.astype(o_ref.dtype)


# ---------------------------------------------------------------------------
# Parameters: PyTorch-layout init + one-time prep (transpose / fold / pack)
# ---------------------------------------------------------------------------
def init_params(key, input_size, seq_len, hidden_size):
    I, S, H = input_size, seq_len, hidden_size
    ks = jax.random.split(key, 16)

    def nrm(k, shape):
        return (0.1 * jax.random.normal(k, shape)).astype(jnp.float32)

    p = {}
    # att_attention (embed dim = input_size)
    p["att_w_in"] = nrm(ks[0], (3 * I, I))
    p["att_b_in"] = nrm(ks[1], (3 * I,))
    p["att_w_out"] = nrm(ks[2], (I, I))
    p["att_b_out"] = nrm(ks[3], (I,))
    p["ln_att_g"] = jnp.ones((I,), jnp.float32)
    p["ln_att_b"] = jnp.zeros((I,), jnp.float32)
    p["lc_att_w"] = nrm(ks[4], (H, I))
    p["lc_att_b"] = nrm(ks[5], (H,))
    # DiffAttention / Simi_Diff_Fusion
    p["sdf_w"] = nrm(ks[6], (1, I * S))
    p["sdf_b"] = nrm(ks[7], (1,))
    p["q_wo_w"] = nrm(ks[8], (S, I))
    p["q_wo_b"] = nrm(ks[9], (S,))
    p["q_wc_w"] = nrm(ks[10], (H, I))
    p["q_wc_b"] = nrm(ks[11], (H,))
    p["bn_g"] = jnp.ones((H,), jnp.float32)
    p["bn_b"] = jnp.zeros((H,), jnp.float32)
    # cross_attention (embed dim = hidden_size)
    p["cr_w_in"] = nrm(ks[12], (3 * H, H))
    p["cr_b_in"] = nrm(ks[13], (3 * H,))
    p["cr_w_out"] = nrm(ks[14], (H, H))
    p["cr_b_out"] = nrm(ks[15], (H,))
    p["ln_cr_g"] = jnp.ones((H,), jnp.float32)
    p["ln_cr_b"] = jnp.zeros((H,), jnp.float32)
    return p


def prepare_params(p, *, input_size, seq_len, hidden_size, num_heads):
    """One-time prep: transpose to (in, out), fold query scale, pack into 2 blobs."""
    I, S, H = input_size, seq_len, hidden_size
    f32 = jnp.float32
    assert I % num_heads == 0 and H % num_heads == 0
    assert 3 * max(I, H) <= 128 and S <= 128, "bias vectors are packed into 128 lanes"

    def t(w):
        return jnp.asarray(w, f32).T

    scale_att = float(I // num_heads) ** -0.5
    scale_cr = float(H // num_heads) ** -0.5
    att_w_in = t(p["att_w_in"]).at[:, :I].multiply(scale_att)           # (I, 3I)
    att_b_in = jnp.asarray(p["att_b_in"], f32).at[:I].multiply(scale_att)
    cr_w_in = t(p["cr_w_in"]).at[:, :H].multiply(scale_cr)              # (H, 3H)
    cr_b_in = jnp.asarray(p["cr_b_in"], f32).at[:H].multiply(scale_cr)

    weights = {
        "att_w_in": att_w_in, "att_w_out": t(p["att_w_out"]), "lc_att_w": t(p["lc_att_w"]),
        "q_wo_w": t(p["q_wo_w"]), "q_wc_w": t(p["q_wc_w"]),
        "cr_w_in": cr_w_in, "cr_w_out": t(p["cr_w_out"]),
    }
    biases = {
        "att_b_in": att_b_in, "att_b_out": p["att_b_out"],
        "ln_att_g": p["ln_att_g"], "ln_att_b": p["ln_att_b"], "lc_att_b": p["lc_att_b"],
        "q_wo_b": p["q_wo_b"], "q_wc_b": p["q_wc_b"], "bn_g": p["bn_g"], "bn_b": p["bn_b"],
        "cr_b_in": cr_b_in, "cr_b_out": p["cr_b_out"],
        "ln_cr_g": p["ln_cr_g"], "ln_cr_b": p["ln_cr_b"],
    }

    # Weight blob: pre-transposed (in, out) matrices stacked along rows -> one DMA.
    worder = ["att_w_in", "att_w_out", "lc_att_w", "q_wo_w", "q_wc_w",
              "cr_w_in", "cr_w_out"]
    wcols = max(int(weights[n].shape[1]) for n in worder)
    wlay, wparts, off = {}, [], 0
    for n in worder:
        w = jnp.asarray(weights[n], f32)
        r, c = int(w.shape[0]), int(w.shape[1])
        wlay[n] = (off, r, c)
        wparts.append(jnp.pad(w, ((0, 0), (0, wcols - c))))
        off += r
    if off % 8:
        wparts.append(jnp.zeros((8 - off % 8, wcols), f32))
    wblob = jnp.concatenate(wparts, axis=0)

    # Bias blob: one vector per 128-lane row -> one DMA.
    border = ["att_b_in", "att_b_out", "ln_att_g", "ln_att_b", "lc_att_b",
              "q_wo_b", "q_wc_b", "bn_g", "bn_b",
              "cr_b_in", "cr_b_out", "ln_cr_g", "ln_cr_b"]
    blay, brows = {}, []
    for r, n in enumerate(border):
        v = jnp.asarray(biases[n], f32).reshape(-1)
        blay[n] = (r, int(v.shape[0]))
        brows.append(jnp.pad(v, (0, 128 - int(v.shape[0]))))
    bblob = jnp.stack(brows, axis=0)
    if bblob.shape[0] % 8:
        bblob = jnp.concatenate(
            [bblob, jnp.zeros((8 - bblob.shape[0] % 8, 128), f32)], axis=0)

    # NOTE: p["sdf_b"] shifts every Simi_Diff_Fusion softmax logit equally and is
    # therefore softmax-invariant; it is intentionally not packed.
    return {"wblob": wblob, "bblob": bblob,
            "sdf_w": jnp.asarray(p["sdf_w"], f32).reshape(1, S * I),
            "wlay": wlay, "blay": blay}


def build_cross_attention(packed, *, num_heads, seq_len, input_size, hidden_size, k):
    """Returns jitted forward(x, xk, diff, wblob, bblob, sdf_w) -> (B, S, H)."""
    use_sdf = (k != 1)
    kern = functools.partial(
        _fused_kernel, num_heads=num_heads, hidden_size=hidden_size,
        wlay=packed["wlay"], blay=packed["blay"], use_sdf=use_sdf)

    @jax.jit
    def forward(x, xk, diff, wblob, bblob, sdf_w):
        B, S, I = x.shape
        assert S == seq_len and I == input_size
        if use_sdf:
            assert xk.shape[0] == B and xk.shape[2] == S * I
        else:
            assert xk.shape == (B, S, I)
        out = pl.pallas_call(
            kern,
            out_shape=jax.ShapeDtypeStruct((B * S, hidden_size), x.dtype),
        )(x, xk, diff, sdf_w, wblob, bblob)
        return out.reshape(B, S, hidden_size)

    return forward


# ---------------------------------------------------------------------------
# Pure-JAX reference (mirrors the PyTorch module), for a correctness check
# ---------------------------------------------------------------------------
def reference_forward(p, x, xk, diff, *, num_heads, seq_len, input_size, k):
    f32 = jnp.float32
    B, S, I = x.shape
    x = x.astype(f32)

    def mha_ref(q, kv, w_in, b_in, w_out, b_out):
        E = q.shape[-1]
        hd = E // num_heads
        qp = q @ w_in[:E].T + b_in[:E]
        kp = kv @ w_in[E:2 * E].T + b_in[E:2 * E]
        vp = kv @ w_in[2 * E:].T + b_in[2 * E:]
        qh = qp.reshape(B, S, num_heads, hd).transpose(0, 2, 1, 3) * (hd ** -0.5)
        kh = kp.reshape(B, S, num_heads, hd).transpose(0, 2, 1, 3)
        vh = vp.reshape(B, S, num_heads, hd).transpose(0, 2, 1, 3)
        w = jax.nn.softmax(jnp.einsum('bhqd,bhkd->bhqk', qh, kh), axis=-1)
        ctx = jnp.einsum('bhqk,bhkd->bhqd', w, vh).transpose(0, 2, 1, 3).reshape(B, S, E)
        return ctx @ w_out.T + b_out

    def ln(z, g, b):
        mu = z.mean(-1, keepdims=True)
        v = ((z - mu) ** 2).mean(-1, keepdims=True)
        return (z - mu) / jnp.sqrt(v + 1e-5) * g + b

    att = mha_ref(x, x, p["att_w_in"], p["att_b_in"], p["att_w_out"], p["att_b_out"])
    x_att = ln(x + att, p["ln_att_g"], p["ln_att_b"]) @ p["lc_att_w"].T + p["lc_att_b"]

    if k == 1:
        xw = xk
    else:
        logits = xk @ p["sdf_w"].T + p["sdf_b"]                     # (B, N, 1)
        a = jax.nn.softmax(logits, axis=1)
        xw = jnp.tanh(jnp.einsum('bno,bnf->bof', a, xk)).reshape(B, S, I)
    y = xw @ p["q_wo_w"].T + p["q_wo_b"]                            # (B, S, S)
    m = jnp.einsum('bst,bti->bsi', y, diff)
    pre = m @ p["q_wc_w"].T + p["q_wc_b"]                           # (B, S, H)
    mu = pre.mean(axis=(0, 1), keepdims=True)
    var = ((pre - mu) ** 2).mean(axis=(0, 1), keepdims=True)
    x_q = jnp.tanh((pre - mu) / jnp.sqrt(var + 1e-5) * p["bn_g"] + p["bn_b"])
    out = mha_ref(x_q, x_att, p["cr_w_in"], p["cr_b_in"], p["cr_w_out"], p["cr_b_out"])
    return ln(x_q + out, p["ln_cr_g"], p["ln_cr_b"])


if __name__ == "__main__":
    B, S, I, H, HEADS, K = 2, 8, 32, 32, 4, 2
    key = jax.random.PRNGKey(0)
    k1, k2, k3, kp = jax.random.split(key, 4)
    x = jax.random.normal(k1, (B, S, I), jnp.float32)          # query stream
    xk = jax.random.normal(k2, (B, S, I * S), jnp.float32)     # Simi_Diff_Fusion input (k != 1)
    diff = jax.random.normal(k3, (B, S, I), jnp.float32)       # difference features

    params = init_params(kp, I, S, H)
    packed = prepare_params(params, input_size=I, seq_len=S, hidden_size=H, num_heads=HEADS)
    forward = build_cross_attention(packed, num_heads=HEADS, seq_len=S,
                                    input_size=I, hidden_size=H, k=K)

    out = forward(x, xk, diff, packed["wblob"], packed["bblob"], packed["sdf_w"])
    out = jax.block_until_ready(out)

    ref = reference_forward(params, x, xk, diff, num_heads=HEADS, seq_len=S,
                            input_size=I, k=K)
    err = float(jnp.max(jnp.abs(out - ref)))
    assert out.shape == (B, S, H)
    assert bool(jnp.all(jnp.isfinite(out)))
    assert err < 5e-2, f"kernel/reference mismatch: max abs err = {err}"
    print("KERNEL_OK")
</pallas_src>

<mosaic_0001>
module attributes {stable_mosaic.version = 11 : i64} {
  func.func @_fused_kernel(%arg0: memref<2x8x32xf32, #tpu.memory_space<vmem>>, %arg1: memref<2x8x256xf32, #tpu.memory_space<vmem>>, %arg2: memref<2x8x32xf32, #tpu.memory_space<vmem>>, %arg3: memref<1x256xf32, #tpu.memory_space<vmem>>, %arg4: memref<224x96xf32, #tpu.memory_space<vmem>>, %arg5: memref<16x128xf32, #tpu.memory_space<vmem>>, %arg6: memref<16x32xf32, #tpu.memory_space<vmem>>) attributes {dimension_semantics = [], scalar_prefetch = 0 : i64, scratch_operands = 0 : i64, tpu.core_type = #tpu.core_type<tc>} {
    %c0 = arith.constant 0 : index
    %c0_0 = arith.constant 0 : index
    %c0_1 = arith.constant 0 : index
    %0 = vector.load %arg1[%c0, %c0_0, %c0_1] : memref<2x8x256xf32, #tpu.memory_space<vmem>>, vector<2x8x256xf32>
    %c0_2 = arith.constant 0 : index
    %c0_3 = arith.constant 0 : index
    %1 = vector.load %arg3[%c0_2, %c0_3] : memref<1x256xf32, #tpu.memory_space<vmem>>, vector<1x256xf32>
    %2 = vector.shape_cast %1 : vector<1x256xf32> to vector<1x1x256xf32>
    %3 = vector.broadcast %2 : vector<1x1x256xf32> to vector<2x8x256xf32>
    %4 = arith.mulf %0, %3 : vector<2x8x256xf32>
    %cst = arith.constant dense<0.000000e+00> : vector<2x8xf32>
    %5 = vector.multi_reduction <add>, %4, %cst [2] : vector<2x8x256xf32> to vector<2x8xf32>
    %6 = vector.shape_cast %5 : vector<2x8xf32> to vector<2x8x1xf32>
    %cst_4 = arith.constant dense<0xFF800000> : vector<2x1xf32>
    %7 = vector.multi_reduction <maximumf>, %6, %cst_4 [1] : vector<2x8x1xf32> to vector<2x1xf32>
    %8 = vector.shape_cast %7 : vector<2x1xf32> to vector<2x1x1xf32>
    %9 = vector.broadcast %8 : vector<2x1x1xf32> to vector<2x8x1xf32>
    %10 = arith.subf %6, %9 : vector<2x8x1xf32>
    %11 = math.exp %10 : vector<2x8x1xf32>
    %cst_5 = arith.constant dense<0.000000e+00> : vector<2x1xf32>
    %12 = vector.multi_reduction <add>, %11, %cst_5 [1] : vector<2x8x1xf32> to vector<2x1xf32>
    %13 = vector.shape_cast %12 : vector<2x1xf32> to vector<2x1x1xf32>
    %14 = tpu.reciprocal %13 {approx = true} : vector<2x1x1xf32> -> vector<2x1x1xf32>
    %15 = vector.broadcast %14 : vector<2x1x1xf32> to vector<2x8x1xf32>
    %16 = arith.mulf %11, %15 : vector<2x8x1xf32>
    %17 = vector.broadcast %16 : vector<2x8x1xf32> to vector<2x8x256xf32>
    %18 = arith.mulf %17, %0 : vector<2x8x256xf32>
    %cst_6 = arith.constant dense<0.000000e+00> : vector<2x256xf32>
    %19 = vector.multi_reduction <add>, %18, %cst_6 [1] : vector<2x8x256xf32> to vector<2x256xf32>
    %20 = vector.shape_cast %19 : vector<2x256xf32> to vector<2x1x256xf32>
    %21 = math.tanh %20 : vector<2x1x256xf32>
    %22 = tpu.iota {dimensions = array<i32: 1>} : vector<8x256xi32>
    %23 = tpu.iota {dimensions = array<i32: 0>} : vector<8x256xi32>
    %c32_i32 = arith.constant 32 : i32
    %24 = vector.broadcast %c32_i32 : i32 to vector<8x256xi32>
    %25 = arith.muli %23, %24 : vector<8x256xi32>
    %26 = arith.cmpi sge, %22, %25 : vector<8x256xi32>
    %c32_i32_7 = arith.constant 32 : i32
    %27 = vector.broadcast %c32_i32_7 : i32 to vector<8x256xi32>
    %28 = arith.muli %23, %27 : vector<8x256xi32>
    %c32_i32_8 = arith.constant 32 : i32
    %29 = vector.broadcast %c32_i32_8 : i32 to vector<8x256xi32>
    %30 = arith.addi %28, %29 : vector<8x256xi32>
    %31 = arith.cmpi slt, %22, %30 : vector<8x256xi32>
    %32 = arith.andi %26, %31 : vector<8x256xi1>
    %cst_9 = arith.constant 1.000000e+00 : f32
    %cst_10 = arith.constant 0.000000e+00 : f32
    %33 = vector.broadcast %cst_9 : f32 to vector<8x256xf32>
    %34 = vector.broadcast %cst_10 : f32 to vector<8x256xf32>
    %35 = arith.select %32, %33, %34 : vector<8x256xi1>, vector<8x256xf32>
    %36 = tpu.iota {dimensions = array<i32: 0>} : vector<32x32xi32>
    %37 = tpu.iota {dimensions = array<i32: 1>} : vector<32x32xi32>
    %38 = arith.cmpi eq, %36, %37 : vector<32x32xi32>
    %cst_11 = arith.constant 1.000000e+00 : f32
    %cst_12 = arith.constant 0.000000e+00 : f32
    %39 = vector.broadcast %cst_11 : f32 to vector<32x32xf32>
    %40 = vector.broadcast %cst_12 : f32 to vector<32x32xf32>
    %41 = arith.select %38, %39, %40 : vector<32x32xi1>, vector<32x32xf32>
    %42 = tpu.concatenate %41, %41, %41, %41, %41, %41, %41, %41 in 0 : vector<32x32xf32>, vector<32x32xf32>, vector<32x32xf32>, vector<32x32xf32>, vector<32x32xf32>, vector<32x32xf32>, vector<32x32xf32>, vector<32x32xf32> -> vector<256x32xf32>
    %43 = vector.extract_strided_slice %21 {offsets = [0, 0, 0], sizes = [1, 1, 256], strides = [1, 1, 1]} : vector<2x1x256xf32> to vector<1x1x256xf32>
    %44 = vector.shape_cast %43 : vector<1x1x256xf32> to vector<1x256xf32>
    %45 = vector.broadcast %44 : vector<1x256xf32> to vector<8x256xf32>
    %46 = arith.mulf %35, %45 : vector<8x256xf32>
    %cst_13 = arith.constant dense<0.000000e+00> : vector<8x32xf32>
    %47 = tpu.matmul %46, %42, %cst_13 {dimension_numbers = #tpu.dot_dimension_numbers<[1], [0], [0], [1], [0, 0, 1, 1], [], []>} : vector<8x256xf32>, vector<256x32xf32>, vector<8x32xf32> -> vector<8x32xf32>
    %48 = vector.extract_strided_slice %21 {offsets = [1, 0, 0], sizes = [1, 1, 256], strides = [1, 1, 1]} : vector<2x1x256xf32> to vector<1x1x256xf32>
    %49 = vector.shape_cast %48 : vector<1x1x256xf32> to vector<1x256xf32>
    %50 = vector.broadcast %49 : vector<1x256xf32> to vector<8x256xf32>
    %51 = arith.mulf %35, %50 : vector<8x256xf32>
    %cst_14 = arith.constant dense<0.000000e+00> : vector<8x32xf32>
    %52 = tpu.matmul %51, %42, %cst_14 {dimension_numbers = #tpu.dot_dimension_numbers<[1], [0], [0], [1], [0, 0, 1, 1], [], []>} : vector<8x256xf32>, vector<256x32xf32>, vector<8x32xf32> -> vector<8x32xf32>
    %53 = tpu.concatenate %47, %52 in 0 : vector<8x32xf32>, vector<8x32xf32> -> vector<16x32xf32>
    %c0_15 = arith.constant 0 : index
    %c0_16 = arith.constant 0 : index
    %c0_17 = arith.constant 0 : index
    %54 = vector.load %arg0[%c0_15, %c0_16, %c0_17] : memref<2x8x32xf32, #tpu.memory_space<vmem>>, vector<2x8x32xf32>
    %55 = vector.shape_cast %54 : vector<2x8x32xf32> to vector<16x32xf32>
    %c0_18 = arith.constant 0 : index
    %c0_19 = arith.constant 0 : index
    %56 = vector.load %arg4[%c0_18, %c0_19] : memref<224x96xf32, #tpu.memory_space<vmem>>, vector<32x96xf32>
    %c0_20 = arith.constant 0 : index
    %c0_21 = arith.constant 0 : index
    %57 = vector.load %arg5[%c0_20, %c0_21] : memref<16x128xf32, #tpu.memory_space<vmem>>, vector<1x96xf32>
    %c32 = arith.constant 32 : index
    %c0_22 = arith.constant 0 : index
    %58 = vector.load %arg4[%c32, %c0_22] : memref<224x96xf32, #tpu.memory_space<vmem>>, vector<32x32xf32>
    %c1 = arith.constant 1 : index
    %c0_23 = arith.constant 0 : index
    %59 = vector.load %arg5[%c1, %c0_23] : memref<16x128xf32, #tpu.memory_space<vmem>>, vector<1x32xf32>
    %cst_24 = arith.constant dense<0.000000e+00> : vector<16x96xf32>
    %60 = tpu.matmul %55, %56, %cst_24 {dimension_numbers = #tpu.dot_dimension_numbers<[1], [0], [0], [1], [0, 0, 1, 1], [], []>} : vector<16x32xf32>, vector<32x96xf32>, vector<16x96xf32> -> vector<16x96xf32>
    %61 = vector.broadcast %57 : vector<1x96xf32> to vector<16x96xf32>
    %62 = arith.addf %60, %61 : vector<16x96xf32>
    %63 = vector.extract_strided_slice %62 {offsets = [0, 0], sizes = [16, 32], strides = [1, 1]} : vector<16x96xf32> to vector<16x32xf32>
    %64 = vector.extract_strided_slice %62 {offsets = [0, 32], sizes = [16, 32], strides = [1, 1]} : vector<16x96xf32> to vector<16x32xf32>
    %65 = vector.extract_strided_slice %62 {offsets = [0, 64], sizes = [16, 32], strides = [1, 1]} : vector<16x96xf32> to vector<16x32xf32>
    %66 = vector.shape_cast %63 : vector<16x32xf32> to vector<2x8x32xf32>
    %67 = vector.shape_cast %64 : vector<16x32xf32> to vector<2x8x32xf32>
    %68 = vector.shape_cast %65 : vector<16x32xf32> to vector<2x8x32xf32>
    %69 = vector.extract_strided_slice %66 {offsets = [0, 0, 0], sizes = [2, 8, 8], strides = [1, 1, 1]} : vector<2x8x32xf32> to vector<2x8x8xf32>
    %70 = vector.extract_strided_slice %66 {offsets = [0, 0, 8], sizes = [2, 8, 8], strides = [1, 1, 1]} : vector<2x8x32xf32> to vector<2x8x8xf32>
    %71 = vector.extract_strided_slice %66 {offsets = [0, 0, 16], sizes = [2, 8, 8], strides = [1, 1, 1]} : vector<2x8x32xf32> to vector<2x8x8xf32>
    %72 = vector.extract_strided_slice %66 {offsets = [0, 0, 24], sizes = [2, 8, 8], strides = [1, 1, 1]} : vector<2x8x32xf32> to vector<2x8x8xf32>
    %73 = tpu.concatenate %69, %70, %71, %72 in 0 : vector<2x8x8xf32>, vector<2x8x8xf32>, vector<2x8x8xf32>, vector<2x8x8xf32> -> vector<8x8x8xf32>
    %74 = vector.extract_strided_slice %67 {offsets = [0, 0, 0], sizes = [2, 8, 8], strides = [1, 1, 1]} : vector<2x8x32xf32> to vector<2x8x8xf32>
    %75 = vector.extract_strided_slice %67 {offsets = [0, 0, 8], sizes = [2, 8, 8], strides = [1, 1, 1]} : vector<2x8x32xf32> to vector<2x8x8xf32>
    %76 = vector.extract_strided_slice %67 {offsets = [0, 0, 16], sizes = [2, 8, 8], strides = [1, 1, 1]} : vector<2x8x32xf32> to vector<2x8x8xf32>
    %77 = vector.extract_strided_slice %67 {offsets = [0, 0, 24], sizes = [2, 8, 8], strides = [1, 1, 1]} : vector<2x8x32xf32> to vector<2x8x8xf32>
    %78 = tpu.concatenate %74, %75, %76, %77 in 0 : vector<2x8x8xf32>, vector<2x8x8xf32>, vector<2x8x8xf32>, vector<2x8x8xf32> -> vector<8x8x8xf32>
    %79 = vector.extract_strided_slice %68 {offsets = [0, 0, 0], sizes = [2, 8, 8], strides = [1, 1, 1]} : vector<2x8x32xf32> to vector<2x8x8xf32>
    %80 = vector.extract_strided_slice %68 {offsets = [0, 0, 8], sizes = [2, 8, 8], strides = [1, 1, 1]} : vector<2x8x32xf32> to vector<2x8x8xf32>
    %81 = vector.extract_strided_slice %68 {offsets = [0, 0, 16], sizes = [2, 8, 8], strides = [1, 1, 1]} : vector<2x8x32xf32> to vector<2x8x8xf32>
    %82 = vector.extract_strided_slice %68 {offsets = [0, 0, 24], sizes = [2, 8, 8], strides = [1, 1, 1]} : vector<2x8x32xf32> to vector<2x8x8xf32>
    %83 = tpu.concatenate %79, %80, %81, %82 in 0 : vector<2x8x8xf32>, vector<2x8x8xf32>, vector<2x8x8xf32>, vector<2x8x8xf32> -> vector<8x8x8xf32>
    "tpu.trace_start"() <{level = 10 : i32, message = "gqd,gkd->gqk"}> : () -> ()
    %cst_25 = arith.constant dense<0.000000e+00> : vector<8x8x8xf32>
    %84 = tpu.matmul %73, %78, %cst_25 {dimension_numbers = #tpu.dot_dimension_numbers<[2], [2], [1], [1], [0, 0, 0, 1, 1, 1], [0], [0]>} : vector<8x8x8xf32>, vector<8x8x8xf32>, vector<8x8x8xf32> -> vector<8x8x8xf32>
    "tpu.trace_stop"() : () -> ()
    %cst_26 = arith.constant dense<0xFF800000> : vector<8x8xf32>
    %85 = vector.multi_reduction <maximumf>, %84, %cst_26 [2] : vector<8x8x8xf32> to vector<8x8xf32>
    %86 = vector.shape_cast %85 : vector<8x8xf32> to vector<8x8x1xf32>
    %87 = vector.broadcast %86 : vector<8x8x1xf32> to vector<8x8x8xf32>
    %88 = arith.subf %84, %87 : vector<8x8x8xf32>
    %89 = math.exp %88 : vector<8x8x8xf32>
    %cst_27 = arith.constant dense<0.000000e+00> : vector<8x8xf32>
    %90 = vector.multi_reduction <add>, %89, %cst_27 [2] : vector<8x8x8xf32> to vector<8x8xf32>
    %91 = vector.shape_cast %90 : vector<8x8xf32> to vector<8x8x1xf32>
    %92 = tpu.reciprocal %91 {approx = true} : vector<8x8x1xf32> -> vector<8x8x1xf32>
    %93 = vector.broadcast %92 : vector<8x8x1xf32> to vector<8x8x8xf32>
    %94 = arith.mulf %89, %93 : vector<8x8x8xf32>
    "tpu.trace_start"() <{level = 10 : i32, message = "gqk,gkd->gqd"}> : () -> ()
    %cst_28 = arith.constant dense<0.000000e+00> : vector<8x8x8xf32>
    %95 = tpu.matmul %94, %83, %cst_28 {dimension_numbers = #tpu.dot_dimension_numbers<[2], [1], [1], [2], [0, 0, 0, 1, 1, 2], [0], [0]>} : vector<8x8x8xf32>, vector<8x8x8xf32>, vector<8x8x8xf32> -> vector<8x8x8xf32>
    "tpu.trace_stop"() : () -> ()
    %96 = vector.extract_strided_slice %95 {offsets = [0, 0, 0], sizes = [2, 8, 8], strides = [1, 1, 1]} : vector<8x8x8xf32> to vector<2x8x8xf32>
    %97 = vector.extract_strided_slice %95 {offsets = [2, 0, 0], sizes = [2, 8, 8], strides = [1, 1, 1]} : vector<8x8x8xf32> to vector<2x8x8xf32>
    %98 = vector.extract_strided_slice %95 {offsets = [4, 0, 0], sizes = [2, 8, 8], strides = [1, 1, 1]} : vector<8x8x8xf32> to vector<2x8x8xf32>
    %99 = vector.extract_strided_slice %95 {offsets = [6, 0, 0], sizes = [2, 8, 8], strides = [1, 1, 1]} : vector<8x8x8xf32> to vector<2x8x8xf32>
    %100 = tpu.concatenate %96, %97, %98, %99 in 2 : vector<2x8x8xf32>, vector<2x8x8xf32>, vector<2x8x8xf32>, vector<2x8x8xf32> -> vector<2x8x32xf32>
    %101 = vector.shape_cast %100 : vector<2x8x32xf32> to vector<16x32xf32>
    %cst_29 = arith.constant dense<0.000000e+00> : vector<16x32xf32>
    %102 = tpu.matmul %101, %58, %cst_29 {dimension_numbers = #tpu.dot_dimension_numbers<[1], [0], [0], [1], [0, 0, 1, 1], [], []>} : vector<16x32xf32>, vector<32x32xf32>, vector<16x32xf32> -> vector<16x32xf32>
    %103 = vector.broadcast %59 : vector<1x32xf32> to vector<16x32xf32>
    %104 = arith.addf %102, %103 : vector<16x32xf32>
    %105 = arith.addf %55, %104 : vector<16x32xf32>
    %c2 = arith.constant 2 : index
    %c0_30 = arith.constant 0 : index
    %106 = vector.load %arg5[%c2, %c0_30] : memref<16x128xf32, #tpu.memory_space<vmem>>, vector<1x32xf32>
    %c3 = arith.constant 3 : index
    %c0_31 = arith.constant 0 : index
    %107 = vector.load %arg5[%c3, %c0_31] : memref<16x128xf32, #tpu.memory_space<vmem>>, vector<1x32xf32>
    %cst_32 = arith.constant dense<0.000000e+00> : vector<16xf32>
    %108 = vector.multi_reduction <add>, %105, %cst_32 [1] : vector<16x32xf32> to vector<16xf32>
    %109 = vector.shape_cast %108 : vector<16xf32> to vector<16x1xf32>
    %cst_33 = arith.constant 3.200000e+01 : f32
    %110 = vector.broadcast %cst_33 : f32 to vector<16x1xf32>
    %111 = arith.divf %109, %110 : vector<16x1xf32>
    %112 = vector.broadcast %111 : vector<16x1xf32> to vector<16x32xf32>
    %113 = arith.subf %105, %112 : vector<16x32xf32>
    %114 = arith.mulf %113, %113 : vector<16x32xf32>
    %cst_34 = arith.constant dense<0.000000e+00> : vector<16xf32>
    %115 = vector.multi_reduction <add>, %114, %cst_34 [1] : vector<16x32xf32> to vector<16xf32>
    %116 = vector.shape_cast %115 : vector<16xf32> to vector<16x1xf32>
    %cst_35 = arith.constant 3.200000e+01 : f32
    %117 = vector.broadcast %cst_35 : f32 to vector<16x1xf32>
    %118 = arith.divf %116, %117 : vector<16x1xf32>
    %119 = vector.broadcast %111 : vector<16x1xf32> to vector<16x32xf32>
    %120 = arith.subf %105, %119 : vector<16x32xf32>
    %cst_36 = arith.constant 9.99999974E-6 : f32
    %121 = vector.broadcast %cst_36 : f32 to vector<16x1xf32>
    %122 = arith.addf %118, %121 : vector<16x1xf32>
    %123 = math.rsqrt %122 : vector<16x1xf32>
    %124 = vector.broadcast %123 : vector<16x1xf32> to vector<16x32xf32>
    %125 = arith.mulf %120, %124 : vector<16x32xf32>
    %126 = vector.broadcast %106 : vector<1x32xf32> to vector<16x32xf32>
    %127 = arith.mulf %125, %126 : vector<16x32xf32>
    %128 = vector.broadcast %107 : vector<1x32xf32> to vector<16x32xf32>
    %129 = arith.addf %127, %128 : vector<16x32xf32>
    %c64 = arith.constant 64 : index
    %c0_37 = arith.constant 0 : index
    %130 = vector.load %arg4[%c64, %c0_37] : memref<224x96xf32, #tpu.memory_space<vmem>>, vector<32x32xf32>
    %cst_38 = arith.constant dense<0.000000e+00> : vector<16x32xf32>
    %131 = tpu.matmul %129, %130, %cst_38 {dimension_numbers = #tpu.dot_dimension_numbers<[1], [0], [0], [1], [0, 0, 1, 1], [], []>} : vector<16x32xf32>, vector<32x32xf32>, vector<16x32xf32> -> vector<16x32xf32>
    %c4 = arith.constant 4 : index
    %c0_39 = arith.constant 0 : index
    %132 = vector.load %arg5[%c4, %c0_39] : memref<16x128xf32, #tpu.memory_space<vmem>>, vector<1x32xf32>
    %133 = vector.broadcast %132 : vector<1x32xf32> to vector<16x32xf32>
    %134 = arith.addf %131, %133 : vector<16x32xf32>
    %c96 = arith.constant 96 : index
    %c0_40 = arith.constant 0 : index
    %135 = vector.load %arg4[%c96, %c0_40] : memref<224x96xf32, #tpu.memory_space<vmem>>, vector<32x8xf32>
    %cst_41 = arith.constant dense<0.000000e+00> : vector<16x8xf32>
    %136 = tpu.matmul %53, %135, %cst_41 {dimension_numbers = #tpu.dot_dimension_numbers<[1], [0], [0], [1], [0, 0, 1, 1], [], []>} : vector<16x32xf32>, vector<32x8xf32>, vector<16x8xf32> -> vector<16x8xf32>
    %c5 = arith.constant 5 : index
    %c0_42 = arith.constant 0 : index
    %137 = vector.load %arg5[%c5, %c0_42] : memref<16x128xf32, #tpu.memory_space<vmem>>, vector<1x8xf32>
    %138 = vector.broadcast %137 : vector<1x8xf32> to vector<16x8xf32>
    %139 = arith.addf %136, %138 : vector<16x8xf32>
    %140 = vector.shape_cast %139 : vector<16x8xf32> to vector<2x8x8xf32>
    %c0_43 = arith.constant 0 : index
    %c0_44 = arith.constant 0 : index
    %c0_45 = arith.constant 0 : index
    %141 = vector.load %arg2[%c0_43, %c0_44, %c0_45] : memref<2x8x32xf32, #tpu.memory_space<vmem>>, vector<2x8x32xf32>
    "tpu.trace_start"() <{level = 10 : i32, message = "bst,bti->bsi"}> : () -> ()
    %cst_46 = arith.constant dense<0.000000e+00> : vector<2x8x32xf32>
    %142 = tpu.matmul %140, %141, %cst_46 {dimension_numbers = #tpu.dot_dimension_numbers<[2], [1], [1], [2], [0, 0, 0, 1, 1, 2], [0], [0]>} : vector<2x8x8xf32>, vector<2x8x32xf32>, vector<2x8x32xf32> -> vector<2x8x32xf32>
    "tpu.trace_stop"() : () -> ()
    %143 = vector.shape_cast %142 : vector<2x8x32xf32> to vector<16x32xf32>
    %c128 = arith.constant 128 : index
    %c0_47 = arith.constant 0 : index
    %144 = vector.load %arg4[%c128, %c0_47] : memref<224x96xf32, #tpu.memory_space<vmem>>, vector<32x32xf32>
    %cst_48 = arith.constant dense<0.000000e+00> : vector<16x32xf32>
    %145 = tpu.matmul %143, %144, %cst_48 {dimension_numbers = #tpu.dot_dimension_numbers<[1], [0], [0], [1], [0, 0, 1, 1], [], []>} : vector<16x32xf32>, vector<32x32xf32>, vector<16x32xf32> -> vector<16x32xf32>
    %c6 = arith.constant 6 : index
    %c0_49 = arith.constant 0 : index
    %146 = vector.load %arg5[%c6, %c0_49] : memref<16x128xf32, #tpu.memory_space<vmem>>, vector<1x32xf32>
    %147 = vector.broadcast %146 : vector<1x32xf32> to vector<16x32xf32>
    %148 = arith.addf %145, %147 : vector<16x32xf32>
    %cst_50 = arith.constant dense<0.000000e+00> : vector<32xf32>
    %149 = vector.multi_reduction <add>, %148, %cst_50 [0] : vector<16x32xf32> to vector<32xf32>
    %150 = vector.shape_cast %149 : vector<32xf32> to vector<1x32xf32>
    %cst_51 = arith.constant 1.600000e+01 : f32
    %151 = vector.broadcast %cst_51 : f32 to vector<1x32xf32>
    %152 = arith.divf %150, %151 : vector<1x32xf32>
    %153 = vector.broadcast %152 : vector<1x32xf32> to vector<16x32xf32>
    %154 = arith.subf %148, %153 : vector<16x32xf32>
    %155 = arith.mulf %154, %154 : vector<16x32xf32>
    %cst_52 = arith.constant dense<0.000000e+00> : vector<32xf32>
    %156 = vector.multi_reduction <add>, %155, %cst_52 [0] : vector<16x32xf32> to vector<32xf32>
    %157 = vector.shape_cast %156 : vector<32xf32> to vector<1x32xf32>
    %cst_53 = arith.constant 1.600000e+01 : f32
    %158 = vector.broadcast %cst_53 : f32 to vector<1x32xf32>
    %159 = arith.divf %157, %158 : vector<1x32xf32>
    %160 = vector.broadcast %152 : vector<1x32xf32> to vector<16x32xf32>
    %161 = arith.subf %148, %160 : vector<16x32xf32>
    %cst_54 = arith.constant 9.99999974E-6 : f32
    %162 = vector.broadcast %cst_54 : f32 to vector<1x32xf32>
    %163 = arith.addf %159, %162 : vector<1x32xf32>
    %164 = math.rsqrt %163 : vector<1x32xf32>
    %165 = vector.broadcast %164 : vector<1x32xf32> to vector<16x32xf32>
    %166 = arith.mulf %161, %165 : vector<16x32xf32>
    %c7 = arith.constant 7 : index
    %c0_55 = arith.constant 0 : index
    %167 = vector.load %arg5[%c7, %c0_55] : memref<16x128xf32, #tpu.memory_space<vmem>>, vector<1x32xf32>
    %168 = vector.broadcast %167 : vector<1x32xf32> to vector<16x32xf32>
    %169 = arith.mulf %166, %168 : vector<16x32xf32>
    %c8 = arith.constant 8 : index
    %c0_56 = arith.constant 0 : index
    %170 = vector.load %arg5[%c8, %c0_56] : memref<16x128xf32, #tpu.memory_space<vmem>>, vector<1x32xf32>
    %171 = vector.broadcast %170 : vector<1x32xf32> to vector<16x32xf32>
    %172 = arith.addf %169, %171 : vector<16x32xf32>
    %173 = math.tanh %172 : vector<16x32xf32>
    %c160 = arith.constant 160 : index
    %c0_57 = arith.constant 0 : index
    %174 = vector.load %arg4[%c160, %c0_57] : memref<224x96xf32, #tpu.memory_space<vmem>>, vector<32x96xf32>
    %c9 = arith.constant 9 : index
    %c0_58 = arith.constant 0 : index
    %175 = vector.load %arg5[%c9, %c0_58] : memref<16x128xf32, #tpu.memory_space<vmem>>, vector<1x96xf32>
    %c192 = arith.constant 192 : index
    %c0_59 = arith.constant 0 : index
    %176 = vector.load %arg4[%c192, %c0_59] : memref<224x96xf32, #tpu.memory_space<vmem>>, vector<32x32xf32>
    %c10 = arith.constant 10 : index
    %c0_60 = arith.constant 0 : index
    %177 = vector.load %arg5[%c10, %c0_60] : memref<16x128xf32, #tpu.memory_space<vmem>>, vector<1x32xf32>
    %178 = tpu.concatenate %173, %134 in 0 : vector<16x32xf32>, vector<16x32xf32> -> vector<32x32xf32>
    %cst_61 = arith.constant dense<0.000000e+00> : vector<32x96xf32>
    %179 = tpu.matmul %178, %174, %cst_61 {dimension_numbers = #tpu.dot_dimension_numbers<[1], [0], [0], [1], [0, 0, 1, 1], [], []>} : vector<32x32xf32>, vector<32x96xf32>, vector<32x96xf32> -> vector<32x96xf32>
    %180 = vector.broadcast %175 : vector<1x96xf32> to vector<32x96xf32>
    %181 = arith.addf %179, %180 : vector<32x96xf32>
    %182 = vector.extract_strided_slice %181 {offsets = [0, 0], sizes = [16, 32], strides = [1, 1]} : vector<32x96xf32> to vector<16x32xf32>
    %183 = vector.extract_strided_slice %181 {offsets = [16, 32], sizes = [16, 32], strides = [1, 1]} : vector<32x96xf32> to vector<16x32xf32>
    %184 = vector.extract_strided_slice %181 {offsets = [16, 64], sizes = [16, 32], strides = [1, 1]} : vector<32x96xf32> to vector<16x32xf32>
    %185 = vector.shape_cast %182 : vector<16x32xf32> to vector<2x8x32xf32>
    %186 = vector.shape_cast %183 : vector<16x32xf32> to vector<2x8x32xf32>
    %187 = vector.shape_cast %184 : vector<16x32xf32> to vector<2x8x32xf32>
    %188 = vector.extract_strided_slice %185 {offsets = [0, 0, 0], sizes = [2, 8, 8], strides = [1, 1, 1]} : vector<2x8x32xf32> to vector<2x8x8xf32>
    %189 = vector.extract_strided_slice %185 {offsets = [0, 0, 8], sizes = [2, 8, 8], strides = [1, 1, 1]} : vector<2x8x32xf32> to vector<2x8x8xf32>
    %190 = vector.extract_strided_slice %185 {offsets = [0, 0, 16], sizes = [2, 8, 8], strides = [1, 1, 1]} : vector<2x8x32xf32> to vector<2x8x8xf32>
    %191 = vector.extract_strided_slice %185 {offsets = [0, 0, 24], sizes = [2, 8, 8], strides = [1, 1, 1]} : vector<2x8x32xf32> to vector<2x8x8xf32>
    %192 = tpu.concatenate %188, %189, %190, %191 in 0 : vector<2x8x8xf32>, vector<2x8x8xf32>, vector<2x8x8xf32>, vector<2x8x8xf32> -> vector<8x8x8xf32>
    %193 = vector.extract_strided_slice %186 {offsets = [0, 0, 0], sizes = [2, 8, 8], strides = [1, 1, 1]} : vector<2x8x32xf32> to vector<2x8x8xf32>
    %194 = vector.extract_strided_slice %186 {offsets = [0, 0, 8], sizes = [2, 8, 8], strides = [1, 1, 1]} : vector<2x8x32xf32> to vector<2x8x8xf32>
    %195 = vector.extract_strided_slice %186 {offsets = [0, 0, 16], sizes = [2, 8, 8], strides = [1, 1, 1]} : vector<2x8x32xf32> to vector<2x8x8xf32>
    %196 = vector.extract_strided_slice %186 {offsets = [0, 0, 24], sizes = [2, 8, 8], strides = [1, 1, 1]} : vector<2x8x32xf32> to vector<2x8x8xf32>
    %197 = tpu.concatenate %193, %194, %195, %196 in 0 : vector<2x8x8xf32>, vector<2x8x8xf32>, vector<2x8x8xf32>, vector<2x8x8xf32> -> vector<8x8x8xf32>
    %198 = vector.extract_strided_slice %187 {offsets = [0, 0, 0], sizes = [2, 8, 8], strides = [1, 1, 1]} : vector<2x8x32xf32> to vector<2x8x8xf32>
    %199 = vector.extract_strided_slice %187 {offsets = [0, 0, 8], sizes = [2, 8, 8], strides = [1, 1, 1]} : vector<2x8x32xf32> to vector<2x8x8xf32>
    %200 = vector.extract_strided_slice %187 {offsets = [0, 0, 16], sizes = [2, 8, 8], strides = [1, 1, 1]} : vector<2x8x32xf32> to vector<2x8x8xf32>
    %201 = vector.extract_strided_slice %187 {offsets = [0, 0, 24], sizes = [2, 8, 8], strides = [1, 1, 1]} : vector<2x8x32xf32> to vector<2x8x8xf32>
    %202 = tpu.concatenate %198, %199, %200, %201 in 0 : vector<2x8x8xf32>, vector<2x8x8xf32>, vector<2x8x8xf32>, vector<2x8x8xf32> -> vector<8x8x8xf32>
    "tpu.trace_start"() <{level = 10 : i32, message = "gqd,gkd->gqk"}> : () -> ()
    %cst_62 = arith.constant dense<0.000000e+00> : vector<8x8x8xf32>
    %203 = tpu.matmul %192, %197, %cst_62 {dimension_numbers = #tpu.dot_dimension_numbers<[2], [2], [1], [1], [0, 0, 0, 1, 1, 1], [0], [0]>} : vector<8x8x8xf32>, vector<8x8x8xf32>, vector<8x8x8xf32> -> vector<8x8x8xf32>
    "tpu.trace_stop"() : () -> ()
    %cst_63 = arith.constant dense<0xFF800000> : vector<8x8xf32>
    %204 = vector.multi_reduction <maximumf>, %203, %cst_63 [2] : vector<8x8x8xf32> to vector<8x8xf32>
    %205 = vector.shape_cast %204 : vector<8x8xf32> to vector<8x8x1xf32>
    %206 = vector.broadcast %205 : vector<8x8x1xf32> to vector<8x8x8xf32>
    %207 = arith.subf %203, %206 : vector<8x8x8xf32>
    %208 = math.exp %207 : vector<8x8x8xf32>
    %cst_64 = arith.constant dense<0.000000e+00> : vector<8x8xf32>
    %209 = vector.multi_reduction <add>, %208, %cst_64 [2] : vector<8x8x8xf32> to vector<8x8xf32>
    %210 = vector.shape_cast %209 : vector<8x8xf32> to vector<8x8x1xf32>
    %211 = tpu.reciprocal %210 {approx = true} : vector<8x8x1xf32> -> vector<8x8x1xf32>
    %212 = vector.broadcast %211 : vector<8x8x1xf32> to vector<8x8x8xf32>
    %213 = arith.mulf %208, %212 : vector<8x8x8xf32>
    "tpu.trace_start"() <{level = 10 : i32, message = "gqk,gkd->gqd"}> : () -> ()
    %cst_65 = arith.constant dense<0.000000e+00> : vector<8x8x8xf32>
    %214 = tpu.matmul %213, %202, %cst_65 {dimension_numbers = #tpu.dot_dimension_numbers<[2], [1], [1], [2], [0, 0, 0, 1, 1, 2], [0], [0]>} : vector<8x8x8xf32>, vector<8x8x8xf32>, vector<8x8x8xf32> -> vector<8x8x8xf32>
    "tpu.trace_stop"() : () -> ()
    %215 = vector.extract_strided_slice %214 {offsets = [0, 0, 0], sizes = [2, 8, 8], strides = [1, 1, 1]} : vector<8x8x8xf32> to vector<2x8x8xf32>
    %216 = vector.extract_strided_slice %214 {offsets = [2, 0, 0], sizes = [2, 8, 8], strides = [1, 1, 1]} : vector<8x8x8xf32> to vector<2x8x8xf32>
    %217 = vector.extract_strided_slice %214 {offsets = [4, 0, 0], sizes = [2, 8, 8], strides = [1, 1, 1]} : vector<8x8x8xf32> to vector<2x8x8xf32>
    %218 = vector.extract_strided_slice %214 {offsets = [6, 0, 0], sizes = [2, 8, 8], strides = [1, 1, 1]} : vector<8x8x8xf32> to vector<2x8x8xf32>
    %219 = tpu.concatenate %215, %216, %217, %218 in 2 : vector<2x8x8xf32>, vector<2x8x8xf32>, vector<2x8x8xf32>, vector<2x8x8xf32> -> vector<2x8x32xf32>
    %220 = vector.shape_cast %219 : vector<2x8x32xf32> to vector<16x32xf32>
    %cst_66 = arith.constant dense<0.000000e+00> : vector<16x32xf32>
    %221 = tpu.matmul %220, %176, %cst_66 {dimension_numbers = #tpu.dot_dimension_numbers<[1], [0], [0], [1], [0, 0, 1, 1], [], []>} : vector<16x32xf32>, vector<32x32xf32>, vector<16x32xf32> -> vector<16x32xf32>
    %222 = vector.broadcast %177 : vector<1x32xf32> to vector<16x32xf32>
    %223 = arith.addf %221, %222 : vector<16x32xf32>
    %224 = arith.addf %173, %223 : vector<16x32xf32>
    %c11 = arith.constant 11 : index
    %c0_67 = arith.constant 0 : index
    %225 = vector.load %arg5[%c11, %c0_67] : memref<16x128xf32, #tpu.memory_space<vmem>>, vector<1x32xf32>
    %c12 = arith.constant 12 : index
    %c0_68 = arith.constant 0 : index
    %226 = vector.load %arg5[%c12, %c0_68] : memref<16x128xf32, #tpu.memory_space<vmem>>, vector<1x32xf32>
    %cst_69 = arith.constant dense<0.000000e+00> : vector<16xf32>
    %227 = vector.multi_reduction <add>, %224, %cst_69 [1] : vector<16x32xf32> to vector<16xf32>
    %228 = vector.shape_cast %227 : vector<16xf32> to vector<16x1xf32>
    %cst_70 = arith.constant 3.200000e+01 : f32
    %229 = vector.broadcast %cst_70 : f32 to vector<16x1xf32>
    %230 = arith.divf %228, %229 : vector<16x1xf32>
    %231 = vector.broadcast %230 : vector<16x1xf32> to vector<16x32xf32>
    %232 = arith.subf %224, %231 : vector<16x32xf32>
    %233 = arith.mulf %232, %232 : vector<16x32xf32>
    %cst_71 = arith.constant dense<0.000000e+00> : vector<16xf32>
    %234 = vector.multi_reduction <add>, %233, %cst_71 [1] : vector<16x32xf32> to vector<16xf32>
    %235 = vector.shape_cast %234 : vector<16xf32> to vector<16x1xf32>
    %cst_72 = arith.constant 3.200000e+01 : f32
    %236 = vector.broadcast %cst_72 : f32 to vector<16x1xf32>
    %237 = arith.divf %235, %236 : vector<16x1xf32>
    %238 = vector.broadcast %230 : vector<16x1xf32> to vector<16x32xf32>
    %239 = arith.subf %224, %238 : vector<16x32xf32>
    %cst_73 = arith.constant 9.99999974E-6 : f32
    %240 = vector.broadcast %cst_73 : f32 to vector<16x1xf32>
    %241 = arith.addf %237, %240 : vector<16x1xf32>
    %242 = math.rsqrt %241 : vector<16x1xf32>
    %243 = vector.broadcast %242 : vector<16x1xf32> to vector<16x32xf32>
    %244 = arith.mulf %239, %243 : vector<16x32xf32>
    %245 = vector.broadcast %225 : vector<1x32xf32> to vector<16x32xf32>
    %246 = arith.mulf %244, %245 : vector<16x32xf32>
    %247 = vector.broadcast %226 : vector<1x32xf32> to vector<16x32xf32>
    %248 = arith.addf %246, %247 : vector<16x32xf32>
    %c0_74 = arith.constant 0 : index
    %c0_75 = arith.constant 0 : index
    %249 = vector.load %arg6[%c0_74, %c0_75] : memref<16x32xf32, #tpu.memory_space<vmem>>, vector<16x32xf32>
    tpu.vector_store %arg6[%c0_74, %c0_75], %248 {strides = array<i32>} : memref<16x32xf32, #tpu.memory_space<vmem>>, vector<16x32xf32>,
    return
  }
}

</mosaic_0001>

<llo_original>
// kernel: forward.1
$region0: #{forward.1}
  #allocation0 [shape = 'u32[]', space=smem, size = 0x4, offset = 0x4, fixed_abs, tag = 'smem constant byte address 0x4 - core index']
  #allocation1 [shape = 'u32[144,128]{1,0:T(1,128)}', space=vmem, size = 0x12000, scoped, tag = 'internal scratch']
  %s0 = inlined_call_operand.vmem [shape: f32[2,8,32], index: 0, kind: input, shape index: {}]
  %s1 = inlined_call_operand.vmem [shape: f32[2,8,256], index: 1, kind: input, shape index: {}]
  %s2 = inlined_call_operand.vmem [shape: f32[2,8,32], index: 2, kind: input, shape index: {}]
  %s3 = inlined_call_operand.vmem [shape: f32[1,256], index: 3, kind: input, shape index: {}]
  %s4 = inlined_call_operand.vmem [shape: f32[224,96], index: 4, kind: input, shape index: {}]
  %s5 = inlined_call_operand.vmem [shape: f32[16,128], index: 5, kind: input, shape index: {}]
  %s6 = inlined_call_operand.hbm [shape: f32[16,32], index: 6, kind: output, shape index: {}]
  %s7 = sld [smem:[#allocation0]]
  $region34: #{forward.1} parent=0
    _
  %s9 = ssub.s32 1, %s7
  %s10 = scalar_select 0, %s9, %s7
  $region1: #{forward.1} parent=0
    #allocation2 [shape = 'u8[8192]{0}', space=vmem, size = 0x2000, scoped, tag = 'output window, operand 0, single buffered']
    #allocation3 [shape = 's32[1]{0}', space=sflag, size = 0x4, scoped, tag = 'scoped memory for forward.1']
    %11 = vsyncpa [#allocation3], 0
    // Predicated region
    $region2: #{forward.1} parent=1 // pred_check
      _
    $region3: #{forward.1} parent=1 // pred_check_branch
      %13 = sbr.rel (0) target = $region5
    $region4: #{forward.1} parent=1 // pred_region
      _
    $region5: #{forward.1} parent=1 // pred_fallthru
      _
    // Predicated region
    $region6: #{forward.1} parent=1 // pred_check
      _
    $region7: #{forward.1} parent=1 // pred_check_branch
      %15 = sbr.rel (0) target = $region9
    $region8: #{forward.1} parent=1 // pred_region
      _
    $region9: #{forward.1} parent=1 // pred_fallthru
      _
    // Predicated region
    $region10: #{forward.1} parent=1 // pred_check
      _
    $region11: #{forward.1} parent=1 // pred_check_branch
      %17 = sbr.rel (0) target = $region13
    $region12: #{forward.1} parent=1 // pred_region
      _
    $region13: #{forward.1} parent=1 // pred_fallthru
      _
    // Predicated region
    $region14: #{forward.1} parent=1 // pred_check
      _
    $region15: #{forward.1} parent=1 // pred_check_branch
      %19 = sbr.rel (0) target = $region17
    $region16: #{forward.1} parent=1 // pred_region
      _
    $region17: #{forward.1} parent=1 // pred_fallthru
      _
    // Predicated region
    $region18: #{forward.1} parent=1 // pred_check
      _
    $region19: #{forward.1} parent=1 // pred_check_branch
      %21 = sbr.rel (0) target = $region21
    $region20: #{forward.1} parent=1 // pred_region
      _
    $region21: #{forward.1} parent=1 // pred_fallthru
      _
    // Predicated region
    $region22: #{forward.1} parent=1 // pred_check
      _
    $region23: #{forward.1} parent=1 // pred_check_branch
      %23 = sbr.rel (0) target = $region25
    $region24: #{forward.1} parent=1 // pred_region
      _
    $region25: #{forward.1} parent=1 // pred_fallthru
      _
    %v24 = vld [vmem:[%s1] sm:$0xff]
    %v25 = vld [vmem:[%s1 + $0x8] sm:$0xff]
    %v26 = vld [vmem:[%s1 + $0x10] sm:$0xff]
    %v27 = vld [vmem:[%s1 + $0x18] sm:$0xff]
    %v28 = vld [vmem:[%s3] sm:$0x3]
    %v30 = vlaneseq
    %v31 = vshrl.u32 %v30, 7
    %v32 = vsub.s32 0, %v31
    %v33 = vrot.slane %v28, %v32
    %v34 = vlaneseq
    %v35 = vshrl.u32 %v34, 7
    %v36 = vsub.s32 1, %v35
    %v37 = vrot.slane %v28, %v36
    %v40 = vmul.f32 %v24, %v33
    %v41 = vmul.f32 %v25, %v37
    %v42 = vmul.f32 %v26, %v33
    %v43 = vmul.f32 %v27, %v37
    %v44 = vadd.f32 %v40, %v41
    %45 = vadd.xlane.f32.xlu0 %v44
    %v46 = vpop.xlane.xlu0 %45
    %v47 = vadd.f32 %v42, %v43
    %48 = vadd.xlane.f32.xlu0 %v47
    %v49 = vpop.xlane.xlu0 %48
    %v50 = vrot.slane %v46, 4
    %v51 = vmax.f32 %v46, %v50
    %v52 = vrot.slane %v51, 2
    %v53 = vmax.f32 %v51, %v52
    %v54 = vrot.slane %v53, 1
    %v55 = vmax.f32 %v53, %v54
    %v56 = vrot.slane %v49, 4
    %v57 = vmax.f32 %v49, %v56
    %v58 = vrot.slane %v57, 2
    %v59 = vmax.f32 %v57, %v58
    %v60 = vrot.slane %v59, 1
    %v61 = vmax.f32 %v59, %v60
    %v62 = vsub.f32 %v46, %v55
    %v63 = vsub.f32 %v49, %v61
    %v64 = vmul.f32 %v62, 1.442695
    %v65 = vpow.pop %v64
    %v66 = vmul.f32 %v63, 1.442695
    %v67 = vpow.pop %v66
    %v68 = vrot.slane %v65, 4
    %v69 = vadd.f32 %v65, %v68
    %v70 = vrot.slane %v69, 2
    %v71 = vadd.f32 %v69, %v70
    %v72 = vrot.slane %v71, 1
    %v73 = vadd.f32 %v71, %v72
    %v74 = vrot.slane %v67, 4
    %v75 = vadd.f32 %v67, %v74
    %v76 = vrot.slane %v75, 2
    %v77 = vadd.f32 %v75, %v76
    %v78 = vrot.slane %v77, 1
    %v79 = vadd.f32 %v77, %v78
    %v80 = vrcp.pop %v73
    %v81 = vrcp.pop %v79
    %v82 = vmul.f32 %v65, %v80
    %v83 = vmul.f32 %v67, %v81
    %v84 = vmul.f32 %v82, %v24
    %v85 = vmul.f32 %v82, %v25
    %v86 = vmul.f32 %v83, %v26
    %v87 = vmul.f32 %v83, %v27
    %v88 = vrot.slane %v84, 4
    %v89 = vadd.f32 %v84, %v88
    %v90 = vrot.slane %v89, 2
    %v91 = vadd.f32 %v89, %v90
    %v92 = vrot.slane %v91, 1
    %v93 = vadd.f32 %v91, %v92
    %v94 = vrot.slane %v85, 4
    %v95 = vadd.f32 %v85, %v94
    %v96 = vrot.slane %v95, 2
    %v97 = vadd.f32 %v95, %v96
    %v98 = vrot.slane %v97, 1
    %v99 = vadd.f32 %v97, %v98
    %v100 = vrot.slane %v86, 4
    %v101 = vadd.f32 %v86, %v100
    %v102 = vrot.slane %v101, 2
    %v103 = vadd.f32 %v101, %v102
    %v104 = vrot.slane %v103, 1
    %v105 = vadd.f32 %v103, %v104
    %v106 = vrot.slane %v87, 4
    %v107 = vadd.f32 %v87, %v106
    %v108 = vrot.slane %v107, 2
    %v109 = vadd.f32 %v107, %v108
    %v110 = vrot.slane %v109, 1
    %v111 = vadd.f32 %v109, %v110
    %v112 = vtanh.pop %v93
    %v113 = vtanh.pop %v99
    %v114 = vtanh.pop %v105
    %v115 = vtanh.pop %v111
    %v116 = vlaneseq
    %v117 = vand.u32 %v116, 127
    %v118 = vadd.s32 %v117, 128
    %v119 = vlaneseq
    %v120 = vshrl.u32 %v119, 7
    %v121 = vmul.u32 %v120, 32
    %vm122 = vcmp.ge.s32.totalorder %v117, %v121
    %vm123 = vcmp.ge.s32.totalorder %v118, %v121
    %v124 = vadd.s32 %v121, 32
    %vm125 = vcmp.lt.s32.totalorder %v117, %v124
    %vm126 = vcmp.lt.s32.totalorder %v118, %v124
    %vm127 = vmand %vm122, %vm125
    %vm128 = vmand %vm123, %vm126
    %v129 = vsel %vm127, 1.0, 0.0
    %v130 = vsel %vm128, 1.0, 0.0
    %v131 = vadd.s32 %v120, 8
    %v132 = vadd.s32 %v120, 16
    %v133 = vadd.s32 %v120, 24
    %vm134 = vcmp.eq.s32.totalorder %v120, %v117
    %vm135 = vcmp.eq.s32.totalorder %v131, %v117
    %vm136 = vcmp.eq.s32.totalorder %v132, %v117
    %vm137 = vcmp.eq.s32.totalorder %v133, %v117
    %v138 = vsel %vm134, 1.0, 0.0
    %v139 = vsel %vm135, 1.0, 0.0
    %v140 = vsel %vm136, 1.0, 0.0
    %v141 = vsel %vm137, 1.0, 0.0
    %v142 = vmul.f32 %v129, %v112
    %v143 = vmul.f32 %v130, %v113
    %144 = vmatprep.subr.mxu0 0.0
    %145 = vmatpush1.msra.mxu0 %v138
    %146 = vmatprep.subr.mxu0 0.0
    %147 = vmatpush1.msra.mxu0 %v139
    %148 = vmatprep.subr.mxu0 0.0
    %149 = vmatpush1.msra.mxu0 %v140
    %150 = vmatprep.subr.mxu0 0.0
    %151 = vmatpush1.msra.mxu0 %v141
    %152 = vmatprep.subr.mxu0 0.0
    %153 = vmatpush1.msra.mxu0 %v138
    %154 = vmatprep.subr.mxu0 0.0
    %155 = vmatpush1.msra.mxu0 %v139
    %156 = vmatprep.subr.mxu0 0.0
    %157 = vmatpush1.msra.mxu0 %v140
    %158 = vmatprep.subr.mxu0 0.0
    %159 = vmatpush1.msra.mxu0 %v141
    %160 = vmatprep.subr.mxu0 0.0
    %161 = vmatpush1.msra.mxu0 %v138
    %162 = vmatprep.subr.mxu0 0.0
    %163 = vmatpush1.msra.mxu0 %v139
    %164 = vmatprep.subr.mxu0 0.0
    %165 = vmatpush1.msra.mxu0 %v140
    %166 = vmatprep.subr.mxu0 0.0
    %167 = vmatpush1.msra.mxu0 %v141
    %168 = vmatprep.subr.mxu0 0.0
    %169 = vmatpush1.msra.mxu0 %v138
    %170 = vmatprep.subr.mxu0 0.0
    %171 = vmatpush1.msra.mxu0 %v139
    %172 = vmatprep.subr.mxu0 0.0
    %173 = vmatpush1.msra.mxu0 %v140
    %174 = vmatprep.subr.mxu0 0.0
    %175 = vmatpush1.msra.mxu0 %v141
    %176 = vmatprep.subr.mxu0 0.0
    %177 = vmatpush1.msra.mxu0 %v138
    %178 = vmatprep.subr.mxu0 0.0
    %179 = vmatpush1.msra.mxu0 %v139
    %180 = vmatprep.subr.mxu0 0.0
    %181 = vmatpush1.msra.mxu0 %v140
    %182 = vmatprep.subr.mxu0 0.0
    %183 = vmatpush1.msra.mxu0 %v141
    %184 = vmatprep.subr.mxu0 0.0
    %185 = vmatpush1.msra.mxu0 %v138
    %186 = vmatprep.subr.mxu0 0.0
    %187 = vmatpush1.msra.mxu0 %v139
    %188 = vmatprep.subr.mxu0 0.0
    %189 = vmatpush1.msra.mxu0 %v140
    %190 = vmatprep.subr.mxu0 0.0
    %191 = vmatpush1.msra.mxu0 %v141
    %192 = vmatprep.subr.mxu0 0.0
    %193 = vmatpush1.msra.mxu0 %v138
    %194 = vmatprep.subr.mxu0 0.0
    %195 = vmatpush1.msra.mxu0 %v139
    %196 = vmatprep.subr.mxu0 0.0
    %197 = vmatpush1.msra.mxu0 %v140
    %198 = vmatprep.subr.mxu0 0.0
    %199 = vmatpush1.msra.mxu0 %v141
    %200 = vmatprep.subr.mxu0 0.0
    %201 = vmatpush1.msra.mxu0 %v138
    %202 = vmatprep.subr.mxu0 0.0
    %203 = vmatpush1.msra.mxu0 %v139
    %204 = vmatprep.subr.mxu0 0.0
    %205 = vmatpush1.msra.mxu0 %v140
    %206 = vmatprep.subr.mxu0 0.0
    %207 = vmatpush1.msra.mxu0 %v141
    %208 = vmatprep.mubr.f32.mxu0 %v143
    %209 = vmatmul.mubr.f32.gmra.mrb[0].mxu0 %v142
    %v210 = vpop.f32.mrb[0].mxu0
    %v211 = vadd.f32 0.0, %v210
    %v212 = vpop.f32.mrb[0].mxu0
    %213 = vdwg.mxu0
    %v214 = vmul.f32 %v129, %v114
    %v215 = vmul.f32 %v130, %v115
    %216 = vmatprep.subr.mxu0 0.0
    %217 = vmatpush1.msra.mxu0 %v138
    %218 = vmatprep.subr.mxu0 0.0
    %219 = vmatpush1.msra.mxu0 %v139
    %220 = vmatprep.subr.mxu0 0.0
    %221 = vmatpush1.msra.mxu0 %v140
    %222 = vmatprep.subr.mxu0 0.0
    %223 = vmatpush1.msra.mxu0 %v141
    %224 = vmatprep.subr.mxu0 0.0
    %225 = vmatpush1.msra.mxu0 %v138
    %226 = vmatprep.subr.mxu0 0.0
    %227 = vmatpush1.msra.mxu0 %v139
    %228 = vmatprep.subr.mxu0 0.0
    %229 = vmatpush1.msra.mxu0 %v140
    %230 = vmatprep.subr.mxu0 0.0
    %231 = vmatpush1.msra.mxu0 %v141
    %232 = vmatprep.subr.mxu0 0.0
    %233 = vmatpush1.msra.mxu0 %v138
    %234 = vmatprep.subr.mxu0 0.0
    %235 = vmatpush1.msra.mxu0 %v139
    %236 = vmatprep.subr.mxu0 0.0
    %237 = vmatpush1.msra.mxu0 %v140
    %238 = vmatprep.subr.mxu0 0.0
    %239 = vmatpush1.msra.mxu0 %v141
    %240 = vmatprep.subr.mxu0 0.0
    %241 = vmatpush1.msra.mxu0 %v138
    %242 = vmatprep.subr.mxu0 0.0
    %243 = vmatpush1.msra.mxu0 %v139
    %244 = vmatprep.subr.mxu0 0.0
    %245 = vmatpush1.msra.mxu0 %v140
    %246 = vmatprep.subr.mxu0 0.0
    %247 = vmatpush1.msra.mxu0 %v141
    %248 = vmatprep.subr.mxu0 0.0
    %249 = vmatpush1.msra.mxu0 %v138
    %250 = vmatprep.subr.mxu0 0.0
    %251 = vmatpush1.msra.mxu0 %v139
    %252 = vmatprep.subr.mxu0 0.0
    %253 = vmatpush1.msra.mxu0 %v140
    %254 = vmatprep.subr.mxu0 0.0
    %255 = vmatpush1.msra.mxu0 %v141
    %256 = vmatprep.subr.mxu0 0.0
    %257 = vmatpush1.msra.mxu0 %v138
    %258 = vmatprep.subr.mxu0 0.0
    %259 = vmatpush1.msra.mxu0 %v139
    %260 = vmatprep.subr.mxu0 0.0
    %261 = vmatpush1.msra.mxu0 %v140
    %262 = vmatprep.subr.mxu0 0.0
    %263 = vmatpush1.msra.mxu0 %v141
    %264 = vmatprep.subr.mxu0 0.0
    %265 = vmatpush1.msra.mxu0 %v138
    %266 = vmatprep.subr.mxu0 0.0
    %267 = vmatpush1.msra.mxu0 %v139
    %268 = vmatprep.subr.mxu0 0.0
    %269 = vmatpush1.msra.mxu0 %v140
    %270 = vmatprep.subr.mxu0 0.0
    %271 = vmatpush1.msra.mxu0 %v141
    %272 = vmatprep.subr.mxu0 0.0
    %273 = vmatpush1.msra.mxu0 %v138
    %274 = vmatprep.subr.mxu0 0.0
    %275 = vmatpush1.msra.mxu0 %v139
    %276 = vmatprep.subr.mxu0 0.0
    %277 = vmatpush1.msra.mxu0 %v140
    %278 = vmatprep.subr.mxu0 0.0
    %279 = vmatpush1.msra.mxu0 %v141
    %280 = vmatprep.mubr.f32.mxu0 %v215
    %281 = vmatmul.mubr.f32.gmra.mrb[0].mxu0 %v214
    %v282 = vpop.f32.mrb[0].mxu0
    %v283 = vadd.f32 0.0, %v282
    %v284 = vpop.f32.mrb[0].mxu0
    %285 = vdwg.mxu0
    %v286 = vld [vmem:[%s0] sm:$0xff]
    %v287 = vld [vmem:[%s0 + $0x8] sm:$0xff]
    %v288 = vld [vmem:[%s4] sm:$0xff]
    %v289 = vld [vmem:[%s4 + $0x8] sm:$0xff]
    %v290 = vld [vmem:[%s4 + $0x10] sm:$0xff]
    %v291 = vld [vmem:[%s4 + $0x18] sm:$0xff]
    %v292 = vld [vmem:[%s5] sm:$0x1]
    %v293 = vld [vmem:[%s4 + $0x20] sm:$0xff]
    %v294 = vld [vmem:[%s4 + $0x28] sm:$0xff]
    %v295 = vld [vmem:[%s4 + $0x30] sm:$0xff]
    %v296 = vld [vmem:[%s4 + $0x38] sm:$0xff]
    %v297 = vld [vmem:[%s5 + $0x1] sm:$0x1]
    %v298 = vlaneseq
    %v299 = vshrl.u32 %v298, 7
    %v300 = vsub.s32 0, %v299
    %v301 = vrot.slane %v292, %v300
    %vm302 = vcmask 261120
    %v304 = vsel %vm302, %v286, 0
    %v307 = vsel %vm302, %v287, 0
    %309 = vmatprep.subr.mxu0 0.0
    %310 = vmatpush1.msra.mxu0 %v288
    %311 = vmatprep.subr.mxu0 0.0
    %312 = vmatpush1.msra.mxu0 %v289
    %313 = vmatprep.subr.mxu0 0.0
    %314 = vmatpush1.msra.mxu0 %v290
    %315 = vmatprep.subr.mxu0 0.0
    %316 = vmatpush1.msra.mxu0 %v291
    %317 = vmatprep.subr.mxu0 0.0
    %318 = vmatpush1.msra.mxu0 0.0
    %319 = vmatprep.subr.mxu0 0.0
    %320 = vmatpush1.msra.mxu0 0.0
    %321 = vmatprep.subr.mxu0 0.0
    %322 = vmatpush1.msra.mxu0 0.0
    %323 = vmatprep.subr.mxu0 0.0
    %324 = vmatpush1.msra.mxu0 0.0
    %325 = vmatprep.subr.mxu0 0.0
    %326 = vmatpush1.msra.mxu0 0.0
    %327 = vmatprep.subr.mxu0 0.0
    %328 = vmatpush1.msra.mxu0 0.0
    %329 = vmatprep.subr.mxu0 0.0
    %330 = vmatpush1.msra.mxu0 0.0
    %331 = vmatprep.subr.mxu0 0.0
    %332 = vmatpush1.msra.mxu0 0.0
    %333 = vmatprep.subr.mxu0 0.0
    %334 = vmatpush1.msra.mxu0 0.0
    %335 = vmatprep.subr.mxu0 0.0
    %336 = vmatpush1.msra.mxu0 0.0
    %337 = vmatprep.subr.mxu0 0.0
    %338 = vmatpush1.msra.mxu0 0.0
    %339 = vmatprep.subr.mxu0 0.0
    %340 = vmatpush1.msra.mxu0 0.0
    %341 = vmatprep.subr.mxu0 0.0
    %342 = vmatpush1.msra.mxu0 0.0
    %343 = vmatprep.subr.mxu0 0.0
    %344 = vmatpush1.msra.mxu0 0.0
    %345 = vmatprep.subr.mxu0 0.0
    %346 = vmatpush1.msra.mxu0 0.0
    %347 = vmatprep.subr.mxu0 0.0
    %348 = vmatpush1.msra.mxu0 0.0
    %349 = vmatprep.subr.mxu0 0.0
    %350 = vmatpush1.msra.mxu0 0.0
    %351 = vmatprep.subr.mxu0 0.0
    %352 = vmatpush1.msra.mxu0 0.0
    %353 = vmatprep.subr.mxu0 0.0
    %354 = vmatpush1.msra.mxu0 0.0
    %355 = vmatprep.subr.mxu0 0.0
    %356 = vmatpush1.msra.mxu0 0.0
    %357 = vmatprep.subr.mxu0 0.0
    %358 = vmatpush1.msra.mxu0 0.0
    %359 = vmatprep.subr.mxu0 0.0
    %360 = vmatpush1.msra.mxu0 0.0
    %361 = vmatprep.subr.mxu0 0.0
    %362 = vmatpush1.msra.mxu0 0.0
    %363 = vmatprep.subr.mxu0 0.0
    %364 = vmatpush1.msra.mxu0 0.0
    %365 = vmatprep.subr.mxu0 0.0
    %366 = vmatpush1.msra.mxu0 0.0
    %367 = vmatprep.subr.mxu0 0.0
    %368 = vmatpush1.msra.mxu0 0.0
    %369 = vmatprep.subr.mxu0 0.0
    %370 = vmatpush1.msra.mxu0 0.0
    %371 = vmatprep.subr.mxu0 0.0
    %372 = vmatpush1.msra.mxu0 0.0
    %373 = vmatprep.mubr.f32.mxu0 0.0
    %374 = vmatmul.mubr.f32.gmra.mrb[0].mxu0 %v304
    %v375 = vpop.f32.mrb[0].mxu0
    %v376 = vadd.f32 %v301, %v375
    %v377 = vpop.f32.mrb[0].mxu0
    %378 = vmatprep.mubr.f32.mxu0 0.0
    %379 = vmatmul.mubr.f32.gmra.mrb[0].mxu0 %v307
    %v380 = vpop.f32.mrb[0].mxu0
    %v381 = vadd.f32 %v301, %v380
    %v382 = vpop.f32.mrb[0].mxu0
    %383 = vdwg.mxu0
    %386 = vrot.lane.b32.xlu0 %v376, 120
    %v387 = vpop.permute.xlu0 %386
    %388 = vrot.lane.b32.xlu0 %v381, 120
    %v389 = vpop.permute.xlu0 %388
    %390 = vrot.lane.b32.xlu0 %v376, 112
    %v391 = vpop.permute.xlu0 %390
    %392 = vrot.lane.b32.xlu0 %v381, 112
    %v393 = vpop.permute.xlu0 %392
    %394 = vrot.lane.b32.xlu0 %v376, 104
    %v395 = vpop.permute.xlu0 %394
    %396 = vrot.lane.b32.xlu0 %v381, 104
    %v397 = vpop.permute.xlu0 %396
    %398 = vrot.lane.b32.xlu0 %v376, 96
    %v399 = vpop.permute.xlu0 %398
    %vm400 = vcmask 64512
    %v401 = vsel %vm400, %v376, 0
    %v403 = vsel %vm400, %v399, 0
    %405 = vmatprep.subr.mxu0 0.0
    %406 = vmatpush1.xpose.msra.mxu0 %v403
    %407 = vmatprep.subr.mxu0 0.0
    %408 = vmatpush1.xpose.msra.mxu0 0.0
    %409 = vmatprep.subr.mxu0 0.0
    %410 = vmatpush1.xpose.msra.mxu0 0.0
    %411 = vmatprep.subr.mxu0 0.0
    %412 = vmatpush1.xpose.msra.mxu0 0.0
    %413 = vmatprep.subr.mxu0 0.0
    %414 = vmatpush1.xpose.msra.mxu0 0.0
    %415 = vmatprep.subr.mxu0 0.0
    %416 = vmatpush1.xpose.msra.mxu0 0.0
    %417 = vmatprep.subr.mxu0 0.0
    %418 = vmatpush1.xpose.msra.mxu0 0.0
    %419 = vmatprep.subr.mxu0 0.0
    %420 = vmatpush1.xpose.msra.mxu0 0.0
    %421 = vmatprep.subr.mxu0 0.0
    %422 = vmatpush1.xpose.msra.mxu0 0.0
    %423 = vmatprep.subr.mxu0 0.0
    %424 = vmatpush1.xpose.msra.mxu0 0.0
    %425 = vmatprep.subr.mxu0 0.0
    %426 = vmatpush1.xpose.msra.mxu0 0.0
    %427 = vmatprep.subr.mxu0 0.0
    %428 = vmatpush1.xpose.msra.mxu0 0.0
    %429 = vmatprep.subr.mxu0 0.0
    %430 = vmatpush1.xpose.msra.mxu0 0.0
    %431 = vmatprep.subr.mxu0 0.0
    %432 = vmatpush1.xpose.msra.mxu0 0.0
    %433 = vmatprep.subr.mxu0 0.0
    %434 = vmatpush1.xpose.msra.mxu0 0.0
    %435 = vmatprep.subr.mxu0 0.0
    %436 = vmatpush1.xpose.msra.mxu0 0.0
    %437 = vmatprep.subr.mxu0 0.0
    %438 = vmatpush1.xpose.msra.mxu0 0.0
    %439 = vmatprep.subr.mxu0 0.0
    %440 = vmatpush1.xpose.msra.mxu0 0.0
    %441 = vmatprep.subr.mxu0 0.0
    %442 = vmatpush1.xpose.msra.mxu0 0.0
    %443 = vmatprep.subr.mxu0 0.0
    %444 = vmatpush1.xpose.msra.mxu0 0.0
    %445 = vmatprep.subr.mxu0 0.0
    %446 = vmatpush1.xpose.msra.mxu0 0.0
    %447 = vmatprep.subr.mxu0 0.0
    %448 = vmatpush1.xpose.msra.mxu0 0.0
    %449 = vmatprep.subr.mxu0 0.0
    %450 = vmatpush1.xpose.msra.mxu0 0.0
    %451 = vmatprep.subr.mxu0 0.0
    %452 = vmatpush1.xpose.msra.mxu0 0.0
    %453 = vmatprep.subr.mxu0 0.0
    %454 = vmatpush1.xpose.msra.mxu0 0.0
    %455 = vmatprep.subr.mxu0 0.0
    %456 = vmatpush1.xpose.msra.mxu0 0.0
    %457 = vmatprep.subr.mxu0 0.0
    %458 = vmatpush1.xpose.msra.mxu0 0.0
    %459 = vmatprep.subr.mxu0 0.0
    %460 = vmatpush1.xpose.msra.mxu0 0.0
    %461 = vmatprep.subr.mxu0 0.0
    %462 = vmatpush1.xpose.msra.mxu0 0.0
    %463 = vmatprep.subr.mxu0 0.0
    %464 = vmatpush1.xpose.msra.mxu0 0.0
    %465 = vmatprep.subr.mxu0 0.0
    %466 = vmatpush1.xpose.msra.mxu0 0.0
    %467 = vmatprep.subr.mxu0 0.0
    %468 = vmatpush1.xpose.msra.mxu0 0.0
    %469 = vmatprep.mubr.f32.mxu0 0.0
    %470 = vmatmul.mubr.f32.gmra.mrb[0].mxu0 %v401
    %v471 = vpop.f32.mrb[0].mxu0
    %v472 = vadd.f32 0.0, %v471
    %v473 = vpop.f32.mrb[0].mxu0
    %474 = vdwg.mxu0
    %475 = vrot.lane.b32.xlu0 %v381, 96
    %v476 = vpop.permute.xlu0 %475
    %v477 = vsel %vm400, %v381, 0
    %v479 = vsel %vm400, %v476, 0
    %481 = vmatprep.subr.mxu0 0.0
    %482 = vmatpush1.xpose.msra.mxu0 %v479
    %483 = vmatprep.subr.mxu0 0.0
    %484 = vmatpush1.xpose.msra.mxu0 0.0
    %485 = vmatprep.subr.mxu0 0.0
    %486 = vmatpush1.xpose.msra.mxu0 0.0
    %487 = vmatprep.subr.mxu0 0.0
    %488 = vmatpush1.xpose.msra.mxu0 0.0
    %489 = vmatprep.subr.mxu0 0.0
    %490 = vmatpush1.xpose.msra.mxu0 0.0
    %491 = vmatprep.subr.mxu0 0.0
    %492 = vmatpush1.xpose.msra.mxu0 0.0
    %493 = vmatprep.subr.mxu0 0.0
    %494 = vmatpush1.xpose.msra.mxu0 0.0
    %495 = vmatprep.subr.mxu0 0.0
    %496 = vmatpush1.xpose.msra.mxu0 0.0
    %497 = vmatprep.subr.mxu0 0.0
    %498 = vmatpush1.xpose.msra.mxu0 0.0
    %499 = vmatprep.subr.mxu0 0.0
    %500 = vmatpush1.xpose.msra.mxu0 0.0
    %501 = vmatprep.subr.mxu0 0.0
    %502 = vmatpush1.xpose.msra.mxu0 0.0
    %503 = vmatprep.subr.mxu0 0.0
    %504 = vmatpush1.xpose.msra.mxu0 0.0
    %505 = vmatprep.subr.mxu0 0.0
    %506 = vmatpush1.xpose.msra.mxu0 0.0
    %507 = vmatprep.subr.mxu0 0.0
    %508 = vmatpush1.xpose.msra.mxu0 0.0
    %509 = vmatprep.subr.mxu0 0.0
    %510 = vmatpush1.xpose.msra.mxu0 0.0
    %511 = vmatprep.subr.mxu0 0.0
    %512 = vmatpush1.xpose.msra.mxu0 0.0
    %513 = vmatprep.subr.mxu0 0.0
    %514 = vmatpush1.xpose.msra.mxu0 0.0
    %515 = vmatprep.subr.mxu0 0.0
    %516 = vmatpush1.xpose.msra.mxu0 0.0
    %517 = vmatprep.subr.mxu0 0.0
    %518 = vmatpush1.xpose.msra.mxu0 0.0
    %519 = vmatprep.subr.mxu0 0.0
    %520 = vmatpush1.xpose.msra.mxu0 0.0
    %521 = vmatprep.subr.mxu0 0.0
    %522 = vmatpush1.xpose.msra.mxu0 0.0
    %523 = vmatprep.subr.mxu0 0.0
    %524 = vmatpush1.xpose.msra.mxu0 0.0
    %525 = vmatprep.subr.mxu0 0.0
    %526 = vmatpush1.xpose.msra.mxu0 0.0
    %527 = vmatprep.subr.mxu0 0.0
    %528 = vmatpush1.xpose.msra.mxu0 0.0
    %529 = vmatprep.subr.mxu0 0.0
    %530 = vmatpush1.xpose.msra.mxu0 0.0
    %531 = vmatprep.subr.mxu0 0.0
    %532 = vmatpush1.xpose.msra.mxu0 0.0
    %533 = vmatprep.subr.mxu0 0.0
    %534 = vmatpush1.xpose.msra.mxu0 0.0
    %535 = vmatprep.subr.mxu0 0.0
    %536 = vmatpush1.xpose.msra.mxu0 0.0
    %537 = vmatprep.subr.mxu0 0.0
    %538 = vmatpush1.xpose.msra.mxu0 0.0
    %539 = vmatprep.subr.mxu0 0.0
    %540 = vmatpush1.xpose.msra.mxu0 0.0
    %541 = vmatprep.subr.mxu0 0.0
    %542 = vmatpush1.xpose.msra.mxu0 0.0
    %543 = vmatprep.subr.mxu0 0.0
    %544 = vmatpush1.xpose.msra.mxu0 0.0
    %545 = vmatprep.mubr.f32.mxu0 0.0
    %546 = vmatmul.mubr.f32.gmra.mrb[0].mxu0 %v477
    %v547 = vpop.f32.mrb[0].mxu0
    %v548 = vadd.f32 0.0, %v547
    %v549 = vpop.f32.mrb[0].mxu0
    %550 = vdwg.mxu0
    %551 = vrot.lane.b32.xlu0 %v387, 96
    %v552 = vpop.permute.xlu0 %551
    %v553 = vsel %vm400, %v387, 0
    %v555 = vsel %vm400, %v552, 0
    %557 = vmatprep.subr.mxu0 0.0
    %558 = vmatpush1.xpose.msra.mxu0 %v555
    %559 = vmatprep.subr.mxu0 0.0
    %560 = vmatpush1.xpose.msra.mxu0 0.0
    %561 = vmatprep.subr.mxu0 0.0
    %562 = vmatpush1.xpose.msra.mxu0 0.0
    %563 = vmatprep.subr.mxu0 0.0
    %564 = vmatpush1.xpose.msra.mxu0 0.0
    %565 = vmatprep.subr.mxu0 0.0
    %566 = vmatpush1.xpose.msra.mxu0 0.0
    %567 = vmatprep.subr.mxu0 0.0
    %568 = vmatpush1.xpose.msra.mxu0 0.0
    %569 = vmatprep.subr.mxu0 0.0
    %570 = vmatpush1.xpose.msra.mxu0 0.0
    %571 = vmatprep.subr.mxu0 0.0
    %572 = vmatpush1.xpose.msra.mxu0 0.0
    %573 = vmatprep.subr.mxu0 0.0
    %574 = vmatpush1.xpose.msra.mxu0 0.0
    %575 = vmatprep.subr.mxu0 0.0
    %576 = vmatpush1.xpose.msra.mxu0 0.0
    %577 = vmatprep.subr.mxu0 0.0
    %578 = vmatpush1.xpose.msra.mxu0 0.0
    %579 = vmatprep.subr.mxu0 0.0
    %580 = vmatpush1.xpose.msra.mxu0 0.0
    %581 = vmatprep.subr.mxu0 0.0
    %582 = vmatpush1.xpose.msra.mxu0 0.0
    %583 = vmatprep.subr.mxu0 0.0
    %584 = vmatpush1.xpose.msra.mxu0 0.0
    %585 = vmatprep.subr.mxu0 0.0
    %586 = vmatpush1.xpose.msra.mxu0 0.0
    %587 = vmatprep.subr.mxu0 0.0
    %588 = vmatpush1.xpose.msra.mxu0 0.0
    %589 = vmatprep.subr.mxu0 0.0
    %590 = vmatpush1.xpose.msra.mxu0 0.0
    %591 = vmatprep.subr.mxu0 0.0
    %592 = vmatpush1.xpose.msra.mxu0 0.0
    %593 = vmatprep.subr.mxu0 0.0
    %594 = vmatpush1.xpose.msra.mxu0 0.0
    %595 = vmatprep.subr.mxu0 0.0
    %596 = vmatpush1.xpose.msra.mxu0 0.0
    %597 = vmatprep.subr.mxu0 0.0
    %598 = vmatpush1.xpose.msra.mxu0 0.0
    %599 = vmatprep.subr.mxu0 0.0
    %600 = vmatpush1.xpose.msra.mxu0 0.0
    %601 = vmatprep.subr.mxu0 0.0
    %602 = vmatpush1.xpose.msra.mxu0 0.0
    %603 = vmatprep.subr.mxu0 0.0
    %604 = vmatpush1.xpose.msra.mxu0 0.0
    %605 = vmatprep.subr.mxu0 0.0
    %606 = vmatpush1.xpose.msra.mxu0 0.0
    %607 = vmatprep.subr.mxu0 0.0
    %608 = vmatpush1.xpose.msra.mxu0 0.0
    %609 = vmatprep.subr.mxu0 0.0
    %610 = vmatpush1.xpose.msra.mxu0 0.0
    %611 = vmatprep.subr.mxu0 0.0
    %612 = vmatpush1.xpose.msra.mxu0 0.0
    %613 = vmatprep.subr.mxu0 0.0
    %614 = vmatpush1.xpose.msra.mxu0 0.0
    %615 = vmatprep.subr.mxu0 0.0
    %616 = vmatpush1.xpose.msra.mxu0 0.0
    %617 = vmatprep.subr.mxu0 0.0
    %618 = vmatpush1.xpose.msra.mxu0 0.0
    %619 = vmatprep.subr.mxu0 0.0
    %620 = vmatpush1.xpose.msra.mxu0 0.0
    %621 = vmatprep.mubr.f32.mxu0 0.0
    %622 = vmatmul.mubr.f32.gmra.mrb[0].mxu0 %v553
    %v623 = vpop.f32.mrb[0].mxu0
    %v624 = vadd.f32 0.0, %v623
    %v625 = vpop.f32.mrb[0].mxu0
    %626 = vdwg.mxu0
    %627 = vrot.lane.b32.xlu0 %v389, 96
    %v628 = vpop.permute.xlu0 %627
    %v629 = vsel %vm400, %v389, 0
    %v631 = vsel %vm400, %v628, 0
    %633 = vmatprep.subr.mxu0 0.0
    %634 = vmatpush1.xpose.msra.mxu0 %v631
    %635 = vmatprep.subr.mxu0 0.0
    %636 = vmatpush1.xpose.msra.mxu0 0.0
    %637 = vmatprep.subr.mxu0 0.0
    %638 = vmatpush1.xpose.msra.mxu0 0.0
    %639 = vmatprep.subr.mxu0 0.0
    %640 = vmatpush1.xpose.msra.mxu0 0.0
    %641 = vmatprep.subr.mxu0 0.0
    %642 = vmatpush1.xpose.msra.mxu0 0.0
    %643 = vmatprep.subr.mxu0 0.0
    %644 = vmatpush1.xpose.msra.mxu0 0.0
    %645 = vmatprep.subr.mxu0 0.0
    %646 = vmatpush1.xpose.msra.mxu0 0.0
    %647 = vmatprep.subr.mxu0 0.0
    %648 = vmatpush1.xpose.msra.mxu0 0.0
    %649 = vmatprep.subr.mxu0 0.0
    %650 = vmatpush1.xpose.msra.mxu0 0.0
    %651 = vmatprep.subr.mxu0 0.0
    %652 = vmatpush1.xpose.msra.mxu0 0.0
    %653 = vmatprep.subr.mxu0 0.0
    %654 = vmatpush1.xpose.msra.mxu0 0.0
    %655 = vmatprep.subr.mxu0 0.0
    %656 = vmatpush1.xpose.msra.mxu0 0.0
    %657 = vmatprep.subr.mxu0 0.0
    %658 = vmatpush1.xpose.msra.mxu0 0.0
    %659 = vmatprep.subr.mxu0 0.0
    %660 = vmatpush1.xpose.msra.mxu0 0.0
    %661 = vmatprep.subr.mxu0 0.0
    %662 = vmatpush1.xpose.msra.mxu0 0.0
    %663 = vmatprep.subr.mxu0 0.0
    %664 = vmatpush1.xpose.msra.mxu0 0.0
    %665 = vmatprep.subr.mxu0 0.0
    %666 = vmatpush1.xpose.msra.mxu0 0.0
    %667 = vmatprep.subr.mxu0 0.0
    %668 = vmatpush1.xpose.msra.mxu0 0.0
    %669 = vmatprep.subr.mxu0 0.0
    %670 = vmatpush1.xpose.msra.mxu0 0.0
    %671 = vmatprep.subr.mxu0 0.0
    %672 = vmatpush1.xpose.msra.mxu0 0.0
    %673 = vmatprep.subr.mxu0 0.0
    %674 = vmatpush1.xpose.msra.mxu0 0.0
    %675 = vmatprep.subr.mxu0 0.0
    %676 = vmatpush1.xpose.msra.mxu0 0.0
    %677 = vmatprep.subr.mxu0 0.0
    %678 = vmatpush1.xpose.msra.mxu0 0.0
    %679 = vmatprep.subr.mxu0 0.0
    %680 = vmatpush1.xpose.msra.mxu0 0.0
    %681 = vmatprep.subr.mxu0 0.0
    %682 = vmatpush1.xpose.msra.mxu0 0.0
    %683 = vmatprep.subr.mxu0 0.0
    %684 = vmatpush1.xpose.msra.mxu0 0.0
    %685 = vmatprep.subr.mxu0 0.0
    %686 = vmatpush1.xpose.msra.mxu0 0.0
    %687 = vmatprep.subr.mxu0 0.0
    %688 = vmatpush1.xpose.msra.mxu0 0.0
    %689 = vmatprep.subr.mxu0 0.0
    %690 = vmatpush1.xpose.msra.mxu0 0.0
    %691 = vmatprep.subr.mxu0 0.0
    %692 = vmatpush1.xpose.msra.mxu0 0.0
    %693 = vmatprep.subr.mxu0 0.0
    %694 = vmatpush1.xpose.msra.mxu0 0.0
    %695 = vmatprep.subr.mxu0 0.0
    %696 = vmatpush1.xpose.msra.mxu0 0.0
    %697 = vmatprep.mubr.f32.mxu0 0.0
    %698 = vmatmul.mubr.f32.gmra.mrb[0].mxu0 %v629
    %v699 = vpop.f32.mrb[0].mxu0
    %v700 = vadd.f32 0.0, %v699
    %v701 = vpop.f32.mrb[0].mxu0
    %702 = vdwg.mxu0
    %703 = vrot.lane.b32.xlu0 %v391, 96
    %v704 = vpop.permute.xlu0 %703
    %v705 = vsel %vm400, %v391, 0
    %v707 = vsel %vm400, %v704, 0
    %709 = vmatprep.subr.mxu0 0.0
    %710 = vmatpush1.xpose.msra.mxu0 %v707
    %711 = vmatprep.subr.mxu0 0.0
    %712 = vmatpush1.xpose.msra.mxu0 0.0
    %713 = vmatprep.subr.mxu0 0.0
    %714 = vmatpush1.xpose.msra.mxu0 0.0
    %715 = vmatprep.subr.mxu0 0.0
    %716 = vmatpush1.xpose.msra.mxu0 0.0
    %717 = vmatprep.subr.mxu0 0.0
    %718 = vmatpush1.xpose.msra.mxu0 0.0
    %719 = vmatprep.subr.mxu0 0.0
    %720 = vmatpush1.xpose.msra.mxu0 0.0
    %721 = vmatprep.subr.mxu0 0.0
    %722 = vmatpush1.xpose.msra.mxu0 0.0
    %723 = vmatprep.subr.mxu0 0.0
    %724 = vmatpush1.xpose.msra.mxu0 0.0
    %725 = vmatprep.subr.mxu0 0.0
    %726 = vmatpush1.xpose.msra.mxu0 0.0
    %727 = vmatprep.subr.mxu0 0.0
    %728 = vmatpush1.xpose.msra.mxu0 0.0
    %729 = vmatprep.subr.mxu0 0.0
    %730 = vmatpush1.xpose.msra.mxu0 0.0
    %731 = vmatprep.subr.mxu0 0.0
    %732 = vmatpush1.xpose.msra.mxu0 0.0
    %733 = vmatprep.subr.mxu0 0.0
    %734 = vmatpush1.xpose.msra.mxu0 0.0
    %735 = vmatprep.subr.mxu0 0.0
    %736 = vmatpush1.xpose.msra.mxu0 0.0
    %737 = vmatprep.subr.mxu0 0.0
    %738 = vmatpush1.xpose.msra.mxu0 0.0
    %739 = vmatprep.subr.mxu0 0.0
    %740 = vmatpush1.xpose.msra.mxu0 0.0
    %741 = vmatprep.subr.mxu0 0.0
    %742 = vmatpush1.xpose.msra.mxu0 0.0
    %743 = vmatprep.subr.mxu0 0.0
    %744 = vmatpush1.xpose.msra.mxu0 0.0
    %745 = vmatprep.subr.mxu0 0.0
    %746 = vmatpush1.xpose.msra.mxu0 0.0
    %747 = vmatprep.subr.mxu0 0.0
    %748 = vmatpush1.xpose.msra.mxu0 0.0
    %749 = vmatprep.subr.mxu0 0.0
    %750 = vmatpush1.xpose.msra.mxu0 0.0
    %751 = vmatprep.subr.mxu0 0.0
    %752 = vmatpush1.xpose.msra.mxu0 0.0
    %753 = vmatprep.subr.mxu0 0.0
    %754 = vmatpush1.xpose.msra.mxu0 0.0
    %755 = vmatprep.subr.mxu0 0.0
    %756 = vmatpush1.xpose.msra.mxu0 0.0
    %757 = vmatprep.subr.mxu0 0.0
    %758 = vmatpush1.xpose.msra.mxu0 0.0
    %759 = vmatprep.subr.mxu0 0.0
    %760 = vmatpush1.xpose.msra.mxu0 0.0
    %761 = vmatprep.subr.mxu0 0.0
    %762 = vmatpush1.xpose.msra.mxu0 0.0
    %763 = vmatprep.subr.mxu0 0.0
    %764 = vmatpush1.xpose.msra.mxu0 0.0
    %765 = vmatprep.subr.mxu0 0.0
    %766 = vmatpush1.xpose.msra.mxu0 0.0
    %767 = vmatprep.subr.mxu0 0.0
    %768 = vmatpush1.xpose.msra.mxu0 0.0
    %769 = vmatprep.subr.mxu0 0.0
    %770 = vmatpush1.xpose.msra.mxu0 0.0
    %771 = vmatprep.subr.mxu0 0.0
    %772 = vmatpush1.xpose.msra.mxu0 0.0
    %773 = vmatprep.mubr.f32.mxu0 0.0
    %774 = vmatmul.mubr.f32.gmra.mrb[0].mxu0 %v705
    %v775 = vpop.f32.mrb[0].mxu0
    %v776 = vadd.f32 0.0, %v775
    %v777 = vpop.f32.mrb[0].mxu0
    %778 = vdwg.mxu0
    %779 = vrot.lane.b32.xlu0 %v393, 96
    %v780 = vpop.permute.xlu0 %779
    %v781 = vsel %vm400, %v393, 0
    %v783 = vsel %vm400, %v780, 0
    %785 = vmatprep.subr.mxu0 0.0
    %786 = vmatpush1.xpose.msra.mxu0 %v783
    %787 = vmatprep.subr.mxu0 0.0
    %788 = vmatpush1.xpose.msra.mxu0 0.0
    %789 = vmatprep.subr.mxu0 0.0
    %790 = vmatpush1.xpose.msra.mxu0 0.0
    %791 = vmatprep.subr.mxu0 0.0
    %792 = vmatpush1.xpose.msra.mxu0 0.0
    %793 = vmatprep.subr.mxu0 0.0
    %794 = vmatpush1.xpose.msra.mxu0 0.0
    %795 = vmatprep.subr.mxu0 0.0
    %796 = vmatpush1.xpose.msra.mxu0 0.0
    %797 = vmatprep.subr.mxu0 0.0
    %798 = vmatpush1.xpose.msra.mxu0 0.0
    %799 = vmatprep.subr.mxu0 0.0
    %800 = vmatpush1.xpose.msra.mxu0 0.0
    %801 = vmatprep.subr.mxu0 0.0
    %802 = vmatpush1.xpose.msra.mxu0 0.0
    %803 = vmatprep.subr.mxu0 0.0
    %804 = vmatpush1.xpose.msra.mxu0 0.0
    %805 = vmatprep.subr.mxu0 0.0
    %806 = vmatpush1.xpose.msra.mxu0 0.0
    %807 = vmatprep.subr.mxu0 0.0
    %808 = vmatpush1.xpose.msra.mxu0 0.0
    %809 = vmatprep.subr.mxu0 0.0
    %810 = vmatpush1.xpose.msra.mxu0 0.0
    %811 = vmatprep.subr.mxu0 0.0
    %812 = vmatpush1.xpose.msra.mxu0 0.0
    %813 = vmatprep.subr.mxu0 0.0
    %814 = vmatpush1.xpose.msra.mxu0 0.0
    %815 = vmatprep.subr.mxu0 0.0
    %816 = vmatpush1.xpose.msra.mxu0 0.0
    %817 = vmatprep.subr.mxu0 0.0
    %818 = vmatpush1.xpose.msra.mxu0 0.0
    %819 = vmatprep.subr.mxu0 0.0
    %820 = vmatpush1.xpose.msra.mxu0 0.0
    %821 = vmatprep.subr.mxu0 0.0
    %822 = vmatpush1.xpose.msra.mxu0 0.0
    %823 = vmatprep.subr.mxu0 0.0
    %824 = vmatpush1.xpose.msra.mxu0 0.0
    %825 = vmatprep.subr.mxu0 0.0
    %826 = vmatpush1.xpose.msra.mxu0 0.0
    %827 = vmatprep.subr.mxu0 0.0
    %828 = vmatpush1.xpose.msra.mxu0 0.0
    %829 = vmatprep.subr.mxu0 0.0
    %830 = vmatpush1.xpose.msra.mxu0 0.0
    %831 = vmatprep.subr.mxu0 0.0
    %832 = vmatpush1.xpose.msra.mxu0 0.0
    %833 = vmatprep.subr.mxu0 0.0
    %834 = vmatpush1.xpose.msra.mxu0 0.0
    %835 = vmatprep.subr.mxu0 0.0
    %836 = vmatpush1.xpose.msra.mxu0 0.0
    %837 = vmatprep.subr.mxu0 0.0
    %838 = vmatpush1.xpose.msra.mxu0 0.0
    %839 = vmatprep.subr.mxu0 0.0
    %840 = vmatpush1.xpose.msra.mxu0 0.0
    %841 = vmatprep.subr.mxu0 0.0
    %842 = vmatpush1.xpose.msra.mxu0 0.0
    %843 = vmatprep.subr.mxu0 0.0
    %844 = vmatpush1.xpose.msra.mxu0 0.0
    %845 = vmatprep.subr.mxu0 0.0
    %846 = vmatpush1.xpose.msra.mxu0 0.0
    %847 = vmatprep.subr.mxu0 0.0
    %848 = vmatpush1.xpose.msra.mxu0 0.0
    %849 = vmatprep.mubr.f32.mxu0 0.0
    %850 = vmatmul.mubr.f32.gmra.mrb[0].mxu0 %v781
    %v851 = vpop.f32.mrb[0].mxu0
    %v852 = vadd.f32 0.0, %v851
    %v853 = vpop.f32.mrb[0].mxu0
    %854 = vdwg.mxu0
    %855 = vrot.lane.b32.xlu0 %v395, 96
    %v856 = vpop.permute.xlu0 %855
    %v857 = vsel %vm400, %v395, 0
    %v859 = vsel %vm400, %v856, 0
    %861 = vmatprep.subr.mxu0 0.0
    %862 = vmatpush1.xpose.msra.mxu0 %v859
    %863 = vmatprep.subr.mxu0 0.0
    %864 = vmatpush1.xpose.msra.mxu0 0.0
    %865 = vmatprep.subr.mxu0 0.0
    %866 = vmatpush1.xpose.msra.mxu0 0.0
    %867 = vmatprep.subr.mxu0 0.0
    %868 = vmatpush1.xpose.msra.mxu0 0.0
    %869 = vmatprep.subr.mxu0 0.0
    %870 = vmatpush1.xpose.msra.mxu0 0.0
    %871 = vmatprep.subr.mxu0 0.0
    %872 = vmatpush1.xpose.msra.mxu0 0.0
    %873 = vmatprep.subr.mxu0 0.0
    %874 = vmatpush1.xpose.msra.mxu0 0.0
    %875 = vmatprep.subr.mxu0 0.0
    %876 = vmatpush1.xpose.msra.mxu0 0.0
    %877 = vmatprep.subr.mxu0 0.0
    %878 = vmatpush1.xpose.msra.mxu0 0.0
    %879 = vmatprep.subr.mxu0 0.0
    %880 = vmatpush1.xpose.msra.mxu0 0.0
    %881 = vmatprep.subr.mxu0 0.0
    %882 = vmatpush1.xpose.msra.mxu0 0.0
    %883 = vmatprep.subr.mxu0 0.0
    %884 = vmatpush1.xpose.msra.mxu0 0.0
    %885 = vmatprep.subr.mxu0 0.0
    %886 = vmatpush1.xpose.msra.mxu0 0.0
    %887 = vmatprep.subr.mxu0 0.0
    %888 = vmatpush1.xpose.msra.mxu0 0.0
    %889 = vmatprep.subr.mxu0 0.0
    %890 = vmatpush1.xpose.msra.mxu0 0.0
    %891 = vmatprep.subr.mxu0 0.0
    %892 = vmatpush1.xpose.msra.mxu0 0.0
    %893 = vmatprep.subr.mxu0 0.0
    %894 = vmatpush1.xpose.msra.mxu0 0.0
    %895 = vmatprep.subr.mxu0 0.0
    %896 = vmatpush1.xpose.msra.mxu0 0.0
    %897 = vmatprep.subr.mxu0 0.0
    %898 = vmatpush1.xpose.msra.mxu0 0.0
    %899 = vmatprep.subr.mxu0 0.0
    %900 = vmatpush1.xpose.msra.mxu0 0.0
    %901 = vmatprep.subr.mxu0 0.0
    %902 = vmatpush1.xpose.msra.mxu0 0.0
    %903 = vmatprep.subr.mxu0 0.0
    %904 = vmatpush1.xpose.msra.mxu0 0.0
    %905 = vmatprep.subr.mxu0 0.0
    %906 = vmatpush1.xpose.msra.mxu0 0.0
    %907 = vmatprep.subr.mxu0 0.0
    %908 = vmatpush1.xpose.msra.mxu0 0.0
    %909 = vmatprep.subr.mxu0 0.0
    %910 = vmatpush1.xpose.msra.mxu0 0.0
    %911 = vmatprep.subr.mxu0 0.0
    %912 = vmatpush1.xpose.msra.mxu0 0.0
    %913 = vmatprep.subr.mxu0 0.0
    %914 = vmatpush1.xpose.msra.mxu0 0.0
    %915 = vmatprep.subr.mxu0 0.0
    %916 = vmatpush1.xpose.msra.mxu0 0.0
    %917 = vmatprep.subr.mxu0 0.0
    %918 = vmatpush1.xpose.msra.mxu0 0.0
    %919 = vmatprep.subr.mxu0 0.0
    %920 = vmatpush1.xpose.msra.mxu0 0.0
    %921 = vmatprep.subr.mxu0 0.0
    %922 = vmatpush1.xpose.msra.mxu0 0.0
    %923 = vmatprep.subr.mxu0 0.0
    %924 = vmatpush1.xpose.msra.mxu0 0.0
    %925 = vmatprep.mubr.f32.mxu0 0.0
    %926 = vmatmul.mubr.f32.gmra.mrb[0].mxu0 %v857
    %v927 = vpop.f32.mrb[0].mxu0
    %v928 = vadd.f32 0.0, %v927
    %v929 = vpop.f32.mrb[0].mxu0
    %930 = vdwg.mxu0
    %931 = vrot.lane.b32.xlu0 %v397, 96
    %v932 = vpop.permute.xlu0 %931
    %v933 = vsel %vm400, %v397, 0
    %v935 = vsel %vm400, %v932, 0
    %937 = vmatprep.subr.mxu0 0.0
    %938 = vmatpush1.xpose.msra.mxu0 %v935
    %939 = vmatprep.subr.mxu0 0.0
    %940 = vmatpush1.xpose.msra.mxu0 0.0
    %941 = vmatprep.subr.mxu0 0.0
    %942 = vmatpush1.xpose.msra.mxu0 0.0
    %943 = vmatprep.subr.mxu0 0.0
    %944 = vmatpush1.xpose.msra.mxu0 0.0
    %945 = vmatprep.subr.mxu0 0.0
    %946 = vmatpush1.xpose.msra.mxu0 0.0
    %947 = vmatprep.subr.mxu0 0.0
    %948 = vmatpush1.xpose.msra.mxu0 0.0
    %949 = vmatprep.subr.mxu0 0.0
    %950 = vmatpush1.xpose.msra.mxu0 0.0
    %951 = vmatprep.subr.mxu0 0.0
    %952 = vmatpush1.xpose.msra.mxu0 0.0
    %953 = vmatprep.subr.mxu0 0.0
    %954 = vmatpush1.xpose.msra.mxu0 0.0
    %955 = vmatprep.subr.mxu0 0.0
    %956 = vmatpush1.xpose.msra.mxu0 0.0
    %957 = vmatprep.subr.mxu0 0.0
    %958 = vmatpush1.xpose.msra.mxu0 0.0
    %959 = vmatprep.subr.mxu0 0.0
    %960 = vmatpush1.xpose.msra.mxu0 0.0
    %961 = vmatprep.subr.mxu0 0.0
    %962 = vmatpush1.xpose.msra.mxu0 0.0
    %963 = vmatprep.subr.mxu0 0.0
    %964 = vmatpush1.xpose.msra.mxu0 0.0
    %965 = vmatprep.subr.mxu0 0.0
    %966 = vmatpush1.xpose.msra.mxu0 0.0
    %967 = vmatprep.subr.mxu0 0.0
    %968 = vmatpush1.xpose.msra.mxu0 0.0
    %969 = vmatprep.subr.mxu0 0.0
    %970 = vmatpush1.xpose.msra.mxu0 0.0
    %971 = vmatprep.subr.mxu0 0.0
    %972 = vmatpush1.xpose.msra.mxu0 0.0
    %973 = vmatprep.subr.mxu0 0.0
    %974 = vmatpush1.xpose.msra.mxu0 0.0
    %975 = vmatprep.subr.mxu0 0.0
    %976 = vmatpush1.xpose.msra.mxu0 0.0
    %977 = vmatprep.subr.mxu0 0.0
    %978 = vmatpush1.xpose.msra.mxu0 0.0
    %979 = vmatprep.subr.mxu0 0.0
    %980 = vmatpush1.xpose.msra.mxu0 0.0
    %981 = vmatprep.subr.mxu0 0.0
    %982 = vmatpush1.xpose.msra.mxu0 0.0
    %983 = vmatprep.subr.mxu0 0.0
    %984 = vmatpush1.xpose.msra.mxu0 0.0
    %985 = vmatprep.subr.mxu0 0.0
    %986 = vmatpush1.xpose.msra.mxu0 0.0
    %987 = vmatprep.subr.mxu0 0.0
    %988 = vmatpush1.xpose.msra.mxu0 0.0
    %989 = vmatprep.subr.mxu0 0.0
    %990 = vmatpush1.xpose.msra.mxu0 0.0
    %991 = vmatprep.subr.mxu0 0.0
    %992 = vmatpush1.xpose.msra.mxu0 0.0
    %993 = vmatprep.subr.mxu0 0.0
    %994 = vmatpush1.xpose.msra.mxu0 0.0
    %995 = vmatprep.subr.mxu0 0.0
    %996 = vmatpush1.xpose.msra.mxu0 0.0
    %997 = vmatprep.subr.mxu0 0.0
    %998 = vmatpush1.xpose.msra.mxu0 0.0
    %999 = vmatprep.subr.mxu0 0.0
    %1000 = vmatpush1.xpose.msra.mxu0 0.0
    %1001 = vmatprep.mubr.f32.mxu0 0.0
    %1002 = vmatmul.mubr.f32.gmra.mrb[0].mxu0 %v933
    %v1003 = vpop.f32.mrb[0].mxu0
    %v1004 = vadd.f32 0.0, %v1003
    %v1005 = vpop.f32.mrb[0].mxu0
    %1006 = vdwg.mxu0
    %v1007 = vsel %vm400, %v472, -inf
    %1008 = vmax.xlane.f32.xlu0 %v1007
    %v1009 = vpop.xlane.xlu0 %1008
    %v1010 = vsel %vm400, %v548, -inf
    %1011 = vmax.xlane.f32.xlu0 %v1010
    %v1012 = vpop.xlane.xlu0 %1011
    %v1013 = vsel %vm400, %v624, -inf
    %1014 = vmax.xlane.f32.xlu0 %v1013
    %v1015 = vpop.xlane.xlu0 %1014
    %v1016 = vsel %vm400, %v700, -inf
    %1017 = vmax.xlane.f32.xlu0 %v1016
    %v1018 = vpop.xlane.xlu0 %1017
    %v1019 = vsel %vm400, %v776, -inf
    %1020 = vmax.xlane.f32.xlu0 %v1019
    %v1021 = vpop.xlane.xlu0 %1020
    %v1022 = vsel %vm400, %v852, -inf
    %1023 = vmax.xlane.f32.xlu0 %v1022
    %v1024 = vpop.xlane.xlu0 %1023
    %v1025 = vsel %vm400, %v928, -inf
    %1026 = vmax.xlane.f32.xlu0 %v1025
    %v1027 = vpop.xlane.xlu0 %1026
    %v1028 = vsel %vm400, %v1004, -inf
    %1029 = vmax.xlane.f32.xlu0 %v1028
    %v1030 = vpop.xlane.xlu0 %1029
    %v1031 = vsub.f32 %v472, %v1009
    %v1032 = vsub.f32 %v548, %v1012
    %v1033 = vsub.f32 %v624, %v1015
    %v1034 = vsub.f32 %v700, %v1018
    %v1035 = vsub.f32 %v776, %v1021
    %v1036 = vsub.f32 %v852, %v1024
    %v1037 = vsub.f32 %v928, %v1027
    %v1038 = vsub.f32 %v1004, %v1030
    %v1039 = vmul.f32 %v1031, 1.442695
    %v1040 = vpow.pop %v1039
    %v1041 = vmul.f32 %v1032, 1.442695
    %v1042 = vpow.pop %v1041
    %v1043 = vmul.f32 %v1033, 1.442695
    %v1044 = vpow.pop %v1043
    %v1045 = vmul.f32 %v1034, 1.442695
    %v1046 = vpow.pop %v1045
    %v1047 = vmul.f32 %v1035, 1.442695
    %v1048 = vpow.pop %v1047
    %v1049 = vmul.f32 %v1036, 1.442695
    %v1050 = vpow.pop %v1049
    %v1051 = vmul.f32 %v1037, 1.442695
    %v1052 = vpow.pop %v1051
    %v1053 = vmul.f32 %v1038, 1.442695
    %v1054 = vpow.pop %v1053
    %v1055 = vsel %vm400, %v1040, 0.0
    %1056 = vadd.xlane.f32.xlu0 %v1055
    %v1057 = vpop.xlane.xlu0 %1056
    %v1058 = vsel %vm400, %v1042, 0.0
    %1059 = vadd.xlane.f32.xlu0 %v1058
    %v1060 = vpop.xlane.xlu0 %1059
    %v1061 = vsel %vm400, %v1044, 0.0
    %1062 = vadd.xlane.f32.xlu0 %v1061
    %v1063 = vpop.xlane.xlu0 %1062
    %v1064 = vsel %vm400, %v1046, 0.0
    %1065 = vadd.xlane.f32.xlu0 %v1064
    %v1066 = vpop.xlane.xlu0 %1065
    %v1067 = vsel %vm400, %v1048, 0.0
    %1068 = vadd.xlane.f32.xlu0 %v1067
    %v1069 = vpop.xlane.xlu0 %1068
    %v1070 = vsel %vm400, %v1050, 0.0
    %1071 = vadd.xlane.f32.xlu0 %v1070
    %v1072 = vpop.xlane.xlu0 %1071
    %v1073 = vsel %vm400, %v1052, 0.0
    %1074 = vadd.xlane.f32.xlu0 %v1073
    %v1075 = vpop.xlane.xlu0 %1074
    %v1076 = vsel %vm400, %v1054, 0.0
    %1077 = vadd.xlane.f32.xlu0 %v1076
    %v1078 = vpop.xlane.xlu0 %1077
    %v1079 = vrcp.pop %v1057
    %v1080 = vrcp.pop %v1060
    %v1081 = vrcp.pop %v1063
    %v1082 = vrcp.pop %v1066
    %v1083 = vrcp.pop %v1069
    %v1084 = vrcp.pop %v1072
    %v1085 = vrcp.pop %v1075
    %v1086 = vrcp.pop %v1078
    %v1087 = vmul.f32 %v1040, %v1079
    %v1088 = vmul.f32 %v1042, %v1080
    %v1089 = vmul.f32 %v1044, %v1081
    %v1090 = vmul.f32 %v1046, %v1082
    %v1091 = vmul.f32 %v1048, %v1083
    %v1092 = vmul.f32 %v1050, %v1084
    %v1093 = vmul.f32 %v1052, %v1085
    %v1094 = vmul.f32 %v1054, %v1086
    %1095 = vrot.lane.b32.xlu0 %v376, 64
    %v1096 = vpop.permute.xlu0 %1095
    %v1099 = vsel %vm400, %v1087, 0
    %1101 = vmatprep.subr.mxu0 0.0
    %1102 = vmatpush1.msra.mxu0 %v1096
    %1103 = vmatprep.subr.mxu0 0.0
    %1104 = vmatpush1.msra.mxu0 0.0
    %1105 = vmatprep.subr.mxu0 0.0
    %1106 = vmatpush1.msra.mxu0 0.0
    %1107 = vmatprep.subr.mxu0 0.0
    %1108 = vmatpush1.msra.mxu0 0.0
    %1109 = vmatprep.subr.mxu0 0.0
    %1110 = vmatpush1.msra.mxu0 0.0
    %1111 = vmatprep.subr.mxu0 0.0
    %1112 = vmatpush1.msra.mxu0 0.0
    %1113 = vmatprep.subr.mxu0 0.0
    %1114 = vmatpush1.msra.mxu0 0.0
    %1115 = vmatprep.subr.mxu0 0.0
    %1116 = vmatpush1.msra.mxu0 0.0
    %1117 = vmatprep.subr.mxu0 0.0
    %1118 = vmatpush1.msra.mxu0 0.0
    %1119 = vmatprep.subr.mxu0 0.0
    %1120 = vmatpush1.msra.mxu0 0.0
    %1121 = vmatprep.subr.mxu0 0.0
    %1122 = vmatpush1.msra.mxu0 0.0
    %1123 = vmatprep.subr.mxu0 0.0
    %1124 = vmatpush1.msra.mxu0 0.0
    %1125 = vmatprep.subr.mxu0 0.0
    %1126 = vmatpush1.msra.mxu0 0.0
    %1127 = vmatprep.subr.mxu0 0.0
    %1128 = vmatpush1.msra.mxu0 0.0
    %1129 = vmatprep.subr.mxu0 0.0
    %1130 = vmatpush1.msra.mxu0 0.0
    %1131 = vmatprep.subr.mxu0 0.0
    %1132 = vmatpush1.msra.mxu0 0.0
    %1133 = vmatprep.subr.mxu0 0.0
    %1134 = vmatpush1.msra.mxu0 0.0
    %1135 = vmatprep.subr.mxu0 0.0
    %1136 = vmatpush1.msra.mxu0 0.0
    %1137 = vmatprep.subr.mxu0 0.0
    %1138 = vmatpush1.msra.mxu0 0.0
    %1139 = vmatprep.subr.mxu0 0.0
    %1140 = vmatpush1.msra.mxu0 0.0
    %1141 = vmatprep.subr.mxu0 0.0
    %1142 = vmatpush1.msra.mxu0 0.0
    %1143 = vmatprep.subr.mxu0 0.0
    %1144 = vmatpush1.msra.mxu0 0.0
    %1145 = vmatprep.subr.mxu0 0.0
    %1146 = vmatpush1.msra.mxu0 0.0
    %1147 = vmatprep.subr.mxu0 0.0
    %1148 = vmatpush1.msra.mxu0 0.0
    %1149 = vmatprep.subr.mxu0 0.0
    %1150 = vmatpush1.msra.mxu0 0.0
    %1151 = vmatprep.subr.mxu0 0.0
    %1152 = vmatpush1.msra.mxu0 0.0
    %1153 = vmatprep.subr.mxu0 0.0
    %1154 = vmatpush1.msra.mxu0 0.0
    %1155 = vmatprep.subr.mxu0 0.0
    %1156 = vmatpush1.msra.mxu0 0.0
    %1157 = vmatprep.subr.mxu0 0.0
    %1158 = vmatpush1.msra.mxu0 0.0
    %1159 = vmatprep.subr.mxu0 0.0
    %1160 = vmatpush1.msra.mxu0 0.0
    %1161 = vmatprep.subr.mxu0 0.0
    %1162 = vmatpush1.msra.mxu0 0.0
    %1163 = vmatprep.subr.mxu0 0.0
    %1164 = vmatpush1.msra.mxu0 0.0
    %1165 = vmatprep.mubr.f32.mxu0 0.0
    %1166 = vmatmul.mubr.f32.gmra.mrb[0].mxu0 %v1099
    %v1167 = vpop.f32.mrb[0].mxu0
    %v1168 = vadd.f32 0.0, %v1167
    %v1169 = vpop.f32.mrb[0].mxu0
    %1170 = vdwg.mxu0
    %1171 = vrot.lane.b32.xlu0 %v381, 64
    %v1172 = vpop.permute.xlu0 %1171
    %v1175 = vsel %vm400, %v1088, 0
    %1177 = vmatprep.subr.mxu0 0.0
    %1178 = vmatpush1.msra.mxu0 %v1172
    %1179 = vmatprep.subr.mxu0 0.0
    %1180 = vmatpush1.msra.mxu0 0.0
    %1181 = vmatprep.subr.mxu0 0.0
    %1182 = vmatpush1.msra.mxu0 0.0
    %1183 = vmatprep.subr.mxu0 0.0
    %1184 = vmatpush1.msra.mxu0 0.0
    %1185 = vmatprep.subr.mxu0 0.0
    %1186 = vmatpush1.msra.mxu0 0.0
    %1187 = vmatprep.subr.mxu0 0.0
    %1188 = vmatpush1.msra.mxu0 0.0
    %1189 = vmatprep.subr.mxu0 0.0
    %1190 = vmatpush1.msra.mxu0 0.0
    %1191 = vmatprep.subr.mxu0 0.0
    %1192 = vmatpush1.msra.mxu0 0.0
    %1193 = vmatprep.subr.mxu0 0.0
    %1194 = vmatpush1.msra.mxu0 0.0
    %1195 = vmatprep.subr.mxu0 0.0
    %1196 = vmatpush1.msra.mxu0 0.0
    %1197 = vmatprep.subr.mxu0 0.0
    %1198 = vmatpush1.msra.mxu0 0.0
    %1199 = vmatprep.subr.mxu0 0.0
    %1200 = vmatpush1.msra.mxu0 0.0
    %1201 = vmatprep.subr.mxu0 0.0
    %1202 = vmatpush1.msra.mxu0 0.0
    %1203 = vmatprep.subr.mxu0 0.0
    %1204 = vmatpush1.msra.mxu0 0.0
    %1205 = vmatprep.subr.mxu0 0.0
    %1206 = vmatpush1.msra.mxu0 0.0
    %1207 = vmatprep.subr.mxu0 0.0
    %1208 = vmatpush1.msra.mxu0 0.0
    %1209 = vmatprep.subr.mxu0 0.0
    %1210 = vmatpush1.msra.mxu0 0.0
    %1211 = vmatprep.subr.mxu0 0.0
    %1212 = vmatpush1.msra.mxu0 0.0
    %1213 = vmatprep.subr.mxu0 0.0
    %1214 = vmatpush1.msra.mxu0 0.0
    %1215 = vmatprep.subr.mxu0 0.0
    %1216 = vmatpush1.msra.mxu0 0.0
    %1217 = vmatprep.subr.mxu0 0.0
    %1218 = vmatpush1.msra.mxu0 0.0
    %1219 = vmatprep.subr.mxu0 0.0
    %1220 = vmatpush1.msra.mxu0 0.0
    %1221 = vmatprep.subr.mxu0 0.0
    %1222 = vmatpush1.msra.mxu0 0.0
    %1223 = vmatprep.subr.mxu0 0.0
    %1224 = vmatpush1.msra.mxu0 0.0
    %1225 = vmatprep.subr.mxu0 0.0
    %1226 = vmatpush1.msra.mxu0 0.0
    %1227 = vmatprep.subr.mxu0 0.0
    %1228 = vmatpush1.msra.mxu0 0.0
    %1229 = vmatprep.subr.mxu0 0.0
    %1230 = vmatpush1.msra.mxu0 0.0
    %1231 = vmatprep.subr.mxu0 0.0
    %1232 = vmatpush1.msra.mxu0 0.0
    %1233 = vmatprep.subr.mxu0 0.0
    %1234 = vmatpush1.msra.mxu0 0.0
    %1235 = vmatprep.subr.mxu0 0.0
    %1236 = vmatpush1.msra.mxu0 0.0
    %1237 = vmatprep.subr.mxu0 0.0
    %1238 = vmatpush1.msra.mxu0 0.0
    %1239 = vmatprep.subr.mxu0 0.0
    %1240 = vmatpush1.msra.mxu0 0.0
    %1241 = vmatprep.mubr.f32.mxu0 0.0
    %1242 = vmatmul.mubr.f32.gmra.mrb[0].mxu0 %v1175
    %v1243 = vpop.f32.mrb[0].mxu0
    %v1244 = vadd.f32 0.0, %v1243
    %v1245 = vpop.f32.mrb[0].mxu0
    %1246 = vdwg.mxu0
    %1247 = vrot.lane.b32.xlu0 %v387, 64
    %v1248 = vpop.permute.xlu0 %1247
    %v1251 = vsel %vm400, %v1089, 0
    %1253 = vmatprep.subr.mxu0 0.0
    %1254 = vmatpush1.msra.mxu0 %v1248
    %1255 = vmatprep.subr.mxu0 0.0
    %1256 = vmatpush1.msra.mxu0 0.0
    %1257 = vmatprep.subr.mxu0 0.0
    %1258 = vmatpush1.msra.mxu0 0.0
    %1259 = vmatprep.subr.mxu0 0.0
    %1260 = vmatpush1.msra.mxu0 0.0
    %1261 = vmatprep.subr.mxu0 0.0
    %1262 = vmatpush1.msra.mxu0 0.0
    %1263 = vmatprep.subr.mxu0 0.0
    %1264 = vmatpush1.msra.mxu0 0.0
    %1265 = vmatprep.subr.mxu0 0.0
    %1266 = vmatpush1.msra.mxu0 0.0
    %1267 = vmatprep.subr.mxu0 0.0
    %1268 = vmatpush1.msra.mxu0 0.0
    %1269 = vmatprep.subr.mxu0 0.0
    %1270 = vmatpush1.msra.mxu0 0.0
    %1271 = vmatprep.subr.mxu0 0.0
    %1272 = vmatpush1.msra.mxu0 0.0
    %1273 = vmatprep.subr.mxu0 0.0
    %1274 = vmatpush1.msra.mxu0 0.0
    %1275 = vmatprep.subr.mxu0 0.0
    %1276 = vmatpush1.msra.mxu0 0.0
    %1277 = vmatprep.subr.mxu0 0.0
    %1278 = vmatpush1.msra.mxu0 0.0
    %1279 = vmatprep.subr.mxu0 0.0
    %1280 = vmatpush1.msra.mxu0 0.0
    %1281 = vmatprep.subr.mxu0 0.0
    %1282 = vmatpush1.msra.mxu0 0.0
    %1283 = vmatprep.subr.mxu0 0.0
    %1284 = vmatpush1.msra.mxu0 0.0
    %1285 = vmatprep.subr.mxu0 0.0
    %1286 = vmatpush1.msra.mxu0 0.0
    %1287 = vmatprep.subr.mxu0 0.0
    %1288 = vmatpush1.msra.mxu0 0.0
    %1289 = vmatprep.subr.mxu0 0.0
    %1290 = vmatpush1.msra.mxu0 0.0
    %1291 = vmatprep.subr.mxu0 0.0
    %1292 = vmatpush1.msra.mxu0 0.0
    %1293 = vmatprep.subr.mxu0 0.0
    %1294 = vmatpush1.msra.mxu0 0.0
    %1295 = vmatprep.subr.mxu0 0.0
    %1296 = vmatpush1.msra.mxu0 0.0
    %1297 = vmatprep.subr.mxu0 0.0
    %1298 = vmatpush1.msra.mxu0 0.0
    %1299 = vmatprep.subr.mxu0 0.0
    %1300 = vmatpush1.msra.mxu0 0.0
    %1301 = vmatprep.subr.mxu0 0.0
    %1302 = vmatpush1.msra.mxu0 0.0
    %1303 = vmatprep.subr.mxu0 0.0
    %1304 = vmatpush1.msra.mxu0 0.0
    %1305 = vmatprep.subr.mxu0 0.0
    %1306 = vmatpush1.msra.mxu0 0.0
    %1307 = vmatprep.subr.mxu0 0.0
    %1308 = vmatpush1.msra.mxu0 0.0
    %1309 = vmatprep.subr.mxu0 0.0
    %1310 = vmatpush1.msra.mxu0 0.0
    %1311 = vmatprep.subr.mxu0 0.0
    %1312 = vmatpush1.msra.mxu0 0.0
    %1313 = vmatprep.subr.mxu0 0.0
    %1314 = vmatpush1.msra.mxu0 0.0
    %1315 = vmatprep.subr.mxu0 0.0
    %1316 = vmatpush1.msra.mxu0 0.0
    %1317 = vmatprep.mubr.f32.mxu0 0.0
    %1318 = vmatmul.mubr.f32.gmra.mrb[0].mxu0 %v1251
    %v1319 = vpop.f32.mrb[0].mxu0
    %v1320 = vadd.f32 0.0, %v1319
    %v1321 = vpop.f32.mrb[0].mxu0
    %1322 = vdwg.mxu0
    %1323 = vrot.lane.b32.xlu0 %v389, 64
    %v1324 = vpop.permute.xlu0 %1323
    %v1327 = vsel %vm400, %v1090, 0
    %1329 = vmatprep.subr.mxu0 0.0
    %1330 = vmatpush1.msra.mxu0 %v1324
    %1331 = vmatprep.subr.mxu0 0.0
    %1332 = vmatpush1.msra.mxu0 0.0
    %1333 = vmatprep.subr.mxu0 0.0
    %1334 = vmatpush1.msra.mxu0 0.0
    %1335 = vmatprep.subr.mxu0 0.0
    %1336 = vmatpush1.msra.mxu0 0.0
    %1337 = vmatprep.subr.mxu0 0.0
    %1338 = vmatpush1.msra.mxu0 0.0
    %1339 = vmatprep.subr.mxu0 0.0
    %1340 = vmatpush1.msra.mxu0 0.0
    %1341 = vmatprep.subr.mxu0 0.0
    %1342 = vmatpush1.msra.mxu0 0.0
    %1343 = vmatprep.subr.mxu0 0.0
    %1344 = vmatpush1.msra.mxu0 0.0
    %1345 = vmatprep.subr.mxu0 0.0
    %1346 = vmatpush1.msra.mxu0 0.0
    %1347 = vmatprep.subr.mxu0 0.0
    %1348 = vmatpush1.msra.mxu0 0.0
    %1349 = vmatprep.subr.mxu0 0.0
    %1350 = vmatpush1.msra.mxu0 0.0
    %1351 = vmatprep.subr.mxu0 0.0
    %1352 = vmatpush1.msra.mxu0 0.0
    %1353 = vmatprep.subr.mxu0 0.0
    %1354 = vmatpush1.msra.mxu0 0.0
    %1355 = vmatprep.subr.mxu0 0.0
    %1356 = vmatpush1.msra.mxu0 0.0
    %1357 = vmatprep.subr.mxu0 0.0
    %1358 = vmatpush1.msra.mxu0 0.0
    %1359 = vmatprep.subr.mxu0 0.0
    %1360 = vmatpush1.msra.mxu0 0.0
    %1361 = vmatprep.subr.mxu0 0.0
    %1362 = vmatpush1.msra.mxu0 0.0
    %1363 = vmatprep.subr.mxu0 0.0
    %1364 = vmatpush1.msra.mxu0 0.0
    %1365 = vmatprep.subr.mxu0 0.0
    %1366 = vmatpush1.msra.mxu0 0.0
    %1367 = vmatprep.subr.mxu0 0.0
    %1368 = vmatpush1.msra.mxu0 0.0
    %1369 = vmatprep.subr.mxu0 0.0
    %1370 = vmatpush1.msra.mxu0 0.0
    %1371 = vmatprep.subr.mxu0 0.0
    %1372 = vmatpush1.msra.mxu0 0.0
    %1373 = vmatprep.subr.mxu0 0.0
    %1374 = vmatpush1.msra.mxu0 0.0
    %1375 = vmatprep.subr.mxu0 0.0
    %1376 = vmatpush1.msra.mxu0 0.0
    %1377 = vmatprep.subr.mxu0 0.0
    %1378 = vmatpush1.msra.mxu0 0.0
    %1379 = vmatprep.subr.mxu0 0.0
    %1380 = vmatpush1.msra.mxu0 0.0
    %1381 = vmatprep.subr.mxu0 0.0
    %1382 = vmatpush1.msra.mxu0 0.0
    %1383 = vmatprep.subr.mxu0 0.0
    %1384 = vmatpush1.msra.mxu0 0.0
    %1385 = vmatprep.subr.mxu0 0.0
    %1386 = vmatpush1.msra.mxu0 0.0
    %1387 = vmatprep.subr.mxu0 0.0
    %1388 = vmatpush1.msra.mxu0 0.0
    %1389 = vmatprep.subr.mxu0 0.0
    %1390 = vmatpush1.msra.mxu0 0.0
    %1391 = vmatprep.subr.mxu0 0.0
    %1392 = vmatpush1.msra.mxu0 0.0
    %1393 = vmatprep.mubr.f32.mxu0 0.0
    %1394 = vmatmul.mubr.f32.gmra.mrb[0].mxu0 %v1327
    %v1395 = vpop.f32.mrb[0].mxu0
    %v1396 = vadd.f32 0.0, %v1395
    %v1397 = vpop.f32.mrb[0].mxu0
    %1398 = vdwg.mxu0
    %1399 = vrot.lane.b32.xlu0 %v391, 64
    %v1400 = vpop.permute.xlu0 %1399
    %v1403 = vsel %vm400, %v1091, 0
    %1405 = vmatprep.subr.mxu0 0.0
    %1406 = vmatpush1.msra.mxu0 %v1400
    %1407 = vmatprep.subr.mxu0 0.0
    %1408 = vmatpush1.msra.mxu0 0.0
    %1409 = vmatprep.subr.mxu0 0.0
    %1410 = vmatpush1.msra.mxu0 0.0
    %1411 = vmatprep.subr.mxu0 0.0
    %1412 = vmatpush1.msra.mxu0 0.0
    %1413 = vmatprep.subr.mxu0 0.0
    %1414 = vmatpush1.msra.mxu0 0.0
    %1415 = vmatprep.subr.mxu0 0.0
    %1416 = vmatpush1.msra.mxu0 0.0
    %1417 = vmatprep.subr.mxu0 0.0
    %1418 = vmatpush1.msra.mxu0 0.0
    %1419 = vmatprep.subr.mxu0 0.0
    %1420 = vmatpush1.msra.mxu0 0.0
    %1421 = vmatprep.subr.mxu0 0.0
    %1422 = vmatpush1.msra.mxu0 0.0
    %1423 = vmatprep.subr.mxu0 0.0
    %1424 = vmatpush1.msra.mxu0 0.0
    %1425 = vmatprep.subr.mxu0 0.0
    %1426 = vmatpush1.msra.mxu0 0.0
    %1427 = vmatprep.subr.mxu0 0.0
    %1428 = vmatpush1.msra.mxu0 0.0
    %1429 = vmatprep.subr.mxu0 0.0
    %1430 = vmatpush1.msra.mxu0 0.0
    %1431 = vmatprep.subr.mxu0 0.0
    %1432 = vmatpush1.msra.mxu0 0.0
    %1433 = vmatprep.subr.mxu0 0.0
    %1434 = vmatpush1.msra.mxu0 0.0
    %1435 = vmatprep.subr.mxu0 0.0
    %1436 = vmatpush1.msra.mxu0 0.0
    %1437 = vmatprep.subr.mxu0 0.0
    %1438 = vmatpush1.msra.mxu0 0.0
    %1439 = vmatprep.subr.mxu0 0.0
    %1440 = vmatpush1.msra.mxu0 0.0
    %1441 = vmatprep.subr.mxu0 0.0
    %1442 = vmatpush1.msra.mxu0 0.0
    %1443 = vmatprep.subr.mxu0 0.0
    %1444 = vmatpush1.msra.mxu0 0.0
    %1445 = vmatprep.subr.mxu0 0.0
    %1446 = vmatpush1.msra.mxu0 0.0
    %1447 = vmatprep.subr.mxu0 0.0
    %1448 = vmatpush1.msra.mxu0 0.0
    %1449 = vmatprep.subr.mxu0 0.0
    %1450 = vmatpush1.msra.mxu0 0.0
    %1451 = vmatprep.subr.mxu0 0.0
    %1452 = vmatpush1.msra.mxu0 0.0
    %1453 = vmatprep.subr.mxu0 0.0
    %1454 = vmatpush1.msra.mxu0 0.0
    %1455 = vmatprep.subr.mxu0 0.0
    %1456 = vmatpush1.msra.mxu0 0.0
    %1457 = vmatprep.subr.mxu0 0.0
    %1458 = vmatpush1.msra.mxu0 0.0
    %1459 = vmatprep.subr.mxu0 0.0
    %1460 = vmatpush1.msra.mxu0 0.0
    %1461 = vmatprep.subr.mxu0 0.0
    %1462 = vmatpush1.msra.mxu0 0.0
    %1463 = vmatprep.subr.mxu0 0.0
    %1464 = vmatpush1.msra.mxu0 0.0
    %1465 = vmatprep.subr.mxu0 0.0
    %1466 = vmatpush1.msra.mxu0 0.0
    %1467 = vmatprep.subr.mxu0 0.0
    %1468 = vmatpush1.msra.mxu0 0.0
    %1469 = vmatprep.mubr.f32.mxu0 0.0
    %1470 = vmatmul.mubr.f32.gmra.mrb[0].mxu0 %v1403
    %v1471 = vpop.f32.mrb[0].mxu0
    %v1472 = vadd.f32 0.0, %v1471
    %v1473 = vpop.f32.mrb[0].mxu0
    %1474 = vdwg.mxu0
    %1475 = vrot.lane.b32.xlu0 %v393, 64
    %v1476 = vpop.permute.xlu0 %1475
    %v1479 = vsel %vm400, %v1092, 0
    %1481 = vmatprep.subr.mxu0 0.0
    %1482 = vmatpush1.msra.mxu0 %v1476
    %1483 = vmatprep.subr.mxu0 0.0
    %1484 = vmatpush1.msra.mxu0 0.0
    %1485 = vmatprep.subr.mxu0 0.0
    %1486 = vmatpush1.msra.mxu0 0.0
    %1487 = vmatprep.subr.mxu0 0.0
    %1488 = vmatpush1.msra.mxu0 0.0
    %1489 = vmatprep.subr.mxu0 0.0
    %1490 = vmatpush1.msra.mxu0 0.0
    %1491 = vmatprep.subr.mxu0 0.0
    %1492 = vmatpush1.msra.mxu0 0.0
    %1493 = vmatprep.subr.mxu0 0.0
    %1494 = vmatpush1.msra.mxu0 0.0
    %1495 = vmatprep.subr.mxu0 0.0
    %1496 = vmatpush1.msra.mxu0 0.0
    %1497 = vmatprep.subr.mxu0 0.0
    %1498 = vmatpush1.msra.mxu0 0.0
    %1499 = vmatprep.subr.mxu0 0.0
    %1500 = vmatpush1.msra.mxu0 0.0
    %1501 = vmatprep.subr.mxu0 0.0
    %1502 = vmatpush1.msra.mxu0 0.0
    %1503 = vmatprep.subr.mxu0 0.0
    %1504 = vmatpush1.msra.mxu0 0.0
    %1505 = vmatprep.subr.mxu0 0.0
    %1506 = vmatpush1.msra.mxu0 0.0
    %1507 = vmatprep.subr.mxu0 0.0
    %1508 = vmatpush1.msra.mxu0 0.0
    %1509 = vmatprep.subr.mxu0 0.0
    %1510 = vmatpush1.msra.mxu0 0.0
    %1511 = vmatprep.subr.mxu0 0.0
    %1512 = vmatpush1.msra.mxu0 0.0
    %1513 = vmatprep.subr.mxu0 0.0
    %1514 = vmatpush1.msra.mxu0 0.0
    %1515 = vmatprep.subr.mxu0 0.0
    %1516 = vmatpush1.msra.mxu0 0.0
    %1517 = vmatprep.subr.mxu0 0.0
    %1518 = vmatpush1.msra.mxu0 0.0
    %1519 = vmatprep.subr.mxu0 0.0
    %1520 = vmatpush1.msra.mxu0 0.0
    %1521 = vmatprep.subr.mxu0 0.0
    %1522 = vmatpush1.msra.mxu0 0.0
    %1523 = vmatprep.subr.mxu0 0.0
    %1524 = vmatpush1.msra.mxu0 0.0
    %1525 = vmatprep.subr.mxu0 0.0
    %1526 = vmatpush1.msra.mxu0 0.0
    %1527 = vmatprep.subr.mxu0 0.0
    %1528 = vmatpush1.msra.mxu0 0.0
    %1529 = vmatprep.subr.mxu0 0.0
    %1530 = vmatpush1.msra.mxu0 0.0
    %1531 = vmatprep.subr.mxu0 0.0
    %1532 = vmatpush1.msra.mxu0 0.0
    %1533 = vmatprep.subr.mxu0 0.0
    %1534 = vmatpush1.msra.mxu0 0.0
    %1535 = vmatprep.subr.mxu0 0.0
    %1536 = vmatpush1.msra.mxu0 0.0
    %1537 = vmatprep.subr.mxu0 0.0
    %1538 = vmatpush1.msra.mxu0 0.0
    %1539 = vmatprep.subr.mxu0 0.0
    %1540 = vmatpush1.msra.mxu0 0.0
    %1541 = vmatprep.subr.mxu0 0.0
    %1542 = vmatpush1.msra.mxu0 0.0
    %1543 = vmatprep.subr.mxu0 0.0
    %1544 = vmatpush1.msra.mxu0 0.0
    %1545 = vmatprep.mubr.f32.mxu0 0.0
    %1546 = vmatmul.mubr.f32.gmra.mrb[0].mxu0 %v1479
    %v1547 = vpop.f32.mrb[0].mxu0
    %v1548 = vadd.f32 0.0, %v1547
    %v1549 = vpop.f32.mrb[0].mxu0
    %1550 = vdwg.mxu0
    %1551 = vrot.lane.b32.xlu0 %v395, 64
    %v1552 = vpop.permute.xlu0 %1551
    %v1555 = vsel %vm400, %v1093, 0
    %1557 = vmatprep.subr.mxu0 0.0
    %1558 = vmatpush1.msra.mxu0 %v1552
    %1559 = vmatprep.subr.mxu0 0.0
    %1560 = vmatpush1.msra.mxu0 0.0
    %1561 = vmatprep.subr.mxu0 0.0
    %1562 = vmatpush1.msra.mxu0 0.0
    %1563 = vmatprep.subr.mxu0 0.0
    %1564 = vmatpush1.msra.mxu0 0.0
    %1565 = vmatprep.subr.mxu0 0.0
    %1566 = vmatpush1.msra.mxu0 0.0
    %1567 = vmatprep.subr.mxu0 0.0
    %1568 = vmatpush1.msra.mxu0 0.0
    %1569 = vmatprep.subr.mxu0 0.0
    %1570 = vmatpush1.msra.mxu0 0.0
    %1571 = vmatprep.subr.mxu0 0.0
    %1572 = vmatpush1.msra.mxu0 0.0
    %1573 = vmatprep.subr.mxu0 0.0
    %1574 = vmatpush1.msra.mxu0 0.0
    %1575 = vmatprep.subr.mxu0 0.0
    %1576 = vmatpush1.msra.mxu0 0.0
    %1577 = vmatprep.subr.mxu0 0.0
    %1578 = vmatpush1.msra.mxu0 0.0
    %1579 = vmatprep.subr.mxu0 0.0
    %1580 = vmatpush1.msra.mxu0 0.0
    %1581 = vmatprep.subr.mxu0 0.0
    %1582 = vmatpush1.msra.mxu0 0.0
    %1583 = vmatprep.subr.mxu0 0.0
    %1584 = vmatpush1.msra.mxu0 0.0
    %1585 = vmatprep.subr.mxu0 0.0
    %1586 = vmatpush1.msra.mxu0 0.0
    %1587 = vmatprep.subr.mxu0 0.0
    %1588 = vmatpush1.msra.mxu0 0.0
    %1589 = vmatprep.subr.mxu0 0.0
    %1590 = vmatpush1.msra.mxu0 0.0
    %1591 = vmatprep.subr.mxu0 0.0
    %1592 = vmatpush1.msra.mxu0 0.0
    %1593 = vmatprep.subr.mxu0 0.0
    %1594 = vmatpush1.msra.mxu0 0.0
    %1595 = vmatprep.subr.mxu0 0.0
    %1596 = vmatpush1.msra.mxu0 0.0
    %1597 = vmatprep.subr.mxu0 0.0
    %1598 = vmatpush1.msra.mxu0 0.0
    %1599 = vmatprep.subr.mxu0 0.0
    %1600 = vmatpush1.msra.mxu0 0.0
    %1601 = vmatprep.subr.mxu0 0.0
    %1602 = vmatpush1.msra.mxu0 0.0
    %1603 = vmatprep.subr.mxu0 0.0
    %1604 = vmatpush1.msra.mxu0 0.0
    %1605 = vmatprep.subr.mxu0 0.0
    %1606 = vmatpush1.msra.mxu0 0.0
    %1607 = vmatprep.subr.mxu0 0.0
    %1608 = vmatpush1.msra.mxu0 0.0
    %1609 = vmatprep.subr.mxu0 0.0
    %1610 = vmatpush1.msra.mxu0 0.0
    %1611 = vmatprep.subr.mxu0 0.0
    %1612 = vmatpush1.msra.mxu0 0.0
    %1613 = vmatprep.subr.mxu0 0.0
    %1614 = vmatpush1.msra.mxu0 0.0
    %1615 = vmatprep.subr.mxu0 0.0
    %1616 = vmatpush1.msra.mxu0 0.0
    %1617 = vmatprep.subr.mxu0 0.0
    %1618 = vmatpush1.msra.mxu0 0.0
    %1619 = vmatprep.subr.mxu0 0.0
    %1620 = vmatpush1.msra.mxu0 0.0
    %1621 = vmatprep.mubr.f32.mxu0 0.0
    %1622 = vmatmul.mubr.f32.gmra.mrb[0].mxu0 %v1555
    %v1623 = vpop.f32.mrb[0].mxu0
    %v1624 = vadd.f32 0.0, %v1623
    %v1625 = vpop.f32.mrb[0].mxu0
    %1626 = vdwg.mxu0
    %1627 = vrot.lane.b32.xlu0 %v397, 64
    %v1628 = vpop.permute.xlu0 %1627
    %v1631 = vsel %vm400, %v1094, 0
    %1633 = vmatprep.subr.mxu0 0.0
    %1634 = vmatpush1.msra.mxu0 %v1628
    %1635 = vmatprep.subr.mxu0 0.0
    %1636 = vmatpush1.msra.mxu0 0.0
    %1637 = vmatprep.subr.mxu0 0.0
    %1638 = vmatpush1.msra.mxu0 0.0
    %1639 = vmatprep.subr.mxu0 0.0
    %1640 = vmatpush1.msra.mxu0 0.0
    %1641 = vmatprep.subr.mxu0 0.0
    %1642 = vmatpush1.msra.mxu0 0.0
    %1643 = vmatprep.subr.mxu0 0.0
    %1644 = vmatpush1.msra.mxu0 0.0
    %1645 = vmatprep.subr.mxu0 0.0
    %1646 = vmatpush1.msra.mxu0 0.0
    %1647 = vmatprep.subr.mxu0 0.0
    %1648 = vmatpush1.msra.mxu0 0.0
    %1649 = vmatprep.subr.mxu0 0.0
    %1650 = vmatpush1.msra.mxu0 0.0
    %1651 = vmatprep.subr.mxu0 0.0
    %1652 = vmatpush1.msra.mxu0 0.0
    %1653 = vmatprep.subr.mxu0 0.0
    %1654 = vmatpush1.msra.mxu0 0.0
    %1655 = vmatprep.subr.mxu0 0.0
    %1656 = vmatpush1.msra.mxu0 0.0
    %1657 = vmatprep.subr.mxu0 0.0
    %1658 = vmatpush1.msra.mxu0 0.0
    %1659 = vmatprep.subr.mxu0 0.0
    %1660 = vmatpush1.msra.mxu0 0.0
    %1661 = vmatprep.subr.mxu0 0.0
    %1662 = vmatpush1.msra.mxu0 0.0
    %1663 = vmatprep.subr.mxu0 0.0
    %1664 = vmatpush1.msra.mxu0 0.0
    %1665 = vmatprep.subr.mxu0 0.0
    %1666 = vmatpush1.msra.mxu0 0.0
    %1667 = vmatprep.subr.mxu0 0.0
    %1668 = vmatpush1.msra.mxu0 0.0
    %1669 = vmatprep.subr.mxu0 0.0
    %1670 = vmatpush1.msra.mxu0 0.0
    %1671 = vmatprep.subr.mxu0 0.0
    %1672 = vmatpush1.msra.mxu0 0.0
    %1673 = vmatprep.subr.mxu0 0.0
    %1674 = vmatpush1.msra.mxu0 0.0
    %1675 = vmatprep.subr.mxu0 0.0
    %1676 = vmatpush1.msra.mxu0 0.0
    %1677 = vmatprep.subr.mxu0 0.0
    %1678 = vmatpush1.msra.mxu0 0.0
    %1679 = vmatprep.subr.mxu0 0.0
    %1680 = vmatpush1.msra.mxu0 0.0
    %1681 = vmatprep.subr.mxu0 0.0
    %1682 = vmatpush1.msra.mxu0 0.0
    %1683 = vmatprep.subr.mxu0 0.0
    %1684 = vmatpush1.msra.mxu0 0.0
    %1685 = vmatprep.subr.mxu0 0.0
    %1686 = vmatpush1.msra.mxu0 0.0
    %1687 = vmatprep.subr.mxu0 0.0
    %1688 = vmatpush1.msra.mxu0 0.0
    %1689 = vmatprep.subr.mxu0 0.0
    %1690 = vmatpush1.msra.mxu0 0.0
    %1691 = vmatprep.subr.mxu0 0.0
    %1692 = vmatpush1.msra.mxu0 0.0
    %1693 = vmatprep.subr.mxu0 0.0
    %1694 = vmatpush1.msra.mxu0 0.0
    %1695 = vmatprep.subr.mxu0 0.0
    %1696 = vmatpush1.msra.mxu0 0.0
    %1697 = vmatprep.mubr.f32.mxu0 0.0
    %1698 = vmatmul.mubr.f32.gmra.mrb[0].mxu0 %v1631
    %v1699 = vpop.f32.mrb[0].mxu0
    %v1700 = vadd.f32 0.0, %v1699
    %v1701 = vpop.f32.mrb[0].mxu0
    %1702 = vdwg.mxu0
    %1705 = vrot.lane.b32.xlu0 %v1320, 8
    %v1706 = vpop.permute.xlu0 %1705
    %1707 = vrot.lane.b32.xlu0 %v1396, 8
    %v1708 = vpop.permute.xlu0 %1707
    %1713 = vrot.lane.b32.xlu0 %v1472, 16
    %v1714 = vpop.permute.xlu0 %1713
    %1715 = vrot.lane.b32.xlu0 %v1548, 16
    %v1716 = vpop.permute.xlu0 %1715
    %1721 = vrot.lane.b32.xlu0 %v1624, 24
    %v1722 = vpop.permute.xlu0 %1721
    %1723 = vrot.lane.b32.xlu0 %v1700, 24
    %v1724 = vpop.permute.xlu0 %1723
    %v1727 = vsel %vm400, %v1168, %v1706
    %v1728 = vsel %vm400, %v1244, %v1708
    %vm1729 = vcmask 130048
    %v1730 = vsel %vm1729, %v1727, %v1714
    %v1731 = vsel %vm1729, %v1728, %v1716
    %vm1732 = vcmask 195584
    %v1733 = vsel %vm1732, %v1730, %v1722
    %v1734 = vsel %vm1732, %v1731, %v1724
    %v1735 = vlaneseq
    %v1736 = vshrl.u32 %v1735, 7
    %v1737 = vsub.s32 0, %v1736
    %v1738 = vrot.slane %v297, %v1737
    %v1740 = vsel %vm302, %v1733, 0
    %v1743 = vsel %vm302, %v1734, 0
    %1745 = vmatprep.subr.mxu0 0.0
    %1746 = vmatpush1.msra.mxu0 %v293
    %1747 = vmatprep.subr.mxu0 0.0
    %1748 = vmatpush1.msra.mxu0 %v294
    %1749 = vmatprep.subr.mxu0 0.0
    %1750 = vmatpush1.msra.mxu0 %v295
    %1751 = vmatprep.subr.mxu0 0.0
    %1752 = vmatpush1.msra.mxu0 %v296
    %1753 = vmatprep.subr.mxu0 0.0
    %1754 = vmatpush1.msra.mxu0 0.0
    %1755 = vmatprep.subr.mxu0 0.0
    %1756 = vmatpush1.msra.mxu0 0.0
    %1757 = vmatprep.subr.mxu0 0.0
    %1758 = vmatpush1.msra.mxu0 0.0
    %1759 = vmatprep.subr.mxu0 0.0
    %1760 = vmatpush1.msra.mxu0 0.0
    %1761 = vmatprep.subr.mxu0 0.0
    %1762 = vmatpush1.msra.mxu0 0.0
    %1763 = vmatprep.subr.mxu0 0.0
    %1764 = vmatpush1.msra.mxu0 0.0
    %1765 = vmatprep.subr.mxu0 0.0
    %1766 = vmatpush1.msra.mxu0 0.0
    %1767 = vmatprep.subr.mxu0 0.0
    %1768 = vmatpush1.msra.mxu0 0.0
    %1769 = vmatprep.subr.mxu0 0.0
    %1770 = vmatpush1.msra.mxu0 0.0
    %1771 = vmatprep.subr.mxu0 0.0
    %1772 = vmatpush1.msra.mxu0 0.0
    %1773 = vmatprep.subr.mxu0 0.0
    %1774 = vmatpush1.msra.mxu0 0.0
    %1775 = vmatprep.subr.mxu0 0.0
    %1776 = vmatpush1.msra.mxu0 0.0
    %1777 = vmatprep.subr.mxu0 0.0
    %1778 = vmatpush1.msra.mxu0 0.0
    %1779 = vmatprep.subr.mxu0 0.0
    %1780 = vmatpush1.msra.mxu0 0.0
    %1781 = vmatprep.subr.mxu0 0.0
    %1782 = vmatpush1.msra.mxu0 0.0
    %1783 = vmatprep.subr.mxu0 0.0
    %1784 = vmatpush1.msra.mxu0 0.0
    %1785 = vmatprep.subr.mxu0 0.0
    %1786 = vmatpush1.msra.mxu0 0.0
    %1787 = vmatprep.subr.mxu0 0.0
    %1788 = vmatpush1.msra.mxu0 0.0
    %1789 = vmatprep.subr.mxu0 0.0
    %1790 = vmatpush1.msra.mxu0 0.0
    %1791 = vmatprep.subr.mxu0 0.0
    %1792 = vmatpush1.msra.mxu0 0.0
    %1793 = vmatprep.subr.mxu0 0.0
    %1794 = vmatpush1.msra.mxu0 0.0
    %1795 = vmatprep.subr.mxu0 0.0
    %1796 = vmatpush1.msra.mxu0 0.0
    %1797 = vmatprep.subr.mxu0 0.0
    %1798 = vmatpush1.msra.mxu0 0.0
    %1799 = vmatprep.subr.mxu0 0.0
    %1800 = vmatpush1.msra.mxu0 0.0
    %1801 = vmatprep.subr.mxu0 0.0
    %1802 = vmatpush1.msra.mxu0 0.0
    %1803 = vmatprep.subr.mxu0 0.0
    %1804 = vmatpush1.msra.mxu0 0.0
    %1805 = vmatprep.subr.mxu0 0.0
    %1806 = vmatpush1.msra.mxu0 0.0
    %1807 = vmatprep.subr.mxu0 0.0
    %1808 = vmatpush1.msra.mxu0 0.0
    %1809 = vmatprep.mubr.f32.mxu0 0.0
    %1810 = vmatmul.mubr.f32.gmra.mrb[0].mxu0 %v1740
    %v1811 = vpop.f32.mrb[0].mxu0
    %v1812 = vadd.f32 %v1738, %v1811
    %v1813 = vpop.f32.mrb[0].mxu0
    %1814 = vmatprep.mubr.f32.mxu0 0.0
    %1815 = vmatmul.mubr.f32.gmra.mrb[0].mxu0 %v1743
    %v1816 = vpop.f32.mrb[0].mxu0
    %v1817 = vadd.f32 %v1738, %v1816
    %v1818 = vpop.f32.mrb[0].mxu0
    %1819 = vdwg.mxu0
    %v1820 = vadd.f32 %v286, %v1812
    %v1821 = vadd.f32 %v287, %v1817
    %v1822 = vld [vmem:[%s5 + $0x2] sm:$0x1]
    %v1823 = vld [vmem:[%s5 + $0x3] sm:$0x1]
    %v1824 = vsel %vm302, %v1820, 0.0
    %1825 = vadd.xlane.f32.xlu0 %v1824
    %v1826 = vpop.xlane.xlu0 %1825
    %v1827 = vsel %vm302, %v1821, 0.0
    %1828 = vadd.xlane.f32.xlu0 %v1827
    %v1829 = vpop.xlane.xlu0 %1828
    %v1830 = vrcp.pop 32.0
    %v1831 = vmul.f32 %v1826, %v1830
    %v1832 = vmul.f32 %v1829, %v1830
    %v1833 = vsub.f32 %v1820, %v1831
    %v1834 = vsub.f32 %v1821, %v1832
    %v1835 = vmul.f32 %v1833, %v1833
    %v1836 = vmul.f32 %v1834, %v1834
    %v1837 = vsel %vm302, %v1835, 0.0
    %1838 = vadd.xlane.f32.xlu0 %v1837
    %v1839 = vpop.xlane.xlu0 %1838
    %v1840 = vsel %vm302, %v1836, 0.0
    %1841 = vadd.xlane.f32.xlu0 %v1840
    %v1842 = vpop.xlane.xlu0 %1841
    %v1843 = vmul.f32 %v1839, %v1830
    %v1844 = vmul.f32 %v1842, %v1830
    %v1845 = vadd.f32 %v1843, 1e-05
    %v1846 = vadd.f32 %v1844, 1e-05
    %v1847 = vrsqrt.pop %v1845
    %v1848 = vrsqrt.pop %v1846
    %v1849 = vmul.f32 %v1833, %v1847
    %v1850 = vmul.f32 %v1834, %v1848
    %v1851 = vlaneseq
    %v1852 = vshrl.u32 %v1851, 7
    %v1853 = vsub.s32 0, %v1852
    %v1854 = vrot.slane %v1822, %v1853
    %v1855 = vmul.f32 %v1849, %v1854
    %v1856 = vmul.f32 %v1850, %v1854
    %v1857 = vlaneseq
    %v1858 = vshrl.u32 %v1857, 7
    %v1859 = vsub.s32 0, %v1858
    %v1860 = vrot.slane %v1823, %v1859
    %v1861 = vadd.f32 %v1855, %v1860
    %v1862 = vadd.f32 %v1856, %v1860
    %v1863 = vld [vmem:[%s4 + $0x40] sm:$0xff]
    %v1864 = vld [vmem:[%s4 + $0x48] sm:$0xff]
    %v1865 = vld [vmem:[%s4 + $0x50] sm:$0xff]
    %v1866 = vld [vmem:[%s4 + $0x58] sm:$0xff]
    %v1867 = vld [vmem:[%s5 + $0x4] sm:$0x1]
    %v1868 = vlaneseq
    %v1869 = vshrl.u32 %v1868, 7
    %v1870 = vsub.s32 0, %v1869
    %v1871 = vrot.slane %v1867, %v1870
    %v1873 = vsel %vm302, %v1861, 0
    %v1876 = vsel %vm302, %v1862, 0
    %1878 = vmatprep.subr.mxu0 0.0
    %1879 = vmatpush1.msra.mxu0 %v1863
    %1880 = vmatprep.subr.mxu0 0.0
    %1881 = vmatpush1.msra.mxu0 %v1864
    %1882 = vmatprep.subr.mxu0 0.0
    %1883 = vmatpush1.msra.mxu0 %v1865
    %1884 = vmatprep.subr.mxu0 0.0
    %1885 = vmatpush1.msra.mxu0 %v1866
    %1886 = vmatprep.subr.mxu0 0.0
    %1887 = vmatpush1.msra.mxu0 0.0
    %1888 = vmatprep.subr.mxu0 0.0
    %1889 = vmatpush1.msra.mxu0 0.0
    %1890 = vmatprep.subr.mxu0 0.0
    %1891 = vmatpush1.msra.mxu0 0.0
    %1892 = vmatprep.subr.mxu0 0.0
    %1893 = vmatpush1.msra.mxu0 0.0
    %1894 = vmatprep.subr.mxu0 0.0
    %1895 = vmatpush1.msra.mxu0 0.0
    %1896 = vmatprep.subr.mxu0 0.0
    %1897 = vmatpush1.msra.mxu0 0.0
    %1898 = vmatprep.subr.mxu0 0.0
    %1899 = vmatpush1.msra.mxu0 0.0
    %1900 = vmatprep.subr.mxu0 0.0
    %1901 = vmatpush1.msra.mxu0 0.0
    %1902 = vmatprep.subr.mxu0 0.0
    %1903 = vmatpush1.msra.mxu0 0.0
    %1904 = vmatprep.subr.mxu0 0.0
    %1905 = vmatpush1.msra.mxu0 0.0
    %1906 = vmatprep.subr.mxu0 0.0
    %1907 = vmatpush1.msra.mxu0 0.0
    %1908 = vmatprep.subr.mxu0 0.0
    %1909 = vmatpush1.msra.mxu0 0.0
    %1910 = vmatprep.subr.mxu0 0.0
    %1911 = vmatpush1.msra.mxu0 0.0
    %1912 = vmatprep.subr.mxu0 0.0
    %1913 = vmatpush1.msra.mxu0 0.0
    %1914 = vmatprep.subr.mxu0 0.0
    %1915 = vmatpush1.msra.mxu0 0.0
    %1916 = vmatprep.subr.mxu0 0.0
    %1917 = vmatpush1.msra.mxu0 0.0
    %1918 = vmatprep.subr.mxu0 0.0
    %1919 = vmatpush1.msra.mxu0 0.0
    %1920 = vmatprep.subr.mxu0 0.0
    %1921 = vmatpush1.msra.mxu0 0.0
    %1922 = vmatprep.subr.mxu0 0.0
    %1923 = vmatpush1.msra.mxu0 0.0
    %1924 = vmatprep.subr.mxu0 0.0
    %1925 = vmatpush1.msra.mxu0 0.0
    %1926 = vmatprep.subr.mxu0 0.0
    %1927 = vmatpush1.msra.mxu0 0.0
    %1928 = vmatprep.subr.mxu0 0.0
    %1929 = vmatpush1.msra.mxu0 0.0
    %1930 = vmatprep.subr.mxu0 0.0
    %1931 = vmatpush1.msra.mxu0 0.0
    %1932 = vmatprep.subr.mxu0 0.0
    %1933 = vmatpush1.msra.mxu0 0.0
    %1934 = vmatprep.subr.mxu0 0.0
    %1935 = vmatpush1.msra.mxu0 0.0
    %1936 = vmatprep.subr.mxu0 0.0
    %1937 = vmatpush1.msra.mxu0 0.0
    %1938 = vmatprep.subr.mxu0 0.0
    %1939 = vmatpush1.msra.mxu0 0.0
    %1940 = vmatprep.subr.mxu0 0.0
    %1941 = vmatpush1.msra.mxu0 0.0
    %1942 = vmatprep.mubr.f32.mxu0 0.0
    %1943 = vmatmul.mubr.f32.gmra.mrb[0].mxu0 %v1873
    %v1944 = vpop.f32.mrb[0].mxu0
    %v1945 = vadd.f32 %v1871, %v1944
    %v1946 = vpop.f32.mrb[0].mxu0
    %1947 = vmatprep.mubr.f32.mxu0 0.0
    %1948 = vmatmul.mubr.f32.gmra.mrb[0].mxu0 %v1876
    %v1949 = vpop.f32.mrb[0].mxu0
    %v1950 = vadd.f32 %v1871, %v1949
    %v1951 = vpop.f32.mrb[0].mxu0
    %1952 = vdwg.mxu0
    %v1953 = vld [vmem:[%s4 + $0x60] sm:$0xff]
    %v1954 = vld [vmem:[%s4 + $0x68] sm:$0xff]
    %v1955 = vld [vmem:[%s4 + $0x70] sm:$0xff]
    %v1956 = vld [vmem:[%s4 + $0x78] sm:$0xff]
    %v1957 = vld [vmem:[%s5 + $0x5] sm:$0x1]
    %v1958 = vlaneseq
    %v1959 = vshrl.u32 %v1958, 7
    %v1960 = vsub.s32 0, %v1959
    %v1961 = vrot.slane %v1957, %v1960
    %v1963 = vsel %vm302, %v211, 0
    %v1966 = vsel %vm302, %v283, 0
    %1968 = vmatprep.subr.mxu0 0.0
    %1969 = vmatpush1.msra.mxu0 %v1953
    %1970 = vmatprep.subr.mxu0 0.0
    %1971 = vmatpush1.msra.mxu0 %v1954
    %1972 = vmatprep.subr.mxu0 0.0
    %1973 = vmatpush1.msra.mxu0 %v1955
    %1974 = vmatprep.subr.mxu0 0.0
    %1975 = vmatpush1.msra.mxu0 %v1956
    %1976 = vmatprep.subr.mxu0 0.0
    %1977 = vmatpush1.msra.mxu0 0.0
    %1978 = vmatprep.subr.mxu0 0.0
    %1979 = vmatpush1.msra.mxu0 0.0
    %1980 = vmatprep.subr.mxu0 0.0
    %1981 = vmatpush1.msra.mxu0 0.0
    %1982 = vmatprep.subr.mxu0 0.0
    %1983 = vmatpush1.msra.mxu0 0.0
    %1984 = vmatprep.subr.mxu0 0.0
    %1985 = vmatpush1.msra.mxu0 0.0
    %1986 = vmatprep.subr.mxu0 0.0
    %1987 = vmatpush1.msra.mxu0 0.0
    %1988 = vmatprep.subr.mxu0 0.0
    %1989 = vmatpush1.msra.mxu0 0.0
    %1990 = vmatprep.subr.mxu0 0.0
    %1991 = vmatpush1.msra.mxu0 0.0
    %1992 = vmatprep.subr.mxu0 0.0
    %1993 = vmatpush1.msra.mxu0 0.0
    %1994 = vmatprep.subr.mxu0 0.0
    %1995 = vmatpush1.msra.mxu0 0.0
    %1996 = vmatprep.subr.mxu0 0.0
    %1997 = vmatpush1.msra.mxu0 0.0
    %1998 = vmatprep.subr.mxu0 0.0
    %1999 = vmatpush1.msra.mxu0 0.0
    %2000 = vmatprep.subr.mxu0 0.0
    %2001 = vmatpush1.msra.mxu0 0.0
    %2002 = vmatprep.subr.mxu0 0.0
    %2003 = vmatpush1.msra.mxu0 0.0
    %2004 = vmatprep.subr.mxu0 0.0
    %2005 = vmatpush1.msra.mxu0 0.0
    %2006 = vmatprep.subr.mxu0 0.0
    %2007 = vmatpush1.msra.mxu0 0.0
    %2008 = vmatprep.subr.mxu0 0.0
    %2009 = vmatpush1.msra.mxu0 0.0
    %2010 = vmatprep.subr.mxu0 0.0
    %2011 = vmatpush1.msra.mxu0 0.0
    %2012 = vmatprep.subr.mxu0 0.0
    %2013 = vmatpush1.msra.mxu0 0.0
    %2014 = vmatprep.subr.mxu0 0.0
    %2015 = vmatpush1.msra.mxu0 0.0
    %2016 = vmatprep.subr.mxu0 0.0
    %2017 = vmatpush1.msra.mxu0 0.0
    %2018 = vmatprep.subr.mxu0 0.0
    %2019 = vmatpush1.msra.mxu0 0.0
    %2020 = vmatprep.subr.mxu0 0.0
    %2021 = vmatpush1.msra.mxu0 0.0
    %2022 = vmatprep.subr.mxu0 0.0
    %2023 = vmatpush1.msra.mxu0 0.0
    %2024 = vmatprep.subr.mxu0 0.0
    %2025 = vmatpush1.msra.mxu0 0.0
    %2026 = vmatprep.subr.mxu0 0.0
    %2027 = vmatpush1.msra.mxu0 0.0
    %2028 = vmatprep.subr.mxu0 0.0
    %2029 = vmatpush1.msra.mxu0 0.0
    %2030 = vmatprep.subr.mxu0 0.0
    %2031 = vmatpush1.msra.mxu0 0.0
    %2032 = vmatprep.mubr.f32.mxu0 0.0
    %2033 = vmatmul.mubr.f32.gmra.mrb[0].mxu0 %v1963
    %v2034 = vpop.f32.mrb[0].mxu0
    %v2035 = vadd.f32 %v1961, %v2034
    %v2036 = vpop.f32.mrb[0].mxu0
    %2037 = vmatprep.mubr.f32.mxu0 0.0
    %2038 = vmatmul.mubr.f32.gmra.mrb[0].mxu0 %v1966
    %v2039 = vpop.f32.mrb[0].mxu0
    %v2040 = vadd.f32 %v1961, %v2039
    %v2041 = vpop.f32.mrb[0].mxu0
    %2042 = vdwg.mxu0
    %v2043 = vld [vmem:[%s2] sm:$0xff]
    %v2044 = vld [vmem:[%s2 + $0x8] sm:$0xff]
    %v2046 = vsel %vm400, %v2035, 0
    %2048 = vmatprep.subr.mxu0 0.0
    %2049 = vmatpush1.msra.mxu0 %v2043
    %2050 = vmatprep.subr.mxu0 0.0
    %2051 = vmatpush1.msra.mxu0 0.0
    %2052 = vmatprep.subr.mxu0 0.0
    %2053 = vmatpush1.msra.mxu0 0.0
    %2054 = vmatprep.subr.mxu0 0.0
    %2055 = vmatpush1.msra.mxu0 0.0
    %2056 = vmatprep.subr.mxu0 0.0
    %2057 = vmatpush1.msra.mxu0 0.0
    %2058 = vmatprep.subr.mxu0 0.0
    %2059 = vmatpush1.msra.mxu0 0.0
    %2060 = vmatprep.subr.mxu0 0.0
    %2061 = vmatpush1.msra.mxu0 0.0
    %2062 = vmatprep.subr.mxu0 0.0
    %2063 = vmatpush1.msra.mxu0 0.0
    %2064 = vmatprep.subr.mxu0 0.0
    %2065 = vmatpush1.msra.mxu0 0.0
    %2066 = vmatprep.subr.mxu0 0.0
    %2067 = vmatpush1.msra.mxu0 0.0
    %2068 = vmatprep.subr.mxu0 0.0
    %2069 = vmatpush1.msra.mxu0 0.0
    %2070 = vmatprep.subr.mxu0 0.0
    %2071 = vmatpush1.msra.mxu0 0.0
    %2072 = vmatprep.subr.mxu0 0.0
    %2073 = vmatpush1.msra.mxu0 0.0
    %2074 = vmatprep.subr.mxu0 0.0
    %2075 = vmatpush1.msra.mxu0 0.0
    %2076 = vmatprep.subr.mxu0 0.0
    %2077 = vmatpush1.msra.mxu0 0.0
    %2078 = vmatprep.subr.mxu0 0.0
    %2079 = vmatpush1.msra.mxu0 0.0
    %2080 = vmatprep.subr.mxu0 0.0
    %2081 = vmatpush1.msra.mxu0 0.0
    %2082 = vmatprep.subr.mxu0 0.0
    %2083 = vmatpush1.msra.mxu0 0.0
    %2084 = vmatprep.subr.mxu0 0.0
    %2085 = vmatpush1.msra.mxu0 0.0
    %2086 = vmatprep.subr.mxu0 0.0
    %2087 = vmatpush1.msra.mxu0 0.0
    %2088 = vmatprep.subr.mxu0 0.0
    %2089 = vmatpush1.msra.mxu0 0.0
    %2090 = vmatprep.subr.mxu0 0.0
    %2091 = vmatpush1.msra.mxu0 0.0
    %2092 = vmatprep.subr.mxu0 0.0
    %2093 = vmatpush1.msra.mxu0 0.0
    %2094 = vmatprep.subr.mxu0 0.0
    %2095 = vmatpush1.msra.mxu0 0.0
    %2096 = vmatprep.subr.mxu0 0.0
    %2097 = vmatpush1.msra.mxu0 0.0
    %2098 = vmatprep.subr.mxu0 0.0
    %2099 = vmatpush1.msra.mxu0 0.0
    %2100 = vmatprep.subr.mxu0 0.0
    %2101 = vmatpush1.msra.mxu0 0.0
    %2102 = vmatprep.subr.mxu0 0.0
    %2103 = vmatpush1.msra.mxu0 0.0
    %2104 = vmatprep.subr.mxu0 0.0
    %2105 = vmatpush1.msra.mxu0 0.0
    %2106 = vmatprep.subr.mxu0 0.0
    %2107 = vmatpush1.msra.mxu0 0.0
    %2108 = vmatprep.subr.mxu0 0.0
    %2109 = vmatpush1.msra.mxu0 0.0
    %2110 = vmatprep.subr.mxu0 0.0
    %2111 = vmatpush1.msra.mxu0 0.0
    %2112 = vmatprep.mubr.f32.mxu0 0.0
    %2113 = vmatmul.mubr.f32.gmra.mrb[0].mxu0 %v2046
    %v2114 = vpop.f32.mrb[0].mxu0
    %v2115 = vadd.f32 0.0, %v2114
    %v2116 = vpop.f32.mrb[0].mxu0
    %2117 = vdwg.mxu0
    %v2119 = vsel %vm400, %v2040, 0
    %2121 = vmatprep.subr.mxu0 0.0
    %2122 = vmatpush1.msra.mxu0 %v2044
    %2123 = vmatprep.subr.mxu0 0.0
    %2124 = vmatpush1.msra.mxu0 0.0
    %2125 = vmatprep.subr.mxu0 0.0
    %2126 = vmatpush1.msra.mxu0 0.0
    %2127 = vmatprep.subr.mxu0 0.0
    %2128 = vmatpush1.msra.mxu0 0.0
    %2129 = vmatprep.subr.mxu0 0.0
    %2130 = vmatpush1.msra.mxu0 0.0
    %2131 = vmatprep.subr.mxu0 0.0
    %2132 = vmatpush1.msra.mxu0 0.0
    %2133 = vmatprep.subr.mxu0 0.0
    %2134 = vmatpush1.msra.mxu0 0.0
    %2135 = vmatprep.subr.mxu0 0.0
    %2136 = vmatpush1.msra.mxu0 0.0
    %2137 = vmatprep.subr.mxu0 0.0
    %2138 = vmatpush1.msra.mxu0 0.0
    %2139 = vmatprep.subr.mxu0 0.0
    %2140 = vmatpush1.msra.mxu0 0.0
    %2141 = vmatprep.subr.mxu0 0.0
    %2142 = vmatpush1.msra.mxu0 0.0
    %2143 = vmatprep.subr.mxu0 0.0
    %2144 = vmatpush1.msra.mxu0 0.0
    %2145 = vmatprep.subr.mxu0 0.0
    %2146 = vmatpush1.msra.mxu0 0.0
    %2147 = vmatprep.subr.mxu0 0.0
    %2148 = vmatpush1.msra.mxu0 0.0
    %2149 = vmatprep.subr.mxu0 0.0
    %2150 = vmatpush1.msra.mxu0 0.0
    %2151 = vmatprep.subr.mxu0 0.0
    %2152 = vmatpush1.msra.mxu0 0.0
    %2153 = vmatprep.subr.mxu0 0.0
    %2154 = vmatpush1.msra.mxu0 0.0
    %2155 = vmatprep.subr.mxu0 0.0
    %2156 = vmatpush1.msra.mxu0 0.0
    %2157 = vmatprep.subr.mxu0 0.0
    %2158 = vmatpush1.msra.mxu0 0.0
    %2159 = vmatprep.subr.mxu0 0.0
    %2160 = vmatpush1.msra.mxu0 0.0
    %2161 = vmatprep.subr.mxu0 0.0
    %2162 = vmatpush1.msra.mxu0 0.0
    %2163 = vmatprep.subr.mxu0 0.0
    %2164 = vmatpush1.msra.mxu0 0.0
    %2165 = vmatprep.subr.mxu0 0.0
    %2166 = vmatpush1.msra.mxu0 0.0
    %2167 = vmatprep.subr.mxu0 0.0
    %2168 = vmatpush1.msra.mxu0 0.0
    %2169 = vmatprep.subr.mxu0 0.0
    %2170 = vmatpush1.msra.mxu0 0.0
    %2171 = vmatprep.subr.mxu0 0.0
    %2172 = vmatpush1.msra.mxu0 0.0
    %2173 = vmatprep.subr.mxu0 0.0
    %2174 = vmatpush1.msra.mxu0 0.0
    %2175 = vmatprep.subr.mxu0 0.0
    %2176 = vmatpush1.msra.mxu0 0.0
    %2177 = vmatprep.subr.mxu0 0.0
    %2178 = vmatpush1.msra.mxu0 0.0
    %2179 = vmatprep.subr.mxu0 0.0
    %2180 = vmatpush1.msra.mxu0 0.0
    %2181 = vmatprep.subr.mxu0 0.0
    %2182 = vmatpush1.msra.mxu0 0.0
    %2183 = vmatprep.subr.mxu0 0.0
    %2184 = vmatpush1.msra.mxu0 0.0
    %2185 = vmatprep.mubr.f32.mxu0 0.0
    %2186 = vmatmul.mubr.f32.gmra.mrb[0].mxu0 %v2119
    %v2187 = vpop.f32.mrb[0].mxu0
    %v2188 = vadd.f32 0.0, %v2187
    %v2189 = vpop.f32.mrb[0].mxu0
    %2190 = vdwg.mxu0
    %v2191 = vld [vmem:[%s4 + $0x80] sm:$0xff]
    %v2192 = vld [vmem:[%s4 + $0x88] sm:$0xff]
    %v2193 = vld [vmem:[%s4 + $0x90] sm:$0xff]
    %v2194 = vld [vmem:[%s4 + $0x98] sm:$0xff]
    %v2195 = vld [vmem:[%s5 + $0x6] sm:$0x1]
    %v2196 = vlaneseq
    %v2197 = vshrl.u32 %v2196, 7
    %v2198 = vsub.s32 0, %v2197
    %v2199 = vrot.slane %v2195, %v2198
    %v2201 = vsel %vm302, %v2115, 0
    %v2204 = vsel %vm302, %v2188, 0
    %2206 = vmatprep.subr.mxu0 0.0
    %2207 = vmatpush1.msra.mxu0 %v2191
    %2208 = vmatprep.subr.mxu0 0.0
    %2209 = vmatpush1.msra.mxu0 %v2192
    %2210 = vmatprep.subr.mxu0 0.0
    %2211 = vmatpush1.msra.mxu0 %v2193
    %2212 = vmatprep.subr.mxu0 0.0
    %2213 = vmatpush1.msra.mxu0 %v2194
    %2214 = vmatprep.subr.mxu0 0.0
    %2215 = vmatpush1.msra.mxu0 0.0
    %2216 = vmatprep.subr.mxu0 0.0
    %2217 = vmatpush1.msra.mxu0 0.0
    %2218 = vmatprep.subr.mxu0 0.0
    %2219 = vmatpush1.msra.mxu0 0.0
    %2220 = vmatprep.subr.mxu0 0.0
    %2221 = vmatpush1.msra.mxu0 0.0
    %2222 = vmatprep.subr.mxu0 0.0
    %2223 = vmatpush1.msra.mxu0 0.0
    %2224 = vmatprep.subr.mxu0 0.0
    %2225 = vmatpush1.msra.mxu0 0.0
    %2226 = vmatprep.subr.mxu0 0.0
    %2227 = vmatpush1.msra.mxu0 0.0
    %2228 = vmatprep.subr.mxu0 0.0
    %2229 = vmatpush1.msra.mxu0 0.0
    %2230 = vmatprep.subr.mxu0 0.0
    %2231 = vmatpush1.msra.mxu0 0.0
    %2232 = vmatprep.subr.mxu0 0.0
    %2233 = vmatpush1.msra.mxu0 0.0
    %2234 = vmatprep.subr.mxu0 0.0
    %2235 = vmatpush1.msra.mxu0 0.0
    %2236 = vmatprep.subr.mxu0 0.0
    %2237 = vmatpush1.msra.mxu0 0.0
    %2238 = vmatprep.subr.mxu0 0.0
    %2239 = vmatpush1.msra.mxu0 0.0
    %2240 = vmatprep.subr.mxu0 0.0
    %2241 = vmatpush1.msra.mxu0 0.0
    %2242 = vmatprep.subr.mxu0 0.0
    %2243 = vmatpush1.msra.mxu0 0.0
    %2244 = vmatprep.subr.mxu0 0.0
    %2245 = vmatpush1.msra.mxu0 0.0
    %2246 = vmatprep.subr.mxu0 0.0
    %2247 = vmatpush1.msra.mxu0 0.0
    %2248 = vmatprep.subr.mxu0 0.0
    %2249 = vmatpush1.msra.mxu0 0.0
    %2250 = vmatprep.subr.mxu0 0.0
    %2251 = vmatpush1.msra.mxu0 0.0
    %2252 = vmatprep.subr.mxu0 0.0
    %2253 = vmatpush1.msra.mxu0 0.0
    %2254 = vmatprep.subr.mxu0 0.0
    %2255 = vmatpush1.msra.mxu0 0.0
    %2256 = vmatprep.subr.mxu0 0.0
    %2257 = vmatpush1.msra.mxu0 0.0
    %2258 = vmatprep.subr.mxu0 0.0
    %2259 = vmatpush1.msra.mxu0 0.0
    %2260 = vmatprep.subr.mxu0 0.0
    %2261 = vmatpush1.msra.mxu0 0.0
    %2262 = vmatprep.subr.mxu0 0.0
    %2263 = vmatpush1.msra.mxu0 0.0
    %2264 = vmatprep.subr.mxu0 0.0
    %2265 = vmatpush1.msra.mxu0 0.0
    %2266 = vmatprep.subr.mxu0 0.0
    %2267 = vmatpush1.msra.mxu0 0.0
    %2268 = vmatprep.subr.mxu0 0.0
    %2269 = vmatpush1.msra.mxu0 0.0
    %2270 = vmatprep.mubr.f32.mxu0 0.0
    %2271 = vmatmul.mubr.f32.gmra.mrb[0].mxu0 %v2201
    %v2272 = vpop.f32.mrb[0].mxu0
    %v2273 = vadd.f32 %v2199, %v2272
    %v2274 = vpop.f32.mrb[0].mxu0
    %2275 = vmatprep.mubr.f32.mxu0 0.0
    %2276 = vmatmul.mubr.f32.gmra.mrb[0].mxu0 %v2204
    %v2277 = vpop.f32.mrb[0].mxu0
    %v2278 = vadd.f32 %v2199, %v2277
    %v2279 = vpop.f32.mrb[0].mxu0
    %2280 = vdwg.mxu0
    %v2281 = vsel %vm302, %v2273, 0.0
    %v2282 = vsel %vm302, %v2278, 0.0
    %v2283 = vadd.f32 %v2281, %v2282
    %v2284 = vrot.slane %v2283, 4
    %v2285 = vadd.f32 %v2283, %v2284
    %v2286 = vrot.slane %v2285, 2
    %v2287 = vadd.f32 %v2285, %v2286
    %v2288 = vrot.slane %v2287, 1
    %v2289 = vadd.f32 %v2287, %v2288
    %v2290 = vrcp.pop 16.0
    %v2291 = vmul.f32 %v2289, %v2290
    %v2292 = vsub.f32 %v2273, %v2291
    %v2293 = vsub.f32 %v2278, %v2291
    %v2294 = vmul.f32 %v2292, %v2292
    %v2295 = vmul.f32 %v2293, %v2293
    %v2296 = vsel %vm302, %v2294, 0.0
    %v2297 = vsel %vm302, %v2295, 0.0
    %v2298 = vadd.f32 %v2296, %v2297
    %v2299 = vrot.slane %v2298, 4
    %v2300 = vadd.f32 %v2298, %v2299
    %v2301 = vrot.slane %v2300, 2
    %v2302 = vadd.f32 %v2300, %v2301
    %v2303 = vrot.slane %v2302, 1
    %v2304 = vadd.f32 %v2302, %v2303
    %v2305 = vmul.f32 %v2304, %v2290
    %v2306 = vadd.f32 %v2305, 1e-05
    %v2307 = vrsqrt.pop %v2306
    %v2308 = vmul.f32 %v2292, %v2307
    %v2309 = vmul.f32 %v2293, %v2307
    %v2310 = vld [vmem:[%s5 + $0x7] sm:$0x1]
    %v2311 = vlaneseq
    %v2312 = vshrl.u32 %v2311, 7
    %v2313 = vsub.s32 0, %v2312
    %v2314 = vrot.slane %v2310, %v2313
    %v2315 = vmul.f32 %v2308, %v2314
    %v2316 = vmul.f32 %v2309, %v2314
    %v2317 = vld [vmem:[%s5 + $0x8] sm:$0x1]
    %v2318 = vlaneseq
    %v2319 = vshrl.u32 %v2318, 7
    %v2320 = vsub.s32 0, %v2319
    %v2321 = vrot.slane %v2317, %v2320
    %v2322 = vadd.f32 %v2315, %v2321
    %v2323 = vadd.f32 %v2316, %v2321
    %v2324 = vtanh.pop %v2322
    %v2325 = vtanh.pop %v2323
    %v2326 = vld [vmem:[%s4 + $0xa0] sm:$0xff]
    %v2327 = vld [vmem:[%s4 + $0xa8] sm:$0xff]
    %v2328 = vld [vmem:[%s4 + $0xb0] sm:$0xff]
    %v2329 = vld [vmem:[%s4 + $0xb8] sm:$0xff]
    %v2330 = vld [vmem:[%s5 + $0x9] sm:$0x1]
    %v2331 = vld [vmem:[%s4 + $0xc0] sm:$0xff]
    %v2332 = vld [vmem:[%s4 + $0xc8] sm:$0xff]
    %v2333 = vld [vmem:[%s4 + $0xd0] sm:$0xff]
    %v2334 = vld [vmem:[%s4 + $0xd8] sm:$0xff]
    %v2335 = vld [vmem:[%s5 + $0xa] sm:$0x1]
    %v2336 = vlaneseq
    %v2337 = vshrl.u32 %v2336, 7
    %v2338 = vsub.s32 0, %v2337
    %v2339 = vrot.slane %v2330, %v2338
    %v2341 = vsel %vm302, %v2324, 0
    %v2344 = vsel %vm302, %v2325, 0
    %v2347 = vsel %vm302, %v1945, 0
    %v2350 = vsel %vm302, %v1950, 0
    %2352 = vmatprep.subr.mxu0 0.0
    %2353 = vmatpush1.msra.mxu0 %v2326
    %2354 = vmatprep.subr.mxu0 0.0
    %2355 = vmatpush1.msra.mxu0 %v2327
    %2356 = vmatprep.subr.mxu0 0.0
    %2357 = vmatpush1.msra.mxu0 %v2328
    %2358 = vmatprep.subr.mxu0 0.0
    %2359 = vmatpush1.msra.mxu0 %v2329
    %2360 = vmatprep.subr.mxu0 0.0
    %2361 = vmatpush1.msra.mxu0 0.0
    %2362 = vmatprep.subr.mxu0 0.0
    %2363 = vmatpush1.msra.mxu0 0.0
    %2364 = vmatprep.subr.mxu0 0.0
    %2365 = vmatpush1.msra.mxu0 0.0
    %2366 = vmatprep.subr.mxu0 0.0
    %2367 = vmatpush1.msra.mxu0 0.0
    %2368 = vmatprep.subr.mxu0 0.0
    %2369 = vmatpush1.msra.mxu0 0.0
    %2370 = vmatprep.subr.mxu0 0.0
    %2371 = vmatpush1.msra.mxu0 0.0
    %2372 = vmatprep.subr.mxu0 0.0
    %2373 = vmatpush1.msra.mxu0 0.0
    %2374 = vmatprep.subr.mxu0 0.0
    %2375 = vmatpush1.msra.mxu0 0.0
    %2376 = vmatprep.subr.mxu0 0.0
    %2377 = vmatpush1.msra.mxu0 0.0
    %2378 = vmatprep.subr.mxu0 0.0
    %2379 = vmatpush1.msra.mxu0 0.0
    %2380 = vmatprep.subr.mxu0 0.0
    %2381 = vmatpush1.msra.mxu0 0.0
    %2382 = vmatprep.subr.mxu0 0.0
    %2383 = vmatpush1.msra.mxu0 0.0
    %2384 = vmatprep.subr.mxu0 0.0
    %2385 = vmatpush1.msra.mxu0 0.0
    %2386 = vmatprep.subr.mxu0 0.0
    %2387 = vmatpush1.msra.mxu0 0.0
    %2388 = vmatprep.subr.mxu0 0.0
    %2389 = vmatpush1.msra.mxu0 0.0
    %2390 = vmatprep.subr.mxu0 0.0
    %2391 = vmatpush1.msra.mxu0 0.0
    %2392 = vmatprep.subr.mxu0 0.0
    %2393 = vmatpush1.msra.mxu0 0.0
    %2394 = vmatprep.subr.mxu0 0.0
    %2395 = vmatpush1.msra.mxu0 0.0
    %2396 = vmatprep.subr.mxu0 0.0
    %2397 = vmatpush1.msra.mxu0 0.0
    %2398 = vmatprep.subr.mxu0 0.0
    %2399 = vmatpush1.msra.mxu0 0.0
    %2400 = vmatprep.subr.mxu0 0.0
    %2401 = vmatpush1.msra.mxu0 0.0
    %2402 = vmatprep.subr.mxu0 0.0
    %2403 = vmatpush1.msra.mxu0 0.0
    %2404 = vmatprep.subr.mxu0 0.0
    %2405 = vmatpush1.msra.mxu0 0.0
    %2406 = vmatprep.subr.mxu0 0.0
    %2407 = vmatpush1.msra.mxu0 0.0
    %2408 = vmatprep.subr.mxu0 0.0
    %2409 = vmatpush1.msra.mxu0 0.0
    %2410 = vmatprep.subr.mxu0 0.0
    %2411 = vmatpush1.msra.mxu0 0.0
    %2412 = vmatprep.subr.mxu0 0.0
    %2413 = vmatpush1.msra.mxu0 0.0
    %2414 = vmatprep.subr.mxu0 0.0
    %2415 = vmatpush1.msra.mxu0 0.0
    %2416 = vmatprep.mubr.f32.mxu0 0.0
    %2417 = vmatmul.mubr.f32.gmra.mrb[0].mxu0 %v2341
    %v2418 = vpop.f32.mrb[0].mxu0
    %v2419 = vadd.f32 %v2339, %v2418
    %v2420 = vpop.f32.mrb[0].mxu0
    %2421 = vmatprep.mubr.f32.mxu0 0.0
    %2422 = vmatmul.mubr.f32.gmra.mrb[0].mxu0 %v2344
    %v2423 = vpop.f32.mrb[0].mxu0
    %v2424 = vadd.f32 %v2339, %v2423
    %v2425 = vpop.f32.mrb[0].mxu0
    %2426 = vmatprep.mubr.f32.mxu0 0.0
    %2427 = vmatmul.mubr.f32.gmra.mrb[0].mxu0 %v2347
    %v2428 = vpop.f32.mrb[0].mxu0
    %v2429 = vadd.f32 %v2339, %v2428
    %v2430 = vpop.f32.mrb[0].mxu0
    %2431 = vmatprep.mubr.f32.mxu0 0.0
    %2432 = vmatmul.mubr.f32.gmra.mrb[0].mxu0 %v2350
    %v2433 = vpop.f32.mrb[0].mxu0
    %v2434 = vadd.f32 %v2339, %v2433
    %v2435 = vpop.f32.mrb[0].mxu0
    %2436 = vdwg.mxu0
    %2439 = vrot.lane.b32.xlu0 %v2419, 120
    %v2440 = vpop.permute.xlu0 %2439
    %2441 = vrot.lane.b32.xlu0 %v2424, 120
    %v2442 = vpop.permute.xlu0 %2441
    %2443 = vrot.lane.b32.xlu0 %v2419, 112
    %v2444 = vpop.permute.xlu0 %2443
    %2445 = vrot.lane.b32.xlu0 %v2424, 112
    %v2446 = vpop.permute.xlu0 %2445
    %2447 = vrot.lane.b32.xlu0 %v2419, 104
    %v2448 = vpop.permute.xlu0 %2447
    %2449 = vrot.lane.b32.xlu0 %v2424, 104
    %v2450 = vpop.permute.xlu0 %2449
    %2453 = vrot.lane.b32.xlu0 %v2429, 120
    %v2454 = vpop.permute.xlu0 %2453
    %2455 = vrot.lane.b32.xlu0 %v2434, 120
    %v2456 = vpop.permute.xlu0 %2455
    %2457 = vrot.lane.b32.xlu0 %v2429, 112
    %v2458 = vpop.permute.xlu0 %2457
    %2459 = vrot.lane.b32.xlu0 %v2434, 112
    %v2460 = vpop.permute.xlu0 %2459
    %2461 = vrot.lane.b32.xlu0 %v2429, 104
    %v2462 = vpop.permute.xlu0 %2461
    %2463 = vrot.lane.b32.xlu0 %v2434, 104
    %v2464 = vpop.permute.xlu0 %2463
    %2465 = vrot.lane.b32.xlu0 %v2429, 96
    %v2466 = vpop.permute.xlu0 %2465
    %v2467 = vsel %vm400, %v2419, 0
    %v2469 = vsel %vm400, %v2466, 0
    %2471 = vmatprep.subr.mxu0 0.0
    %2472 = vmatpush1.xpose.msra.mxu0 %v2469
    %2473 = vmatprep.subr.mxu0 0.0
    %2474 = vmatpush1.xpose.msra.mxu0 0.0
    %2475 = vmatprep.subr.mxu0 0.0
    %2476 = vmatpush1.xpose.msra.mxu0 0.0
    %2477 = vmatprep.subr.mxu0 0.0
    %2478 = vmatpush1.xpose.msra.mxu0 0.0
    %2479 = vmatprep.subr.mxu0 0.0
    %2480 = vmatpush1.xpose.msra.mxu0 0.0
    %2481 = vmatprep.subr.mxu0 0.0
    %2482 = vmatpush1.xpose.msra.mxu0 0.0
    %2483 = vmatprep.subr.mxu0 0.0
    %2484 = vmatpush1.xpose.msra.mxu0 0.0
    %2485 = vmatprep.subr.mxu0 0.0
    %2486 = vmatpush1.xpose.msra.mxu0 0.0
    %2487 = vmatprep.subr.mxu0 0.0
    %2488 = vmatpush1.xpose.msra.mxu0 0.0
    %2489 = vmatprep.subr.mxu0 0.0
    %2490 = vmatpush1.xpose.msra.mxu0 0.0
    %2491 = vmatprep.subr.mxu0 0.0
    %2492 = vmatpush1.xpose.msra.mxu0 0.0
    %2493 = vmatprep.subr.mxu0 0.0
    %2494 = vmatpush1.xpose.msra.mxu0 0.0
    %2495 = vmatprep.subr.mxu0 0.0
    %2496 = vmatpush1.xpose.msra.mxu0 0.0
    %2497 = vmatprep.subr.mxu0 0.0
    %2498 = vmatpush1.xpose.msra.mxu0 0.0
    %2499 = vmatprep.subr.mxu0 0.0
    %2500 = vmatpush1.xpose.msra.mxu0 0.0
    %2501 = vmatprep.subr.mxu0 0.0
    %2502 = vmatpush1.xpose.msra.mxu0 0.0
    %2503 = vmatprep.subr.mxu0 0.0
    %2504 = vmatpush1.xpose.msra.mxu0 0.0
    %2505 = vmatprep.subr.mxu0 0.0
    %2506 = vmatpush1.xpose.msra.mxu0 0.0
    %2507 = vmatprep.subr.mxu0 0.0
    %2508 = vmatpush1.xpose.msra.mxu0 0.0
    %2509 = vmatprep.subr.mxu0 0.0
    %2510 = vmatpush1.xpose.msra.mxu0 0.0
    %2511 = vmatprep.subr.mxu0 0.0
    %2512 = vmatpush1.xpose.msra.mxu0 0.0
    %2513 = vmatprep.subr.mxu0 0.0
    %2514 = vmatpush1.xpose.msra.mxu0 0.0
    %2515 = vmatprep.subr.mxu0 0.0
    %2516 = vmatpush1.xpose.msra.mxu0 0.0
    %2517 = vmatprep.subr.mxu0 0.0
    %2518 = vmatpush1.xpose.msra.mxu0 0.0
    %2519 = vmatprep.subr.mxu0 0.0
    %2520 = vmatpush1.xpose.msra.mxu0 0.0
    %2521 = vmatprep.subr.mxu0 0.0
    %2522 = vmatpush1.xpose.msra.mxu0 0.0
    %2523 = vmatprep.subr.mxu0 0.0
    %2524 = vmatpush1.xpose.msra.mxu0 0.0
    %2525 = vmatprep.subr.mxu0 0.0
    %2526 = vmatpush1.xpose.msra.mxu0 0.0
    %2527 = vmatprep.subr.mxu0 0.0
    %2528 = vmatpush1.xpose.msra.mxu0 0.0
    %2529 = vmatprep.subr.mxu0 0.0
    %2530 = vmatpush1.xpose.msra.mxu0 0.0
    %2531 = vmatprep.subr.mxu0 0.0
    %2532 = vmatpush1.xpose.msra.mxu0 0.0
    %2533 = vmatprep.subr.mxu0 0.0
    %2534 = vmatpush1.xpose.msra.mxu0 0.0
    %2535 = vmatprep.mubr.f32.mxu0 0.0
    %2536 = vmatmul.mubr.f32.gmra.mrb[0].mxu0 %v2467
    %v2537 = vpop.f32.mrb[0].mxu0
    %v2538 = vadd.f32 0.0, %v2537
    %v2539 = vpop.f32.mrb[0].mxu0
    %2540 = vdwg.mxu0
    %2541 = vrot.lane.b32.xlu0 %v2434, 96
    %v2542 = vpop.permute.xlu0 %2541
    %v2543 = vsel %vm400, %v2424, 0
    %v2545 = vsel %vm400, %v2542, 0
    %2547 = vmatprep.subr.mxu0 0.0
    %2548 = vmatpush1.xpose.msra.mxu0 %v2545
    %2549 = vmatprep.subr.mxu0 0.0
    %2550 = vmatpush1.xpose.msra.mxu0 0.0
    %2551 = vmatprep.subr.mxu0 0.0
    %2552 = vmatpush1.xpose.msra.mxu0 0.0
    %2553 = vmatprep.subr.mxu0 0.0
    %2554 = vmatpush1.xpose.msra.mxu0 0.0
    %2555 = vmatprep.subr.mxu0 0.0
    %2556 = vmatpush1.xpose.msra.mxu0 0.0
    %2557 = vmatprep.subr.mxu0 0.0
    %2558 = vmatpush1.xpose.msra.mxu0 0.0
    %2559 = vmatprep.subr.mxu0 0.0
    %2560 = vmatpush1.xpose.msra.mxu0 0.0
    %2561 = vmatprep.subr.mxu0 0.0
    %2562 = vmatpush1.xpose.msra.mxu0 0.0
    %2563 = vmatprep.subr.mxu0 0.0
    %2564 = vmatpush1.xpose.msra.mxu0 0.0
    %2565 = vmatprep.subr.mxu0 0.0
    %2566 = vmatpush1.xpose.msra.mxu0 0.0
    %2567 = vmatprep.subr.mxu0 0.0
    %2568 = vmatpush1.xpose.msra.mxu0 0.0
    %2569 = vmatprep.subr.mxu0 0.0
    %2570 = vmatpush1.xpose.msra.mxu0 0.0
    %2571 = vmatprep.subr.mxu0 0.0
    %2572 = vmatpush1.xpose.msra.mxu0 0.0
    %2573 = vmatprep.subr.mxu0 0.0
    %2574 = vmatpush1.xpose.msra.mxu0 0.0
    %2575 = vmatprep.subr.mxu0 0.0
    %2576 = vmatpush1.xpose.msra.mxu0 0.0
    %2577 = vmatprep.subr.mxu0 0.0
    %2578 = vmatpush1.xpose.msra.mxu0 0.0
    %2579 = vmatprep.subr.mxu0 0.0
    %2580 = vmatpush1.xpose.msra.mxu0 0.0
    %2581 = vmatprep.subr.mxu0 0.0
    %2582 = vmatpush1.xpose.msra.mxu0 0.0
    %2583 = vmatprep.subr.mxu0 0.0
    %2584 = vmatpush1.xpose.msra.mxu0 0.0
    %2585 = vmatprep.subr.mxu0 0.0
    %2586 = vmatpush1.xpose.msra.mxu0 0.0
    %2587 = vmatprep.subr.mxu0 0.0
    %2588 = vmatpush1.xpose.msra.mxu0 0.0
    %2589 = vmatprep.subr.mxu0 0.0
    %2590 = vmatpush1.xpose.msra.mxu0 0.0
    %2591 = vmatprep.subr.mxu0 0.0
    %2592 = vmatpush1.xpose.msra.mxu0 0.0
    %2593 = vmatprep.subr.mxu0 0.0
    %2594 = vmatpush1.xpose.msra.mxu0 0.0
    %2595 = vmatprep.subr.mxu0 0.0
    %2596 = vmatpush1.xpose.msra.mxu0 0.0
    %2597 = vmatprep.subr.mxu0 0.0
    %2598 = vmatpush1.xpose.msra.mxu0 0.0
    %2599 = vmatprep.subr.mxu0 0.0
    %2600 = vmatpush1.xpose.msra.mxu0 0.0
    %2601 = vmatprep.subr.mxu0 0.0
    %2602 = vmatpush1.xpose.msra.mxu0 0.0
    %2603 = vmatprep.subr.mxu0 0.0
    %2604 = vmatpush1.xpose.msra.mxu0 0.0
    %2605 = vmatprep.subr.mxu0 0.0
    %2606 = vmatpush1.xpose.msra.mxu0 0.0
    %2607 = vmatprep.subr.mxu0 0.0
    %2608 = vmatpush1.xpose.msra.mxu0 0.0
    %2609 = vmatprep.subr.mxu0 0.0
    %2610 = vmatpush1.xpose.msra.mxu0 0.0
    %2611 = vmatprep.mubr.f32.mxu0 0.0
    %2612 = vmatmul.mubr.f32.gmra.mrb[0].mxu0 %v2543
    %v2613 = vpop.f32.mrb[0].mxu0
    %v2614 = vadd.f32 0.0, %v2613
    %v2615 = vpop.f32.mrb[0].mxu0
    %2616 = vdwg.mxu0
    %2617 = vrot.lane.b32.xlu0 %v2454, 96
    %v2618 = vpop.permute.xlu0 %2617
    %v2619 = vsel %vm400, %v2440, 0
    %v2621 = vsel %vm400, %v2618, 0
    %2623 = vmatprep.subr.mxu0 0.0
    %2624 = vmatpush1.xpose.msra.mxu0 %v2621
    %2625 = vmatprep.subr.mxu0 0.0
    %2626 = vmatpush1.xpose.msra.mxu0 0.0
    %2627 = vmatprep.subr.mxu0 0.0
    %2628 = vmatpush1.xpose.msra.mxu0 0.0
    %2629 = vmatprep.subr.mxu0 0.0
    %2630 = vmatpush1.xpose.msra.mxu0 0.0
    %2631 = vmatprep.subr.mxu0 0.0
    %2632 = vmatpush1.xpose.msra.mxu0 0.0
    %2633 = vmatprep.subr.mxu0 0.0
    %2634 = vmatpush1.xpose.msra.mxu0 0.0
    %2635 = vmatprep.subr.mxu0 0.0
    %2636 = vmatpush1.xpose.msra.mxu0 0.0
    %2637 = vmatprep.subr.mxu0 0.0
    %2638 = vmatpush1.xpose.msra.mxu0 0.0
    %2639 = vmatprep.subr.mxu0 0.0
    %2640 = vmatpush1.xpose.msra.mxu0 0.0
    %2641 = vmatprep.subr.mxu0 0.0
    %2642 = vmatpush1.xpose.msra.mxu0 0.0
    %2643 = vmatprep.subr.mxu0 0.0
    %2644 = vmatpush1.xpose.msra.mxu0 0.0
    %2645 = vmatprep.subr.mxu0 0.0
    %2646 = vmatpush1.xpose.msra.mxu0 0.0
    %2647 = vmatprep.subr.mxu0 0.0
    %2648 = vmatpush1.xpose.msra.mxu0 0.0
    %2649 = vmatprep.subr.mxu0 0.0
    %2650 = vmatpush1.xpose.msra.mxu0 0.0
    %2651 = vmatprep.subr.mxu0 0.0
    %2652 = vmatpush1.xpose.msra.mxu0 0.0
    %2653 = vmatprep.subr.mxu0 0.0
    %2654 = vmatpush1.xpose.msra.mxu0 0.0
    %2655 = vmatprep.subr.mxu0 0.0
    %2656 = vmatpush1.xpose.msra.mxu0 0.0
    %2657 = vmatprep.subr.mxu0 0.0
    %2658 = vmatpush1.xpose.msra.mxu0 0.0
    %2659 = vmatprep.subr.mxu0 0.0
    %2660 = vmatpush1.xpose.msra.mxu0 0.0
    %2661 = vmatprep.subr.mxu0 0.0
    %2662 = vmatpush1.xpose.msra.mxu0 0.0
    %2663 = vmatprep.subr.mxu0 0.0
    %2664 = vmatpush1.xpose.msra.mxu0 0.0
    %2665 = vmatprep.subr.mxu0 0.0
    %2666 = vmatpush1.xpose.msra.mxu0 0.0
    %2667 = vmatprep.subr.mxu0 0.0
    %2668 = vmatpush1.xpose.msra.mxu0 0.0
    %2669 = vmatprep.subr.mxu0 0.0
    %2670 = vmatpush1.xpose.msra.mxu0 0.0
    %2671 = vmatprep.subr.mxu0 0.0
    %2672 = vmatpush1.xpose.msra.mxu0 0.0
    %2673 = vmatprep.subr.mxu0 0.0
    %2674 = vmatpush1.xpose.msra.mxu0 0.0
    %2675 = vmatprep.subr.mxu0 0.0
    %2676 = vmatpush1.xpose.msra.mxu0 0.0
    %2677 = vmatprep.subr.mxu0 0.0
    %2678 = vmatpush1.xpose.msra.mxu0 0.0
    %2679 = vmatprep.subr.mxu0 0.0
    %2680 = vmatpush1.xpose.msra.mxu0 0.0
    %2681 = vmatprep.subr.mxu0 0.0
    %2682 = vmatpush1.xpose.msra.mxu0 0.0
    %2683 = vmatprep.subr.mxu0 0.0
    %2684 = vmatpush1.xpose.msra.mxu0 0.0
    %2685 = vmatprep.subr.mxu0 0.0
    %2686 = vmatpush1.xpose.msra.mxu0 0.0
    %2687 = vmatprep.mubr.f32.mxu0 0.0
    %2688 = vmatmul.mubr.f32.gmra.mrb[0].mxu0 %v2619
    %v2689 = vpop.f32.mrb[0].mxu0
    %v2690 = vadd.f32 0.0, %v2689
    %v2691 = vpop.f32.mrb[0].mxu0
    %2692 = vdwg.mxu0
    %2693 = vrot.lane.b32.xlu0 %v2456, 96
    %v2694 = vpop.permute.xlu0 %2693
    %v2695 = vsel %vm400, %v2442, 0
    %v2697 = vsel %vm400, %v2694, 0
    %2699 = vmatprep.subr.mxu0 0.0
    %2700 = vmatpush1.xpose.msra.mxu0 %v2697
    %2701 = vmatprep.subr.mxu0 0.0
    %2702 = vmatpush1.xpose.msra.mxu0 0.0
    %2703 = vmatprep.subr.mxu0 0.0
    %2704 = vmatpush1.xpose.msra.mxu0 0.0
    %2705 = vmatprep.subr.mxu0 0.0
    %2706 = vmatpush1.xpose.msra.mxu0 0.0
    %2707 = vmatprep.subr.mxu0 0.0
    %2708 = vmatpush1.xpose.msra.mxu0 0.0
    %2709 = vmatprep.subr.mxu0 0.0
    %2710 = vmatpush1.xpose.msra.mxu0 0.0
    %2711 = vmatprep.subr.mxu0 0.0
    %2712 = vmatpush1.xpose.msra.mxu0 0.0
    %2713 = vmatprep.subr.mxu0 0.0
    %2714 = vmatpush1.xpose.msra.mxu0 0.0
    %2715 = vmatprep.subr.mxu0 0.0
    %2716 = vmatpush1.xpose.msra.mxu0 0.0
    %2717 = vmatprep.subr.mxu0 0.0
    %2718 = vmatpush1.xpose.msra.mxu0 0.0
    %2719 = vmatprep.subr.mxu0 0.0
    %2720 = vmatpush1.xpose.msra.mxu0 0.0
    %2721 = vmatprep.subr.mxu0 0.0
    %2722 = vmatpush1.xpose.msra.mxu0 0.0
    %2723 = vmatprep.subr.mxu0 0.0
    %2724 = vmatpush1.xpose.msra.mxu0 0.0
    %2725 = vmatprep.subr.mxu0 0.0
    %2726 = vmatpush1.xpose.msra.mxu0 0.0
    %2727 = vmatprep.subr.mxu0 0.0
    %2728 = vmatpush1.xpose.msra.mxu0 0.0
    %2729 = vmatprep.subr.mxu0 0.0
    %2730 = vmatpush1.xpose.msra.mxu0 0.0
    %2731 = vmatprep.subr.mxu0 0.0
    %2732 = vmatpush1.xpose.msra.mxu0 0.0
    %2733 = vmatprep.subr.mxu0 0.0
    %2734 = vmatpush1.xpose.msra.mxu0 0.0
    %2735 = vmatprep.subr.mxu0 0.0
    %2736 = vmatpush1.xpose.msra.mxu0 0.0
    %2737 = vmatprep.subr.mxu0 0.0
    %2738 = vmatpush1.xpose.msra.mxu0 0.0
    %2739 = vmatprep.subr.mxu0 0.0
    %2740 = vmatpush1.xpose.msra.mxu0 0.0
    %2741 = vmatprep.subr.mxu0 0.0
    %2742 = vmatpush1.xpose.msra.mxu0 0.0
    %2743 = vmatprep.subr.mxu0 0.0
    %2744 = vmatpush1.xpose.msra.mxu0 0.0
    %2745 = vmatprep.subr.mxu0 0.0
    %2746 = vmatpush1.xpose.msra.mxu0 0.0
    %2747 = vmatprep.subr.mxu0 0.0
    %2748 = vmatpush1.xpose.msra.mxu0 0.0
    %2749 = vmatprep.subr.mxu0 0.0
    %2750 = vmatpush1.xpose.msra.mxu0 0.0
    %2751 = vmatprep.subr.mxu0 0.0
    %2752 = vmatpush1.xpose.msra.mxu0 0.0
    %2753 = vmatprep.subr.mxu0 0.0
    %2754 = vmatpush1.xpose.msra.mxu0 0.0
    %2755 = vmatprep.subr.mxu0 0.0
    %2756 = vmatpush1.xpose.msra.mxu0 0.0
    %2757 = vmatprep.subr.mxu0 0.0
    %2758 = vmatpush1.xpose.msra.mxu0 0.0
    %2759 = vmatprep.subr.mxu0 0.0
    %2760 = vmatpush1.xpose.msra.mxu0 0.0
    %2761 = vmatprep.subr.mxu0 0.0
    %2762 = vmatpush1.xpose.msra.mxu0 0.0
    %2763 = vmatprep.mubr.f32.mxu0 0.0
    %2764 = vmatmul.mubr.f32.gmra.mrb[0].mxu0 %v2695
    %v2765 = vpop.f32.mrb[0].mxu0
    %v2766 = vadd.f32 0.0, %v2765
    %v2767 = vpop.f32.mrb[0].mxu0
    %2768 = vdwg.mxu0
    %2769 = vrot.lane.b32.xlu0 %v2458, 96
    %v2770 = vpop.permute.xlu0 %2769
    %v2771 = vsel %vm400, %v2444, 0
    %v2773 = vsel %vm400, %v2770, 0
    %2775 = vmatprep.subr.mxu0 0.0
    %2776 = vmatpush1.xpose.msra.mxu0 %v2773
    %2777 = vmatprep.subr.mxu0 0.0
    %2778 = vmatpush1.xpose.msra.mxu0 0.0
    %2779 = vmatprep.subr.mxu0 0.0
    %2780 = vmatpush1.xpose.msra.mxu0 0.0
    %2781 = vmatprep.subr.mxu0 0.0
    %2782 = vmatpush1.xpose.msra.mxu0 0.0
    %2783 = vmatprep.subr.mxu0 0.0
    %2784 = vmatpush1.xpose.msra.mxu0 0.0
    %2785 = vmatprep.subr.mxu0 0.0
    %2786 = vmatpush1.xpose.msra.mxu0 0.0
    %2787 = vmatprep.subr.mxu0 0.0
    %2788 = vmatpush1.xpose.msra.mxu0 0.0
    %2789 = vmatprep.subr.mxu0 0.0
    %2790 = vmatpush1.xpose.msra.mxu0 0.0
    %2791 = vmatprep.subr.mxu0 0.0
    %2792 = vmatpush1.xpose.msra.mxu0 0.0
    %2793 = vmatprep.subr.mxu0 0.0
    %2794 = vmatpush1.xpose.msra.mxu0 0.0
    %2795 = vmatprep.subr.mxu0 0.0
    %2796 = vmatpush1.xpose.msra.mxu0 0.0
    %2797 = vmatprep.subr.mxu0 0.0
    %2798 = vmatpush1.xpose.msra.mxu0 0.0
    %2799 = vmatprep.subr.mxu0 0.0
    %2800 = vmatpush1.xpose.msra.mxu0 0.0
    %2801 = vmatprep.subr.mxu0 0.0
    %2802 = vmatpush1.xpose.msra.mxu0 0.0
    %2803 = vmatprep.subr.mxu0 0.0
    %2804 = vmatpush1.xpose.msra.mxu0 0.0
    %2805 = vmatprep.subr.mxu0 0.0
    %2806 = vmatpush1.xpose.msra.mxu0 0.0
    %2807 = vmatprep.subr.mxu0 0.0
    %2808 = vmatpush1.xpose.msra.mxu0 0.0
    %2809 = vmatprep.subr.mxu0 0.0
    %2810 = vmatpush1.xpose.msra.mxu0 0.0
    %2811 = vmatprep.subr.mxu0 0.0
    %2812 = vmatpush1.xpose.msra.mxu0 0.0
    %2813 = vmatprep.subr.mxu0 0.0
    %2814 = vmatpush1.xpose.msra.mxu0 0.0
    %2815 = vmatprep.subr.mxu0 0.0
    %2816 = vmatpush1.xpose.msra.mxu0 0.0
    %2817 = vmatprep.subr.mxu0 0.0
    %2818 = vmatpush1.xpose.msra.mxu0 0.0
    %2819 = vmatprep.subr.mxu0 0.0
    %2820 = vmatpush1.xpose.msra.mxu0 0.0
    %2821 = vmatprep.subr.mxu0 0.0
    %2822 = vmatpush1.xpose.msra.mxu0 0.0
    %2823 = vmatprep.subr.mxu0 0.0
    %2824 = vmatpush1.xpose.msra.mxu0 0.0
    %2825 = vmatprep.subr.mxu0 0.0
    %2826 = vmatpush1.xpose.msra.mxu0 0.0
    %2827 = vmatprep.subr.mxu0 0.0
    %2828 = vmatpush1.xpose.msra.mxu0 0.0
    %2829 = vmatprep.subr.mxu0 0.0
    %2830 = vmatpush1.xpose.msra.mxu0 0.0
    %2831 = vmatprep.subr.mxu0 0.0
    %2832 = vmatpush1.xpose.msra.mxu0 0.0
    %2833 = vmatprep.subr.mxu0 0.0
    %2834 = vmatpush1.xpose.msra.mxu0 0.0
    %2835 = vmatprep.subr.mxu0 0.0
    %2836 = vmatpush1.xpose.msra.mxu0 0.0
    %2837 = vmatprep.subr.mxu0 0.0
    %2838 = vmatpush1.xpose.msra.mxu0 0.0
    %2839 = vmatprep.mubr.f32.mxu0 0.0
    %2840 = vmatmul.mubr.f32.gmra.mrb[0].mxu0 %v2771
    %v2841 = vpop.f32.mrb[0].mxu0
    %v2842 = vadd.f32 0.0, %v2841
    %v2843 = vpop.f32.mrb[0].mxu0
    %2844 = vdwg.mxu0
    %2845 = vrot.lane.b32.xlu0 %v2460, 96
    %v2846 = vpop.permute.xlu0 %2845
    %v2847 = vsel %vm400, %v2446, 0
    %v2849 = vsel %vm400, %v2846, 0
    %2851 = vmatprep.subr.mxu0 0.0
    %2852 = vmatpush1.xpose.msra.mxu0 %v2849
    %2853 = vmatprep.subr.mxu0 0.0
    %2854 = vmatpush1.xpose.msra.mxu0 0.0
    %2855 = vmatprep.subr.mxu0 0.0
    %2856 = vmatpush1.xpose.msra.mxu0 0.0
    %2857 = vmatprep.subr.mxu0 0.0
    %2858 = vmatpush1.xpose.msra.mxu0 0.0
    %2859 = vmatprep.subr.mxu0 0.0
    %2860 = vmatpush1.xpose.msra.mxu0 0.0
    %2861 = vmatprep.subr.mxu0 0.0
    %2862 = vmatpush1.xpose.msra.mxu0 0.0
    %2863 = vmatprep.subr.mxu0 0.0
    %2864 = vmatpush1.xpose.msra.mxu0 0.0
    %2865 = vmatprep.subr.mxu0 0.0
    %2866 = vmatpush1.xpose.msra.mxu0 0.0
    %2867 = vmatprep.subr.mxu0 0.0
    %2868 = vmatpush1.xpose.msra.mxu0 0.0
    %2869 = vmatprep.subr.mxu0 0.0
    %2870 = vmatpush1.xpose.msra.mxu0 0.0
    %2871 = vmatprep.subr.mxu0 0.0
    %2872 = vmatpush1.xpose.msra.mxu0 0.0
    %2873 = vmatprep.subr.mxu0 0.0
    %2874 = vmatpush1.xpose.msra.mxu0 0.0
    %2875 = vmatprep.subr.mxu0 0.0
    %2876 = vmatpush1.xpose.msra.mxu0 0.0
    %2877 = vmatprep.subr.mxu0 0.0
    %2878 = vmatpush1.xpose.msra.mxu0 0.0
    %2879 = vmatprep.subr.mxu0 0.0
    %2880 = vmatpush1.xpose.msra.mxu0 0.0
    %2881 = vmatprep.subr.mxu0 0.0
    %2882 = vmatpush1.xpose.msra.mxu0 0.0
    %2883 = vmatprep.subr.mxu0 0.0
    %2884 = vmatpush1.xpose.msra.mxu0 0.0
    %2885 = vmatprep.subr.mxu0 0.0
    %2886 = vmatpush1.xpose.msra.mxu0 0.0
    %2887 = vmatprep.subr.mxu0 0.0
    %2888 = vmatpush1.xpose.msra.mxu0 0.0
    %2889 = vmatprep.subr.mxu0 0.0
    %2890 = vmatpush1.xpose.msra.mxu0 0.0
    %2891 = vmatprep.subr.mxu0 0.0
    %2892 = vmatpush1.xpose.msra.mxu0 0.0
    %2893 = vmatprep.subr.mxu0 0.0
    %2894 = vmatpush1.xpose.msra.mxu0 0.0
    %2895 = vmatprep.subr.mxu0 0.0
    %2896 = vmatpush1.xpose.msra.mxu0 0.0
    %2897 = vmatprep.subr.mxu0 0.0
    %2898 = vmatpush1.xpose.msra.mxu0 0.0
    %2899 = vmatprep.subr.mxu0 0.0
    %2900 = vmatpush1.xpose.msra.mxu0 0.0
    %2901 = vmatprep.subr.mxu0 0.0
    %2902 = vmatpush1.xpose.msra.mxu0 0.0
    %2903 = vmatprep.subr.mxu0 0.0
    %2904 = vmatpush1.xpose.msra.mxu0 0.0
    %2905 = vmatprep.subr.mxu0 0.0
    %2906 = vmatpush1.xpose.msra.mxu0 0.0
    %2907 = vmatprep.subr.mxu0 0.0
    %2908 = vmatpush1.xpose.msra.mxu0 0.0
    %2909 = vmatprep.subr.mxu0 0.0
    %2910 = vmatpush1.xpose.msra.mxu0 0.0
    %2911 = vmatprep.subr.mxu0 0.0
    %2912 = vmatpush1.xpose.msra.mxu0 0.0
    %2913 = vmatprep.subr.mxu0 0.0
    %2914 = vmatpush1.xpose.msra.mxu0 0.0
    %2915 = vmatprep.mubr.f32.mxu0 0.0
    %2916 = vmatmul.mubr.f32.gmra.mrb[0].mxu0 %v2847
    %v2917 = vpop.f32.mrb[0].mxu0
    %v2918 = vadd.f32 0.0, %v2917
    %v2919 = vpop.f32.mrb[0].mxu0
    %2920 = vdwg.mxu0
    %2921 = vrot.lane.b32.xlu0 %v2462, 96
    %v2922 = vpop.permute.xlu0 %2921
    %v2923 = vsel %vm400, %v2448, 0
    %v2925 = vsel %vm400, %v2922, 0
    %2927 = vmatprep.subr.mxu0 0.0
    %2928 = vmatpush1.xpose.msra.mxu0 %v2925
    %2929 = vmatprep.subr.mxu0 0.0
    %2930 = vmatpush1.xpose.msra.mxu0 0.0
    %2931 = vmatprep.subr.mxu0 0.0
    %2932 = vmatpush1.xpose.msra.mxu0 0.0
    %2933 = vmatprep.subr.mxu0 0.0
    %2934 = vmatpush1.xpose.msra.mxu0 0.0
    %2935 = vmatprep.subr.mxu0 0.0
    %2936 = vmatpush1.xpose.msra.mxu0 0.0
    %2937 = vmatprep.subr.mxu0 0.0
    %2938 = vmatpush1.xpose.msra.mxu0 0.0
    %2939 = vmatprep.subr.mxu0 0.0
    %2940 = vmatpush1.xpose.msra.mxu0 0.0
    %2941 = vmatprep.subr.mxu0 0.0
    %2942 = vmatpush1.xpose.msra.mxu0 0.0
    %2943 = vmatprep.subr.mxu0 0.0
    %2944 = vmatpush1.xpose.msra.mxu0 0.0
    %2945 = vmatprep.subr.mxu0 0.0
    %2946 = vmatpush1.xpose.msra.mxu0 0.0
    %2947 = vmatprep.subr.mxu0 0.0
    %2948 = vmatpush1.xpose.msra.mxu0 0.0
    %2949 = vmatprep.subr.mxu0 0.0
    %2950 = vmatpush1.xpose.msra.mxu0 0.0
    %2951 = vmatprep.subr.mxu0 0.0
    %2952 = vmatpush1.xpose.msra.mxu0 0.0
    %2953 = vmatprep.subr.mxu0 0.0
    %2954 = vmatpush1.xpose.msra.mxu0 0.0
    %2955 = vmatprep.subr.mxu0 0.0
    %2956 = vmatpush1.xpose.msra.mxu0 0.0
    %2957 = vmatprep.subr.mxu0 0.0
    %2958 = vmatpush1.xpose.msra.mxu0 0.0
    %2959 = vmatprep.subr.mxu0 0.0
    %2960 = vmatpush1.xpose.msra.mxu0 0.0
    %2961 = vmatprep.subr.mxu0 0.0
    %2962 = vmatpush1.xpose.msra.mxu0 0.0
    %2963 = vmatprep.subr.mxu0 0.0
    %2964 = vmatpush1.xpose.msra.mxu0 0.0
    %2965 = vmatprep.subr.mxu0 0.0
    %2966 = vmatpush1.xpose.msra.mxu0 0.0
    %2967 = vmatprep.subr.mxu0 0.0
    %2968 = vmatpush1.xpose.msra.mxu0 0.0
    %2969 = vmatprep.subr.mxu0 0.0
    %2970 = vmatpush1.xpose.msra.mxu0 0.0
    %2971 = vmatprep.subr.mxu0 0.0
    %2972 = vmatpush1.xpose.msra.mxu0 0.0
    %2973 = vmatprep.subr.mxu0 0.0
    %2974 = vmatpush1.xpose.msra.mxu0 0.0
    %2975 = vmatprep.subr.mxu0 0.0
    %2976 = vmatpush1.xpose.msra.mxu0 0.0
    %2977 = vmatprep.subr.mxu0 0.0
    %2978 = vmatpush1.xpose.msra.mxu0 0.0
    %2979 = vmatprep.subr.mxu0 0.0
    %2980 = vmatpush1.xpose.msra.mxu0 0.0
    %2981 = vmatprep.subr.mxu0 0.0
    %2982 = vmatpush1.xpose.msra.mxu0 0.0
    %2983 = vmatprep.subr.mxu0 0.0
    %2984 = vmatpush1.xpose.msra.mxu0 0.0
    %2985 = vmatprep.subr.mxu0 0.0
    %2986 = vmatpush1.xpose.msra.mxu0 0.0
    %2987 = vmatprep.subr.mxu0 0.0
    %2988 = vmatpush1.xpose.msra.mxu0 0.0
    %2989 = vmatprep.subr.mxu0 0.0
    %2990 = vmatpush1.xpose.msra.mxu0 0.0
    %2991 = vmatprep.mubr.f32.mxu0 0.0
    %2992 = vmatmul.mubr.f32.gmra.mrb[0].mxu0 %v2923
    %v2993 = vpop.f32.mrb[0].mxu0
    %v2994 = vadd.f32 0.0, %v2993
    %v2995 = vpop.f32.mrb[0].mxu0
    %2996 = vdwg.mxu0
    %2997 = vrot.lane.b32.xlu0 %v2464, 96
    %v2998 = vpop.permute.xlu0 %2997
    %v2999 = vsel %vm400, %v2450, 0
    %v3001 = vsel %vm400, %v2998, 0
    %3003 = vmatprep.subr.mxu0 0.0
    %3004 = vmatpush1.xpose.msra.mxu0 %v3001
    %3005 = vmatprep.subr.mxu0 0.0
    %3006 = vmatpush1.xpose.msra.mxu0 0.0
    %3007 = vmatprep.subr.mxu0 0.0
    %3008 = vmatpush1.xpose.msra.mxu0 0.0
    %3009 = vmatprep.subr.mxu0 0.0
    %3010 = vmatpush1.xpose.msra.mxu0 0.0
    %3011 = vmatprep.subr.mxu0 0.0
    %3012 = vmatpush1.xpose.msra.mxu0 0.0
    %3013 = vmatprep.subr.mxu0 0.0
    %3014 = vmatpush1.xpose.msra.mxu0 0.0
    %3015 = vmatprep.subr.mxu0 0.0
    %3016 = vmatpush1.xpose.msra.mxu0 0.0
    %3017 = vmatprep.subr.mxu0 0.0
    %3018 = vmatpush1.xpose.msra.mxu0 0.0
    %3019 = vmatprep.subr.mxu0 0.0
    %3020 = vmatpush1.xpose.msra.mxu0 0.0
    %3021 = vmatprep.subr.mxu0 0.0
    %3022 = vmatpush1.xpose.msra.mxu0 0.0
    %3023 = vmatprep.subr.mxu0 0.0
    %3024 = vmatpush1.xpose.msra.mxu0 0.0
    %3025 = vmatprep.subr.mxu0 0.0
    %3026 = vmatpush1.xpose.msra.mxu0 0.0
    %3027 = vmatprep.subr.mxu0 0.0
    %3028 = vmatpush1.xpose.msra.mxu0 0.0
    %3029 = vmatprep.subr.mxu0 0.0
    %3030 = vmatpush1.xpose.msra.mxu0 0.0
    %3031 = vmatprep.subr.mxu0 0.0
    %3032 = vmatpush1.xpose.msra.mxu0 0.0
    %3033 = vmatprep.subr.mxu0 0.0
    %3034 = vmatpush1.xpose.msra.mxu0 0.0
    %3035 = vmatprep.subr.mxu0 0.0
    %3036 = vmatpush1.xpose.msra.mxu0 0.0
    %3037 = vmatprep.subr.mxu0 0.0
    %3038 = vmatpush1.xpose.msra.mxu0 0.0
    %3039 = vmatprep.subr.mxu0 0.0
    %3040 = vmatpush1.xpose.msra.mxu0 0.0
    %3041 = vmatprep.subr.mxu0 0.0
    %3042 = vmatpush1.xpose.msra.mxu0 0.0
    %3043 = vmatprep.subr.mxu0 0.0
    %3044 = vmatpush1.xpose.msra.mxu0 0.0
    %3045 = vmatprep.subr.mxu0 0.0
    %3046 = vmatpush1.xpose.msra.mxu0 0.0
    %3047 = vmatprep.subr.mxu0 0.0
    %3048 = vmatpush1.xpose.msra.mxu0 0.0
    %3049 = vmatprep.subr.mxu0 0.0
    %3050 = vmatpush1.xpose.msra.mxu0 0.0
    %3051 = vmatprep.subr.mxu0 0.0
    %3052 = vmatpush1.xpose.msra.mxu0 0.0
    %3053 = vmatprep.subr.mxu0 0.0
    %3054 = vmatpush1.xpose.msra.mxu0 0.0
    %3055 = vmatprep.subr.mxu0 0.0
    %3056 = vmatpush1.xpose.msra.mxu0 0.0
    %3057 = vmatprep.subr.mxu0 0.0
    %3058 = vmatpush1.xpose.msra.mxu0 0.0
    %3059 = vmatprep.subr.mxu0 0.0
    %3060 = vmatpush1.xpose.msra.mxu0 0.0
    %3061 = vmatprep.subr.mxu0 0.0
    %3062 = vmatpush1.xpose.msra.mxu0 0.0
    %3063 = vmatprep.subr.mxu0 0.0
    %3064 = vmatpush1.xpose.msra.mxu0 0.0
    %3065 = vmatprep.subr.mxu0 0.0
    %3066 = vmatpush1.xpose.msra.mxu0 0.0
    %3067 = vmatprep.mubr.f32.mxu0 0.0
    %3068 = vmatmul.mubr.f32.gmra.mrb[0].mxu0 %v2999
    %v3069 = vpop.f32.mrb[0].mxu0
    %v3070 = vadd.f32 0.0, %v3069
    %v3071 = vpop.f32.mrb[0].mxu0
    %3072 = vdwg.mxu0
    %v3073 = vsel %vm400, %v2538, -inf
    %3074 = vmax.xlane.f32.xlu0 %v3073
    %v3075 = vpop.xlane.xlu0 %3074
    %v3076 = vsel %vm400, %v2614, -inf
    %3077 = vmax.xlane.f32.xlu0 %v3076
    %v3078 = vpop.xlane.xlu0 %3077
    %v3079 = vsel %vm400, %v2690, -inf
    %3080 = vmax.xlane.f32.xlu0 %v3079
    %v3081 = vpop.xlane.xlu0 %3080
    %v3082 = vsel %vm400, %v2766, -inf
    %3083 = vmax.xlane.f32.xlu0 %v3082
    %v3084 = vpop.xlane.xlu0 %3083
    %v3085 = vsel %vm400, %v2842, -inf
    %3086 = vmax.xlane.f32.xlu0 %v3085
    %v3087 = vpop.xlane.xlu0 %3086
    %v3088 = vsel %vm400, %v2918, -inf
    %3089 = vmax.xlane.f32.xlu0 %v3088
    %v3090 = vpop.xlane.xlu0 %3089
    %v3091 = vsel %vm400, %v2994, -inf
    %3092 = vmax.xlane.f32.xlu0 %v3091
    %v3093 = vpop.xlane.xlu0 %3092
    %v3094 = vsel %vm400, %v3070, -inf
    %3095 = vmax.xlane.f32.xlu0 %v3094
    %v3096 = vpop.xlane.xlu0 %3095
    %v3097 = vsub.f32 %v2538, %v3075
    %v3098 = vsub.f32 %v2614, %v3078
    %v3099 = vsub.f32 %v2690, %v3081
    %v3100 = vsub.f32 %v2766, %v3084
    %v3101 = vsub.f32 %v2842, %v3087
    %v3102 = vsub.f32 %v2918, %v3090
    %v3103 = vsub.f32 %v2994, %v3093
    %v3104 = vsub.f32 %v3070, %v3096
    %v3105 = vmul.f32 %v3097, 1.442695
    %v3106 = vpow.pop %v3105
    %v3107 = vmul.f32 %v3098, 1.442695
    %v3108 = vpow.pop %v3107
    %v3109 = vmul.f32 %v3099, 1.442695
    %v3110 = vpow.pop %v3109
    %v3111 = vmul.f32 %v3100, 1.442695
    %v3112 = vpow.pop %v3111
    %v3113 = vmul.f32 %v3101, 1.442695
    %v3114 = vpow.pop %v3113
    %v3115 = vmul.f32 %v3102, 1.442695
    %v3116 = vpow.pop %v3115
    %v3117 = vmul.f32 %v3103, 1.442695
    %v3118 = vpow.pop %v3117
    %v3119 = vmul.f32 %v3104, 1.442695
    %v3120 = vpow.pop %v3119
    %v3121 = vsel %vm400, %v3106, 0.0
    %3122 = vadd.xlane.f32.xlu0 %v3121
    %v3123 = vpop.xlane.xlu0 %3122
    %v3124 = vsel %vm400, %v3108, 0.0
    %3125 = vadd.xlane.f32.xlu0 %v3124
    %v3126 = vpop.xlane.xlu0 %3125
    %v3127 = vsel %vm400, %v3110, 0.0
    %3128 = vadd.xlane.f32.xlu0 %v3127
    %v3129 = vpop.xlane.xlu0 %3128
    %v3130 = vsel %vm400, %v3112, 0.0
    %3131 = vadd.xlane.f32.xlu0 %v3130
    %v3132 = vpop.xlane.xlu0 %3131
    %v3133 = vsel %vm400, %v3114, 0.0
    %3134 = vadd.xlane.f32.xlu0 %v3133
    %v3135 = vpop.xlane.xlu0 %3134
    %v3136 = vsel %vm400, %v3116, 0.0
    %3137 = vadd.xlane.f32.xlu0 %v3136
    %v3138 = vpop.xlane.xlu0 %3137
    %v3139 = vsel %vm400, %v3118, 0.0
    %3140 = vadd.xlane.f32.xlu0 %v3139
    %v3141 = vpop.xlane.xlu0 %3140
    %v3142 = vsel %vm400, %v3120, 0.0
    %3143 = vadd.xlane.f32.xlu0 %v3142
    %v3144 = vpop.xlane.xlu0 %3143
    %v3145 = vrcp.pop %v3123
    %v3146 = vrcp.pop %v3126
    %v3147 = vrcp.pop %v3129
    %v3148 = vrcp.pop %v3132
    %v3149 = vrcp.pop %v3135
    %v3150 = vrcp.pop %v3138
    %v3151 = vrcp.pop %v3141
    %v3152 = vrcp.pop %v3144
    %v3153 = vmul.f32 %v3106, %v3145
    %v3154 = vmul.f32 %v3108, %v3146
    %v3155 = vmul.f32 %v3110, %v3147
    %v3156 = vmul.f32 %v3112, %v3148
    %v3157 = vmul.f32 %v3114, %v3149
    %v3158 = vmul.f32 %v3116, %v3150
    %v3159 = vmul.f32 %v3118, %v3151
    %v3160 = vmul.f32 %v3120, %v3152
    %3161 = vrot.lane.b32.xlu0 %v2429, 64
    %v3162 = vpop.permute.xlu0 %3161
    %v3165 = vsel %vm400, %v3153, 0
    %3167 = vmatprep.subr.mxu0 0.0
    %3168 = vmatpush1.msra.mxu0 %v3162
    %3169 = vmatprep.subr.mxu0 0.0
    %3170 = vmatpush1.msra.mxu0 0.0
    %3171 = vmatprep.subr.mxu0 0.0
    %3172 = vmatpush1.msra.mxu0 0.0
    %3173 = vmatprep.subr.mxu0 0.0
    %3174 = vmatpush1.msra.mxu0 0.0
    %3175 = vmatprep.subr.mxu0 0.0
    %3176 = vmatpush1.msra.mxu0 0.0
    %3177 = vmatprep.subr.mxu0 0.0
    %3178 = vmatpush1.msra.mxu0 0.0
    %3179 = vmatprep.subr.mxu0 0.0
    %3180 = vmatpush1.msra.mxu0 0.0
    %3181 = vmatprep.subr.mxu0 0.0
    %3182 = vmatpush1.msra.mxu0 0.0
    %3183 = vmatprep.subr.mxu0 0.0
    %3184 = vmatpush1.msra.mxu0 0.0
    %3185 = vmatprep.subr.mxu0 0.0
    %3186 = vmatpush1.msra.mxu0 0.0
    %3187 = vmatprep.subr.mxu0 0.0
    %3188 = vmatpush1.msra.mxu0 0.0
    %3189 = vmatprep.subr.mxu0 0.0
    %3190 = vmatpush1.msra.mxu0 0.0
    %3191 = vmatprep.subr.mxu0 0.0
    %3192 = vmatpush1.msra.mxu0 0.0
    %3193 = vmatprep.subr.mxu0 0.0
    %3194 = vmatpush1.msra.mxu0 0.0
    %3195 = vmatprep.subr.mxu0 0.0
    %3196 = vmatpush1.msra.mxu0 0.0
    %3197 = vmatprep.subr.mxu0 0.0
    %3198 = vmatpush1.msra.mxu0 0.0
    %3199 = vmatprep.subr.mxu0 0.0
    %3200 = vmatpush1.msra.mxu0 0.0
    %3201 = vmatprep.subr.mxu0 0.0
    %3202 = vmatpush1.msra.mxu0 0.0
    %3203 = vmatprep.subr.mxu0 0.0
    %3204 = vmatpush1.msra.mxu0 0.0
    %3205 = vmatprep.subr.mxu0 0.0
    %3206 = vmatpush1.msra.mxu0 0.0
    %3207 = vmatprep.subr.mxu0 0.0
    %3208 = vmatpush1.msra.mxu0 0.0
    %3209 = vmatprep.subr.mxu0 0.0
    %3210 = vmatpush1.msra.mxu0 0.0
    %3211 = vmatprep.subr.mxu0 0.0
    %3212 = vmatpush1.msra.mxu0 0.0
    %3213 = vmatprep.subr.mxu0 0.0
    %3214 = vmatpush1.msra.mxu0 0.0
    %3215 = vmatprep.subr.mxu0 0.0
    %3216 = vmatpush1.msra.mxu0 0.0
    %3217 = vmatprep.subr.mxu0 0.0
    %3218 = vmatpush1.msra.mxu0 0.0
    %3219 = vmatprep.subr.mxu0 0.0
    %3220 = vmatpush1.msra.mxu0 0.0
    %3221 = vmatprep.subr.mxu0 0.0
    %3222 = vmatpush1.msra.mxu0 0.0
    %3223 = vmatprep.subr.mxu0 0.0
    %3224 = vmatpush1.msra.mxu0 0.0
    %3225 = vmatprep.subr.mxu0 0.0
    %3226 = vmatpush1.msra.mxu0 0.0
    %3227 = vmatprep.subr.mxu0 0.0
    %3228 = vmatpush1.msra.mxu0 0.0
    %3229 = vmatprep.subr.mxu0 0.0
    %3230 = vmatpush1.msra.mxu0 0.0
    %3231 = vmatprep.mubr.f32.mxu0 0.0
    %3232 = vmatmul.mubr.f32.gmra.mrb[0].mxu0 %v3165
    %v3233 = vpop.f32.mrb[0].mxu0
    %v3234 = vadd.f32 0.0, %v3233
    %v3235 = vpop.f32.mrb[0].mxu0
    %3236 = vdwg.mxu0
    %3237 = vrot.lane.b32.xlu0 %v2434, 64
    %v3238 = vpop.permute.xlu0 %3237
    %v3241 = vsel %vm400, %v3154, 0
    %3243 = vmatprep.subr.mxu0 0.0
    %3244 = vmatpush1.msra.mxu0 %v3238
    %3245 = vmatprep.subr.mxu0 0.0
    %3246 = vmatpush1.msra.mxu0 0.0
    %3247 = vmatprep.subr.mxu0 0.0
    %3248 = vmatpush1.msra.mxu0 0.0
    %3249 = vmatprep.subr.mxu0 0.0
    %3250 = vmatpush1.msra.mxu0 0.0
    %3251 = vmatprep.subr.mxu0 0.0
    %3252 = vmatpush1.msra.mxu0 0.0
    %3253 = vmatprep.subr.mxu0 0.0
    %3254 = vmatpush1.msra.mxu0 0.0
    %3255 = vmatprep.subr.mxu0 0.0
    %3256 = vmatpush1.msra.mxu0 0.0
    %3257 = vmatprep.subr.mxu0 0.0
    %3258 = vmatpush1.msra.mxu0 0.0
    %3259 = vmatprep.subr.mxu0 0.0
    %3260 = vmatpush1.msra.mxu0 0.0
    %3261 = vmatprep.subr.mxu0 0.0
    %3262 = vmatpush1.msra.mxu0 0.0
    %3263 = vmatprep.subr.mxu0 0.0
    %3264 = vmatpush1.msra.mxu0 0.0
    %3265 = vmatprep.subr.mxu0 0.0
    %3266 = vmatpush1.msra.mxu0 0.0
    %3267 = vmatprep.subr.mxu0 0.0
    %3268 = vmatpush1.msra.mxu0 0.0
    %3269 = vmatprep.subr.mxu0 0.0
    %3270 = vmatpush1.msra.mxu0 0.0
    %3271 = vmatprep.subr.mxu0 0.0
    %3272 = vmatpush1.msra.mxu0 0.0
    %3273 = vmatprep.subr.mxu0 0.0
    %3274 = vmatpush1.msra.mxu0 0.0
    %3275 = vmatprep.subr.mxu0 0.0
    %3276 = vmatpush1.msra.mxu0 0.0
    %3277 = vmatprep.subr.mxu0 0.0
    %3278 = vmatpush1.msra.mxu0 0.0
    %3279 = vmatprep.subr.mxu0 0.0
    %3280 = vmatpush1.msra.mxu0 0.0
    %3281 = vmatprep.subr.mxu0 0.0
    %3282 = vmatpush1.msra.mxu0 0.0
    %3283 = vmatprep.subr.mxu0 0.0
    %3284 = vmatpush1.msra.mxu0 0.0
    %3285 = vmatprep.subr.mxu0 0.0
    %3286 = vmatpush1.msra.mxu0 0.0
    %3287 = vmatprep.subr.mxu0 0.0
    %3288 = vmatpush1.msra.mxu0 0.0
    %3289 = vmatprep.subr.mxu0 0.0
    %3290 = vmatpush1.msra.mxu0 0.0
    %3291 = vmatprep.subr.mxu0 0.0
    %3292 = vmatpush1.msra.mxu0 0.0
    %3293 = vmatprep.subr.mxu0 0.0
    %3294 = vmatpush1.msra.mxu0 0.0
    %3295 = vmatprep.subr.mxu0 0.0
    %3296 = vmatpush1.msra.mxu0 0.0
    %3297 = vmatprep.subr.mxu0 0.0
    %3298 = vmatpush1.msra.mxu0 0.0
    %3299 = vmatprep.subr.mxu0 0.0
    %3300 = vmatpush1.msra.mxu0 0.0
    %3301 = vmatprep.subr.mxu0 0.0
    %3302 = vmatpush1.msra.mxu0 0.0
    %3303 = vmatprep.subr.mxu0 0.0
    %3304 = vmatpush1.msra.mxu0 0.0
    %3305 = vmatprep.subr.mxu0 0.0
    %3306 = vmatpush1.msra.mxu0 0.0
    %3307 = vmatprep.mubr.f32.mxu0 0.0
    %3308 = vmatmul.mubr.f32.gmra.mrb[0].mxu0 %v3241
    %v3309 = vpop.f32.mrb[0].mxu0
    %v3310 = vadd.f32 0.0, %v3309
    %v3311 = vpop.f32.mrb[0].mxu0
    %3312 = vdwg.mxu0
    %3313 = vrot.lane.b32.xlu0 %v2454, 64
    %v3314 = vpop.permute.xlu0 %3313
    %v3317 = vsel %vm400, %v3155, 0
    %3319 = vmatprep.subr.mxu0 0.0
    %3320 = vmatpush1.msra.mxu0 %v3314
    %3321 = vmatprep.subr.mxu0 0.0
    %3322 = vmatpush1.msra.mxu0 0.0
    %3323 = vmatprep.subr.mxu0 0.0
    %3324 = vmatpush1.msra.mxu0 0.0
    %3325 = vmatprep.subr.mxu0 0.0
    %3326 = vmatpush1.msra.mxu0 0.0
    %3327 = vmatprep.subr.mxu0 0.0
    %3328 = vmatpush1.msra.mxu0 0.0
    %3329 = vmatprep.subr.mxu0 0.0
    %3330 = vmatpush1.msra.mxu0 0.0
    %3331 = vmatprep.subr.mxu0 0.0
    %3332 = vmatpush1.msra.mxu0 0.0
    %3333 = vmatprep.subr.mxu0 0.0
    %3334 = vmatpush1.msra.mxu0 0.0
    %3335 = vmatprep.subr.mxu0 0.0
    %3336 = vmatpush1.msra.mxu0 0.0
    %3337 = vmatprep.subr.mxu0 0.0
    %3338 = vmatpush1.msra.mxu0 0.0
    %3339 = vmatprep.subr.mxu0 0.0
    %3340 = vmatpush1.msra.mxu0 0.0
    %3341 = vmatprep.subr.mxu0 0.0
    %3342 = vmatpush1.msra.mxu0 0.0
    %3343 = vmatprep.subr.mxu0 0.0
    %3344 = vmatpush1.msra.mxu0 0.0
    %3345 = vmatprep.subr.mxu0 0.0
    %3346 = vmatpush1.msra.mxu0 0.0
    %3347 = vmatprep.subr.mxu0 0.0
    %3348 = vmatpush1.msra.mxu0 0.0
    %3349 = vmatprep.subr.mxu0 0.0
    %3350 = vmatpush1.msra.mxu0 0.0
    %3351 = vmatprep.subr.mxu0 0.0
    %3352 = vmatpush1.msra.mxu0 0.0
    %3353 = vmatprep.subr.mxu0 0.0
    %3354 = vmatpush1.msra.mxu0 0.0
    %3355 = vmatprep.subr.mxu0 0.0
    %3356 = vmatpush1.msra.mxu0 0.0
    %3357 = vmatprep.subr.mxu0 0.0
    %3358 = vmatpush1.msra.mxu0 0.0
    %3359 = vmatprep.subr.mxu0 0.0
    %3360 = vmatpush1.msra.mxu0 0.0
    %3361 = vmatprep.subr.mxu0 0.0
    %3362 = vmatpush1.msra.mxu0 0.0
    %3363 = vmatprep.subr.mxu0 0.0
    %3364 = vmatpush1.msra.mxu0 0.0
    %3365 = vmatprep.subr.mxu0 0.0
    %3366 = vmatpush1.msra.mxu0 0.0
    %3367 = vmatprep.subr.mxu0 0.0
    %3368 = vmatpush1.msra.mxu0 0.0
    %3369 = vmatprep.subr.mxu0 0.0
    %3370 = vmatpush1.msra.mxu0 0.0
    %3371 = vmatprep.subr.mxu0 0.0
    %3372 = vmatpush1.msra.mxu0 0.0
    %3373 = vmatprep.subr.mxu0 0.0
    %3374 = vmatpush1.msra.mxu0 0.0
    %3375 = vmatprep.subr.mxu0 0.0
    %3376 = vmatpush1.msra.mxu0 0.0
    %3377 = vmatprep.subr.mxu0 0.0
    %3378 = vmatpush1.msra.mxu0 0.0
    %3379 = vmatprep.subr.mxu0 0.0
    %3380 = vmatpush1.msra.mxu0 0.0
    %3381 = vmatprep.subr.mxu0 0.0
    %3382 = vmatpush1.msra.mxu0 0.0
    %3383 = vmatprep.mubr.f32.mxu0 0.0
    %3384 = vmatmul.mubr.f32.gmra.mrb[0].mxu0 %v3317
    %v3385 = vpop.f32.mrb[0].mxu0
    %v3386 = vadd.f32 0.0, %v3385
    %v3387 = vpop.f32.mrb[0].mxu0
    %3388 = vdwg.mxu0
    %3389 = vrot.lane.b32.xlu0 %v2456, 64
    %v3390 = vpop.permute.xlu0 %3389
    %v3393 = vsel %vm400, %v3156, 0
    %3395 = vmatprep.subr.mxu0 0.0
    %3396 = vmatpush1.msra.mxu0 %v3390
    %3397 = vmatprep.subr.mxu0 0.0
    %3398 = vmatpush1.msra.mxu0 0.0
    %3399 = vmatprep.subr.mxu0 0.0
    %3400 = vmatpush1.msra.mxu0 0.0
    %3401 = vmatprep.subr.mxu0 0.0
    %3402 = vmatpush1.msra.mxu0 0.0
    %3403 = vmatprep.subr.mxu0 0.0
    %3404 = vmatpush1.msra.mxu0 0.0
    %3405 = vmatprep.subr.mxu0 0.0
    %3406 = vmatpush1.msra.mxu0 0.0
    %3407 = vmatprep.subr.mxu0 0.0
    %3408 = vmatpush1.msra.mxu0 0.0
    %3409 = vmatprep.subr.mxu0 0.0
    %3410 = vmatpush1.msra.mxu0 0.0
    %3411 = vmatprep.subr.mxu0 0.0
    %3412 = vmatpush1.msra.mxu0 0.0
    %3413 = vmatprep.subr.mxu0 0.0
    %3414 = vmatpush1.msra.mxu0 0.0
    %3415 = vmatprep.subr.mxu0 0.0
    %3416 = vmatpush1.msra.mxu0 0.0
    %3417 = vmatprep.subr.mxu0 0.0
    %3418 = vmatpush1.msra.mxu0 0.0
    %3419 = vmatprep.subr.mxu0 0.0
    %3420 = vmatpush1.msra.mxu0 0.0
    %3421 = vmatprep.subr.mxu0 0.0
    %3422 = vmatpush1.msra.mxu0 0.0
    %3423 = vmatprep.subr.mxu0 0.0
    %3424 = vmatpush1.msra.mxu0 0.0
    %3425 = vmatprep.subr.mxu0 0.0
    %3426 = vmatpush1.msra.mxu0 0.0
    %3427 = vmatprep.subr.mxu0 0.0
    %3428 = vmatpush1.msra.mxu0 0.0
    %3429 = vmatprep.subr.mxu0 0.0
    %3430 = vmatpush1.msra.mxu0 0.0
    %3431 = vmatprep.subr.mxu0 0.0
    %3432 = vmatpush1.msra.mxu0 0.0
    %3433 = vmatprep.subr.mxu0 0.0
    %3434 = vmatpush1.msra.mxu0 0.0
    %3435 = vmatprep.subr.mxu0 0.0
    %3436 = vmatpush1.msra.mxu0 0.0
    %3437 = vmatprep.subr.mxu0 0.0
    %3438 = vmatpush1.msra.mxu0 0.0
    %3439 = vmatprep.subr.mxu0 0.0
    %3440 = vmatpush1.msra.mxu0 0.0
    %3441 = vmatprep.subr.mxu0 0.0
    %3442 = vmatpush1.msra.mxu0 0.0
    %3443 = vmatprep.subr.mxu0 0.0
    %3444 = vmatpush1.msra.mxu0 0.0
    %3445 = vmatprep.subr.mxu0 0.0
    %3446 = vmatpush1.msra.mxu0 0.0
    %3447 = vmatprep.subr.mxu0 0.0
    %3448 = vmatpush1.msra.mxu0 0.0
    %3449 = vmatprep.subr.mxu0 0.0
    %3450 = vmatpush1.msra.mxu0 0.0
    %3451 = vmatprep.subr.mxu0 0.0
    %3452 = vmatpush1.msra.mxu0 0.0
    %3453 = vmatprep.subr.mxu0 0.0
    %3454 = vmatpush1.msra.mxu0 0.0
    %3455 = vmatprep.subr.mxu0 0.0
    %3456 = vmatpush1.msra.mxu0 0.0
    %3457 = vmatprep.subr.mxu0 0.0
    %3458 = vmatpush1.msra.mxu0 0.0
    %3459 = vmatprep.mubr.f32.mxu0 0.0
    %3460 = vmatmul.mubr.f32.gmra.mrb[0].mxu0 %v3393
    %v3461 = vpop.f32.mrb[0].mxu0
    %v3462 = vadd.f32 0.0, %v3461
    %v3463 = vpop.f32.mrb[0].mxu0
    %3464 = vdwg.mxu0
    %3465 = vrot.lane.b32.xlu0 %v2458, 64
    %v3466 = vpop.permute.xlu0 %3465
    %v3469 = vsel %vm400, %v3157, 0
    %3471 = vmatprep.subr.mxu0 0.0
    %3472 = vmatpush1.msra.mxu0 %v3466
    %3473 = vmatprep.subr.mxu0 0.0
    %3474 = vmatpush1.msra.mxu0 0.0
    %3475 = vmatprep.subr.mxu0 0.0
    %3476 = vmatpush1.msra.mxu0 0.0
    %3477 = vmatprep.subr.mxu0 0.0
    %3478 = vmatpush1.msra.mxu0 0.0
    %3479 = vmatprep.subr.mxu0 0.0
    %3480 = vmatpush1.msra.mxu0 0.0
    %3481 = vmatprep.subr.mxu0 0.0
    %3482 = vmatpush1.msra.mxu0 0.0
    %3483 = vmatprep.subr.mxu0 0.0
    %3484 = vmatpush1.msra.mxu0 0.0
    %3485 = vmatprep.subr.mxu0 0.0
    %3486 = vmatpush1.msra.mxu0 0.0
    %3487 = vmatprep.subr.mxu0 0.0
    %3488 = vmatpush1.msra.mxu0 0.0
    %3489 = vmatprep.subr.mxu0 0.0
    %3490 = vmatpush1.msra.mxu0 0.0
    %3491 = vmatprep.subr.mxu0 0.0
    %3492 = vmatpush1.msra.mxu0 0.0
    %3493 = vmatprep.subr.mxu0 0.0
    %3494 = vmatpush1.msra.mxu0 0.0
    %3495 = vmatprep.subr.mxu0 0.0
    %3496 = vmatpush1.msra.mxu0 0.0
    %3497 = vmatprep.subr.mxu0 0.0
    %3498 = vmatpush1.msra.mxu0 0.0
    %3499 = vmatprep.subr.mxu0 0.0
    %3500 = vmatpush1.msra.mxu0 0.0
    %3501 = vmatprep.subr.mxu0 0.0
    %3502 = vmatpush1.msra.mxu0 0.0
    %3503 = vmatprep.subr.mxu0 0.0
    %3504 = vmatpush1.msra.mxu0 0.0
    %3505 = vmatprep.subr.mxu0 0.0
    %3506 = vmatpush1.msra.mxu0 0.0
    %3507 = vmatprep.subr.mxu0 0.0
    %3508 = vmatpush1.msra.mxu0 0.0
    %3509 = vmatprep.subr.mxu0 0.0
    %3510 = vmatpush1.msra.mxu0 0.0
    %3511 = vmatprep.subr.mxu0 0.0
    %3512 = vmatpush1.msra.mxu0 0.0
    %3513 = vmatprep.subr.mxu0 0.0
    %3514 = vmatpush1.msra.mxu0 0.0
    %3515 = vmatprep.subr.mxu0 0.0
    %3516 = vmatpush1.msra.mxu0 0.0
    %3517 = vmatprep.subr.mxu0 0.0
    %3518 = vmatpush1.msra.mxu0 0.0
    %3519 = vmatprep.subr.mxu0 0.0
    %3520 = vmatpush1.msra.mxu0 0.0
    %3521 = vmatprep.subr.mxu0 0.0
    %3522 = vmatpush1.msra.mxu0 0.0
    %3523 = vmatprep.subr.mxu0 0.0
    %3524 = vmatpush1.msra.mxu0 0.0
    %3525 = vmatprep.subr.mxu0 0.0
    %3526 = vmatpush1.msra.mxu0 0.0
    %3527 = vmatprep.subr.mxu0 0.0
    %3528 = vmatpush1.msra.mxu0 0.0
    %3529 = vmatprep.subr.mxu0 0.0
    %3530 = vmatpush1.msra.mxu0 0.0
    %3531 = vmatprep.subr.mxu0 0.0
    %3532 = vmatpush1.msra.mxu0 0.0
    %3533 = vmatprep.subr.mxu0 0.0
    %3534 = vmatpush1.msra.mxu0 0.0
    %3535 = vmatprep.mubr.f32.mxu0 0.0
    %3536 = vmatmul.mubr.f32.gmra.mrb[0].mxu0 %v3469
    %v3537 = vpop.f32.mrb[0].mxu0
    %v3538 = vadd.f32 0.0, %v3537
    %v3539 = vpop.f32.mrb[0].mxu0
    %3540 = vdwg.mxu0
    %3541 = vrot.lane.b32.xlu0 %v2460, 64
    %v3542 = vpop.permute.xlu0 %3541
    %v3545 = vsel %vm400, %v3158, 0
    %3547 = vmatprep.subr.mxu0 0.0
    %3548 = vmatpush1.msra.mxu0 %v3542
    %3549 = vmatprep.subr.mxu0 0.0
    %3550 = vmatpush1.msra.mxu0 0.0
    %3551 = vmatprep.subr.mxu0 0.0
    %3552 = vmatpush1.msra.mxu0 0.0
    %3553 = vmatprep.subr.mxu0 0.0
    %3554 = vmatpush1.msra.mxu0 0.0
    %3555 = vmatprep.subr.mxu0 0.0
    %3556 = vmatpush1.msra.mxu0 0.0
    %3557 = vmatprep.subr.mxu0 0.0
    %3558 = vmatpush1.msra.mxu0 0.0
    %3559 = vmatprep.subr.mxu0 0.0
    %3560 = vmatpush1.msra.mxu0 0.0
    %3561 = vmatprep.subr.mxu0 0.0
    %3562 = vmatpush1.msra.mxu0 0.0
    %3563 = vmatprep.subr.mxu0 0.0
    %3564 = vmatpush1.msra.mxu0 0.0
    %3565 = vmatprep.subr.mxu0 0.0
    %3566 = vmatpush1.msra.mxu0 0.0
    %3567 = vmatprep.subr.mxu0 0.0
    %3568 = vmatpush1.msra.mxu0 0.0
    %3569 = vmatprep.subr.mxu0 0.0
    %3570 = vmatpush1.msra.mxu0 0.0
    %3571 = vmatprep.subr.mxu0 0.0
    %3572 = vmatpush1.msra.mxu0 0.0
    %3573 = vmatprep.subr.mxu0 0.0
    %3574 = vmatpush1.msra.mxu0 0.0
    %3575 = vmatprep.subr.mxu0 0.0
    %3576 = vmatpush1.msra.mxu0 0.0
    %3577 = vmatprep.subr.mxu0 0.0
    %3578 = vmatpush1.msra.mxu0 0.0
    %3579 = vmatprep.subr.mxu0 0.0
    %3580 = vmatpush1.msra.mxu0 0.0
    %3581 = vmatprep.subr.mxu0 0.0
    %3582 = vmatpush1.msra.mxu0 0.0
    %3583 = vmatprep.subr.mxu0 0.0
    %3584 = vmatpush1.msra.mxu0 0.0
    %3585 = vmatprep.subr.mxu0 0.0
    %3586 = vmatpush1.msra.mxu0 0.0
    %3587 = vmatprep.subr.mxu0 0.0
    %3588 = vmatpush1.msra.mxu0 0.0
    %3589 = vmatprep.subr.mxu0 0.0
    %3590 = vmatpush1.msra.mxu0 0.0
    %3591 = vmatprep.subr.mxu0 0.0
    %3592 = vmatpush1.msra.mxu0 0.0
    %3593 = vmatprep.subr.mxu0 0.0
    %3594 = vmatpush1.msra.mxu0 0.0
    %3595 = vmatprep.subr.mxu0 0.0
    %3596 = vmatpush1.msra.mxu0 0.0
    %3597 = vmatprep.subr.mxu0 0.0
    %3598 = vmatpush1.msra.mxu0 0.0
    %3599 = vmatprep.subr.mxu0 0.0
    %3600 = vmatpush1.msra.mxu0 0.0
    %3601 = vmatprep.subr.mxu0 0.0
    %3602 = vmatpush1.msra.mxu0 0.0
    %3603 = vmatprep.subr.mxu0 0.0
    %3604 = vmatpush1.msra.mxu0 0.0
    %3605 = vmatprep.subr.mxu0 0.0
    %3606 = vmatpush1.msra.mxu0 0.0
    %3607 = vmatprep.subr.mxu0 0.0
    %3608 = vmatpush1.msra.mxu0 0.0
    %3609 = vmatprep.subr.mxu0 0.0
    %3610 = vmatpush1.msra.mxu0 0.0
    %3611 = vmatprep.mubr.f32.mxu0 0.0
    %3612 = vmatmul.mubr.f32.gmra.mrb[0].mxu0 %v3545
    %v3613 = vpop.f32.mrb[0].mxu0
    %v3614 = vadd.f32 0.0, %v3613
    %v3615 = vpop.f32.mrb[0].mxu0
    %3616 = vdwg.mxu0
    %3617 = vrot.lane.b32.xlu0 %v2462, 64
    %v3618 = vpop.permute.xlu0 %3617
    %v3621 = vsel %vm400, %v3159, 0
    %3623 = vmatprep.subr.mxu0 0.0
    %3624 = vmatpush1.msra.mxu0 %v3618
    %3625 = vmatprep.subr.mxu0 0.0
    %3626 = vmatpush1.msra.mxu0 0.0
    %3627 = vmatprep.subr.mxu0 0.0
    %3628 = vmatpush1.msra.mxu0 0.0
    %3629 = vmatprep.subr.mxu0 0.0
    %3630 = vmatpush1.msra.mxu0 0.0
    %3631 = vmatprep.subr.mxu0 0.0
    %3632 = vmatpush1.msra.mxu0 0.0
    %3633 = vmatprep.subr.mxu0 0.0
    %3634 = vmatpush1.msra.mxu0 0.0
    %3635 = vmatprep.subr.mxu0 0.0
    %3636 = vmatpush1.msra.mxu0 0.0
    %3637 = vmatprep.subr.mxu0 0.0
    %3638 = vmatpush1.msra.mxu0 0.0
    %3639 = vmatprep.subr.mxu0 0.0
    %3640 = vmatpush1.msra.mxu0 0.0
    %3641 = vmatprep.subr.mxu0 0.0
    %3642 = vmatpush1.msra.mxu0 0.0
    %3643 = vmatprep.subr.mxu0 0.0
    %3644 = vmatpush1.msra.mxu0 0.0
    %3645 = vmatprep.subr.mxu0 0.0
    %3646 = vmatpush1.msra.mxu0 0.0
    %3647 = vmatprep.subr.mxu0 0.0
    %3648 = vmatpush1.msra.mxu0 0.0
    %3649 = vmatprep.subr.mxu0 0.0
    %3650 = vmatpush1.msra.mxu0 0.0
    %3651 = vmatprep.subr.mxu0 0.0
    %3652 = vmatpush1.msra.mxu0 0.0
    %3653 = vmatprep.subr.mxu0 0.0
    %3654 = vmatpush1.msra.mxu0 0.0
    %3655 = vmatprep.subr.mxu0 0.0
    %3656 = vmatpush1.msra.mxu0 0.0
    %3657 = vmatprep.subr.mxu0 0.0
    %3658 = vmatpush1.msra.mxu0 0.0
    %3659 = vmatprep.subr.mxu0 0.0
    %3660 = vmatpush1.msra.mxu0 0.0
    %3661 = vmatprep.subr.mxu0 0.0
    %3662 = vmatpush1.msra.mxu0 0.0
    %3663 = vmatprep.subr.mxu0 0.0
    %3664 = vmatpush1.msra.mxu0 0.0
    %3665 = vmatprep.subr.mxu0 0.0
    %3666 = vmatpush1.msra.mxu0 0.0
    %3667 = vmatprep.subr.mxu0 0.0
    %3668 = vmatpush1.msra.mxu0 0.0
    %3669 = vmatprep.subr.mxu0 0.0
    %3670 = vmatpush1.msra.mxu0 0.0
    %3671 = vmatprep.subr.mxu0 0.0
    %3672 = vmatpush1.msra.mxu0 0.0
    %3673 = vmatprep.subr.mxu0 0.0
    %3674 = vmatpush1.msra.mxu0 0.0
    %3675 = vmatprep.subr.mxu0 0.0
    %3676 = vmatpush1.msra.mxu0 0.0
    %3677 = vmatprep.subr.mxu0 0.0
    %3678 = vmatpush1.msra.mxu0 0.0
    %3679 = vmatprep.subr.mxu0 0.0
    %3680 = vmatpush1.msra.mxu0 0.0
    %3681 = vmatprep.subr.mxu0 0.0
    %3682 = vmatpush1.msra.mxu0 0.0
    %3683 = vmatprep.subr.mxu0 0.0
    %3684 = vmatpush1.msra.mxu0 0.0
    %3685 = vmatprep.subr.mxu0 0.0
    %3686 = vmatpush1.msra.mxu0 0.0
    %3687 = vmatprep.mubr.f32.mxu0 0.0
    %3688 = vmatmul.mubr.f32.gmra.mrb[0].mxu0 %v3621
    %v3689 = vpop.f32.mrb[0].mxu0
    %v3690 = vadd.f32 0.0, %v3689
    %v3691 = vpop.f32.mrb[0].mxu0
    %3692 = vdwg.mxu0
    %3693 = vrot.lane.b32.xlu0 %v2464, 64
    %v3694 = vpop.permute.xlu0 %3693
    %v3697 = vsel %vm400, %v3160, 0
    %3699 = vmatprep.subr.mxu0 0.0
    %3700 = vmatpush1.msra.mxu0 %v3694
    %3701 = vmatprep.subr.mxu0 0.0
    %3702 = vmatpush1.msra.mxu0 0.0
    %3703 = vmatprep.subr.mxu0 0.0
    %3704 = vmatpush1.msra.mxu0 0.0
    %3705 = vmatprep.subr.mxu0 0.0
    %3706 = vmatpush1.msra.mxu0 0.0
    %3707 = vmatprep.subr.mxu0 0.0
    %3708 = vmatpush1.msra.mxu0 0.0
    %3709 = vmatprep.subr.mxu0 0.0
    %3710 = vmatpush1.msra.mxu0 0.0
    %3711 = vmatprep.subr.mxu0 0.0
    %3712 = vmatpush1.msra.mxu0 0.0
    %3713 = vmatprep.subr.mxu0 0.0
    %3714 = vmatpush1.msra.mxu0 0.0
    %3715 = vmatprep.subr.mxu0 0.0
    %3716 = vmatpush1.msra.mxu0 0.0
    %3717 = vmatprep.subr.mxu0 0.0
    %3718 = vmatpush1.msra.mxu0 0.0
    %3719 = vmatprep.subr.mxu0 0.0
    %3720 = vmatpush1.msra.mxu0 0.0
    %3721 = vmatprep.subr.mxu0 0.0
    %3722 = vmatpush1.msra.mxu0 0.0
    %3723 = vmatprep.subr.mxu0 0.0
    %3724 = vmatpush1.msra.mxu0 0.0
    %3725 = vmatprep.subr.mxu0 0.0
    %3726 = vmatpush1.msra.mxu0 0.0
    %3727 = vmatprep.subr.mxu0 0.0
    %3728 = vmatpush1.msra.mxu0 0.0
    %3729 = vmatprep.subr.mxu0 0.0
    %3730 = vmatpush1.msra.mxu0 0.0
    %3731 = vmatprep.subr.mxu0 0.0
    %3732 = vmatpush1.msra.mxu0 0.0
    %3733 = vmatprep.subr.mxu0 0.0
    %3734 = vmatpush1.msra.mxu0 0.0
    %3735 = vmatprep.subr.mxu0 0.0
    %3736 = vmatpush1.msra.mxu0 0.0
    %3737 = vmatprep.subr.mxu0 0.0
    %3738 = vmatpush1.msra.mxu0 0.0
    %3739 = vmatprep.subr.mxu0 0.0
    %3740 = vmatpush1.msra.mxu0 0.0
    %3741 = vmatprep.subr.mxu0 0.0
    %3742 = vmatpush1.msra.mxu0 0.0
    %3743 = vmatprep.subr.mxu0 0.0
    %3744 = vmatpush1.msra.mxu0 0.0
    %3745 = vmatprep.subr.mxu0 0.0
    %3746 = vmatpush1.msra.mxu0 0.0
    %3747 = vmatprep.subr.mxu0 0.0
    %3748 = vmatpush1.msra.mxu0 0.0
    %3749 = vmatprep.subr.mxu0 0.0
    %3750 = vmatpush1.msra.mxu0 0.0
    %3751 = vmatprep.subr.mxu0 0.0
    %3752 = vmatpush1.msra.mxu0 0.0
    %3753 = vmatprep.subr.mxu0 0.0
    %3754 = vmatpush1.msra.mxu0 0.0
    %3755 = vmatprep.subr.mxu0 0.0
    %3756 = vmatpush1.msra.mxu0 0.0
    %3757 = vmatprep.subr.mxu0 0.0
    %3758 = vmatpush1.msra.mxu0 0.0
    %3759 = vmatprep.subr.mxu0 0.0
    %3760 = vmatpush1.msra.mxu0 0.0
    %3761 = vmatprep.subr.mxu0 0.0
    %3762 = vmatpush1.msra.mxu0 0.0
    %3763 = vmatprep.mubr.f32.mxu0 0.0
    %3764 = vmatmul.mubr.f32.gmra.mrb[0].mxu0 %v3697
    %v3765 = vpop.f32.mrb[0].mxu0
    %v3766 = vadd.f32 0.0, %v3765
    %v3767 = vpop.f32.mrb[0].mxu0
    %3768 = vdwg.mxu0
    %3771 = vrot.lane.b32.xlu0 %v3386, 8
    %v3772 = vpop.permute.xlu0 %3771
    %3773 = vrot.lane.b32.xlu0 %v3462, 8
    %v3774 = vpop.permute.xlu0 %3773
    %3779 = vrot.lane.b32.xlu0 %v3538, 16
    %v3780 = vpop.permute.xlu0 %3779
    %3781 = vrot.lane.b32.xlu0 %v3614, 16
    %v3782 = vpop.permute.xlu0 %3781
    %3787 = vrot.lane.b32.xlu0 %v3690, 24
    %v3788 = vpop.permute.xlu0 %3787
    %3789 = vrot.lane.b32.xlu0 %v3766, 24
    %v3790 = vpop.permute.xlu0 %3789
    %v3793 = vsel %vm400, %v3234, %v3772
    %v3794 = vsel %vm400, %v3310, %v3774
    %v3795 = vsel %vm1729, %v3793, %v3780
    %v3796 = vsel %vm1729, %v3794, %v3782
    %v3797 = vsel %vm1732, %v3795, %v3788
    %v3798 = vsel %vm1732, %v3796, %v3790
    %v3799 = vlaneseq
    %v3800 = vshrl.u32 %v3799, 7
    %v3801 = vsub.s32 0, %v3800
    %v3802 = vrot.slane %v2335, %v3801
    %v3804 = vsel %vm302, %v3797, 0
    %v3807 = vsel %vm302, %v3798, 0
    %3809 = vmatprep.subr.mxu0 0.0
    %3810 = vmatpush1.msra.mxu0 %v2331
    %3811 = vmatprep.subr.mxu0 0.0
    %3812 = vmatpush1.msra.mxu0 %v2332
    %3813 = vmatprep.subr.mxu0 0.0
    %3814 = vmatpush1.msra.mxu0 %v2333
    %3815 = vmatprep.subr.mxu0 0.0
    %3816 = vmatpush1.msra.mxu0 %v2334
    %3817 = vmatprep.subr.mxu0 0.0
    %3818 = vmatpush1.msra.mxu0 0.0
    %3819 = vmatprep.subr.mxu0 0.0
    %3820 = vmatpush1.msra.mxu0 0.0
    %3821 = vmatprep.subr.mxu0 0.0
    %3822 = vmatpush1.msra.mxu0 0.0
    %3823 = vmatprep.subr.mxu0 0.0
    %3824 = vmatpush1.msra.mxu0 0.0
    %3825 = vmatprep.subr.mxu0 0.0
    %3826 = vmatpush1.msra.mxu0 0.0
    %3827 = vmatprep.subr.mxu0 0.0
    %3828 = vmatpush1.msra.mxu0 0.0
    %3829 = vmatprep.subr.mxu0 0.0
    %3830 = vmatpush1.msra.mxu0 0.0
    %3831 = vmatprep.subr.mxu0 0.0
    %3832 = vmatpush1.msra.mxu0 0.0
    %3833 = vmatprep.subr.mxu0 0.0
    %3834 = vmatpush1.msra.mxu0 0.0
    %3835 = vmatprep.subr.mxu0 0.0
    %3836 = vmatpush1.msra.mxu0 0.0
    %3837 = vmatprep.subr.mxu0 0.0
    %3838 = vmatpush1.msra.mxu0 0.0
    %3839 = vmatprep.subr.mxu0 0.0
    %3840 = vmatpush1.msra.mxu0 0.0
    %3841 = vmatprep.subr.mxu0 0.0
    %3842 = vmatpush1.msra.mxu0 0.0
    %3843 = vmatprep.subr.mxu0 0.0
    %3844 = vmatpush1.msra.mxu0 0.0
    %3845 = vmatprep.subr.mxu0 0.0
    %3846 = vmatpush1.msra.mxu0 0.0
    %3847 = vmatprep.subr.mxu0 0.0
    %3848 = vmatpush1.msra.mxu0 0.0
    %3849 = vmatprep.subr.mxu0 0.0
    %3850 = vmatpush1.msra.mxu0 0.0
    %3851 = vmatprep.subr.mxu0 0.0
    %3852 = vmatpush1.msra.mxu0 0.0
    %3853 = vmatprep.subr.mxu0 0.0
    %3854 = vmatpush1.msra.mxu0 0.0
    %3855 = vmatprep.subr.mxu0 0.0
    %3856 = vmatpush1.msra.mxu0 0.0
    %3857 = vmatprep.subr.mxu0 0.0
    %3858 = vmatpush1.msra.mxu0 0.0
    %3859 = vmatprep.subr.mxu0 0.0
    %3860 = vmatpush1.msra.mxu0 0.0
    %3861 = vmatprep.subr.mxu0 0.0
    %3862 = vmatpush1.msra.mxu0 0.0
    %3863 = vmatprep.subr.mxu0 0.0
    %3864 = vmatpush1.msra.mxu0 0.0
    %3865 = vmatprep.subr.mxu0 0.0
    %3866 = vmatpush1.msra.mxu0 0.0
    %3867 = vmatprep.subr.mxu0 0.0
    %3868 = vmatpush1.msra.mxu0 0.0
    %3869 = vmatprep.subr.mxu0 0.0
    %3870 = vmatpush1.msra.mxu0 0.0
    %3871 = vmatprep.subr.mxu0 0.0
    %3872 = vmatpush1.msra.mxu0 0.0
    %3873 = vmatprep.mubr.f32.mxu0 0.0
    %3874 = vmatmul.mubr.f32.gmra.mrb[0].mxu0 %v3804
    %v3875 = vpop.f32.mrb[0].mxu0
    %v3876 = vadd.f32 %v3802, %v3875
    %v3877 = vpop.f32.mrb[0].mxu0
    %3878 = vmatprep.mubr.f32.mxu0 0.0
    %3879 = vmatmul.mubr.f32.gmra.mrb[0].mxu0 %v3807
    %v3880 = vpop.f32.mrb[0].mxu0
    %v3881 = vadd.f32 %v3802, %v3880
    %v3882 = vpop.f32.mrb[0].mxu0
    %3883 = vdwg.mxu0
    %v3884 = vadd.f32 %v2324, %v3876
    %v3885 = vadd.f32 %v2325, %v3881
    %v3886 = vld [vmem:[%s5 + $0xb] sm:$0x1]
    %v3887 = vld [vmem:[%s5 + $0xc] sm:$0x1]
    %v3888 = vsel %vm302, %v3884, 0.0
    %3889 = vadd.xlane.f32.xlu0 %v3888
    %v3890 = vpop.xlane.xlu0 %3889
    %v3891 = vsel %vm302, %v3885, 0.0
    %3892 = vadd.xlane.f32.xlu0 %v3891
    %v3893 = vpop.xlane.xlu0 %3892
    %v3894 = vmul.f32 %v3890, %v1830
    %v3895 = vmul.f32 %v3893, %v1830
    %v3896 = vsub.f32 %v3884, %v3894
    %v3897 = vsub.f32 %v3885, %v3895
    %v3898 = vmul.f32 %v3896, %v3896
    %v3899 = vmul.f32 %v3897, %v3897
    %v3900 = vsel %vm302, %v3898, 0.0
    %3901 = vadd.xlane.f32.xlu0 %v3900
    %v3902 = vpop.xlane.xlu0 %3901
    %v3903 = vsel %vm302, %v3899, 0.0
    %3904 = vadd.xlane.f32.xlu0 %v3903
    %v3905 = vpop.xlane.xlu0 %3904
    %v3906 = vmul.f32 %v3902, %v1830
    %v3907 = vmul.f32 %v3905, %v1830
    %v3908 = vadd.f32 %v3906, 1e-05
    %v3909 = vadd.f32 %v3907, 1e-05
    %v3910 = vrsqrt.pop %v3908
    %v3911 = vrsqrt.pop %v3909
    %v3912 = vmul.f32 %v3896, %v3910
    %v3913 = vmul.f32 %v3897, %v3911
    %v3914 = vlaneseq
    %v3915 = vshrl.u32 %v3914, 7
    %v3916 = vsub.s32 0, %v3915
    %v3917 = vrot.slane %v3886, %v3916
    %v3918 = vmul.f32 %v3912, %v3917
    %v3919 = vmul.f32 %v3913, %v3917
    %v3920 = vlaneseq
    %v3921 = vshrl.u32 %v3920, 7
    %v3922 = vsub.s32 0, %v3921
    %v3923 = vrot.slane %v3887, %v3922
    %v3924 = vadd.f32 %v3918, %v3923
    %v3925 = vadd.f32 %v3919, %v3923
    %3926 = vst.msk [vmem:[#allocation2] sm:$0xff] %vm302, %v3924
    %3927 = vst.msk [vmem:[#allocation2 + $0x8] sm:$0xff] %vm302, %v3925
    // Predicated region
    $region26: #{forward.1} parent=1 // pred_check
      _
    $region27: #{forward.1} parent=1 // pred_check_branch
      %3929 = sbr.rel (0) target = $region29
    $region28: #{forward.1} parent=1 // pred_region
      %s3931 = ssub.s32 256, 256
      %3932 = vsyncadd [#allocation3], %s3931
      %s3933 = sshll.u32 [#allocation2], 4
      %s3934 = int_to_ptr.vmem [resolvable:$true] %s3933
      %3939 = dma.vmem_to_hbm [thread:$0]  %s3934, 256, %s6, [#allocation3], 128, 128, 8
    $region29: #{forward.1} parent=1 // pred_fallthru
      _
    // Predicated region
    $region30: #{forward.1} parent=1 // pred_check
      _
    $region31: #{forward.1} parent=1 // pred_check_branch
      %3941 = sbr.rel (0) target = $region33
    $region32: #{forward.1} parent=1 // pred_region
      %3942 = dma.done [#allocation3], 256
    $region33: #{forward.1} parent=1 // pred_fallthru
      _
    %3943 = vsyncpa [#allocation3], 1

</llo_original>
